<compile_context>
chip_gen: v7x
topology: tpu7x:2x2x1
jax: 0.10.0
libtpu: 0.0.40
codegen_flags: <defaults>
</compile_context>

<pallas_src>
import functools

import jax
import jax.numpy as jnp
from jax.experimental import pallas as pl
from jax.experimental.pallas import tpu as pltpu

# ---- tiny synthetic "BERT" config (stand-in for bert-base-uncased) ----
VOCAB = 100
TYPE_VOCAB = 2
MAX_POS = 16
HIDDEN = 32
N_HEADS = 2
HEAD_DIM = HIDDEN // N_HEADS
INTERMEDIATE = 64
N_LAYERS = 2
NUM_LABELS = 5
LN_EPS = 1e-12
BN_EPS = 1e-5

_VMEM = pl.BlockSpec(memory_space=pltpu.MemorySpace.VMEM)


# ------------------------------------------------------------------ fused kernel

def _fused_forward_kernel(
    emb_ref,        # (B*S, H)  token+pos+type embeddings (pre-LayerNorm)
    mask_ref,       # (B, 1, S) additive attention mask
    sent_ref,       # (B, 1)    sentiment column
    wbig_ref,       # (L, H, 3H + H + I) = [Wqkv(scaled Q) | Wo | W1]
    w2_ref,         # (L, I, H)
    lsmall_ref,     # (L, 8, 128) per-layer biases / LN params (one per row)
    hslab_ref,      # (48, 64)  emb-LN / pooler / classifier / BN / head params
    out_ref,        # (B, 5)
    *, batch, seq,
):
    def layernorm(h, g, b):
        mean = jnp.mean(h, axis=-1, keepdims=True)
        var = jnp.mean((h - mean) ** 2, axis=-1, keepdims=True)
        return (h - mean) * jax.lax.rsqrt(var + LN_EPS) * g + b

    hslab = hslab_ref[...]
    emb_ln_g = hslab[32:33, 0:HIDDEN]
    emb_ln_b = hslab[33:34, 0:HIDDEN]

    x = layernorm(emb_ref[...], emb_ln_g, emb_ln_b)        # (B*S, H)
    mask = mask_ref[...]                                   # (B, 1, S)

    # Statically unrolled layer loop; all weights VMEM-resident.
    for l in range(N_LAYERS):
        wl = wbig_ref[l]                                   # (H, 192)
        sm = lsmall_ref[l]                                 # (8, 128)
        wqkv = wl[:, 0:3 * HIDDEN]                         # (H, 3H) -- Q cols pre-scaled
        wo = wl[:, 3 * HIDDEN:4 * HIDDEN]                  # (H, H)
        w1 = wl[:, 4 * HIDDEN:4 * HIDDEN + INTERMEDIATE]   # (H, I)
        w2 = w2_ref[l]                                     # (I, H)
        bqkv = sm[0:1, 0:3 * HIDDEN]
        bo = sm[1:2, 0:HIDDEN]
        ln1_g = sm[2:3, 0:HIDDEN]
        ln1_b = sm[3:4, 0:HIDDEN]
        b1 = sm[4:5, 0:INTERMEDIATE]
        b2 = sm[5:6, 0:HIDDEN]
        ln2_g = sm[6:7, 0:HIDDEN]
        ln2_b = sm[7:8, 0:HIDDEN]

        # ---- self-attention: single packed QKV matmul, heads batched over B ----
        qkv = jnp.dot(x, wqkv, preferred_element_type=jnp.float32) + bqkv   # (B*S, 3H)
        ctx_heads = []
        for h in range(N_HEADS):
            c0 = h * HEAD_DIM
            q = qkv[:, c0:c0 + HEAD_DIM].reshape(batch, seq, HEAD_DIM)
            k = qkv[:, HIDDEN + c0:HIDDEN + c0 + HEAD_DIM].reshape(batch, seq, HEAD_DIM)
            v = qkv[:, 2 * HIDDEN + c0:2 * HIDDEN + c0 + HEAD_DIM].reshape(batch, seq, HEAD_DIM)
            # 1/sqrt(head_dim) already folded into the Q columns of Wqkv.
            s = jnp.einsum('bqd,bkd->bqk', q, k,
                           preferred_element_type=jnp.float32)              # (B, S, S)
            s = s + mask
            s = s - jnp.max(s, axis=-1, keepdims=True)
            p = jnp.exp(s)
            p = p * pl.reciprocal(jnp.sum(p, axis=-1, keepdims=True), approx=True)
            ctx = jnp.einsum('bqk,bkd->bqd', p, v,
                             preferred_element_type=jnp.float32)            # (B, S, Dh)
            ctx_heads.append(ctx.reshape(batch * seq, HEAD_DIM))
        ctx_cat = jnp.concatenate(ctx_heads, axis=-1)                       # (B*S, H)
        attn = jnp.dot(ctx_cat, wo, preferred_element_type=jnp.float32) + bo
        x = layernorm(attn + x, ln1_g, ln1_b)

        # ---- feed-forward ----
        h1 = jnp.dot(x, w1, preferred_element_type=jnp.float32) + b1
        # TODO(synk): HF BERT uses exact (erf) GELU; tanh approximation used here.
        h1 = jax.nn.gelu(h1, approximate=True)
        ffn = jnp.dot(h1, w2, preferred_element_type=jnp.float32) + b2
        x = layernorm(ffn + x, ln2_g, ln2_b)

    # ---- pooler (tanh on CLS) + 5-way classifier ----
    pool_w = hslab[0:HIDDEN, 0:HIDDEN]
    cls_w = hslab[0:HIDDEN, HIDDEN:HIDDEN + NUM_LABELS]
    pool_b = hslab[34:35, 0:HIDDEN]
    cls_b = hslab[35:36, 0:NUM_LABELS]
    bn_g = hslab[36:37, 0:NUM_LABELS]
    bn_b = hslab[37:38, 0:NUM_LABELS]
    head_ws = hslab[38:39, 0:NUM_LABELS]
    head_b = hslab[39:40, 0:NUM_LABELS]
    head_w5 = hslab[40:40 + NUM_LABELS, 0:NUM_LABELS]

    cls_tok = x.reshape(batch, seq, HIDDEN)[:, 0, :]                        # (B, H)
    pooled = jnp.tanh(
        jnp.dot(cls_tok, pool_w, preferred_element_type=jnp.float32) + pool_b)
    bert_logits = jnp.dot(pooled, cls_w, preferred_element_type=jnp.float32) + cls_b

    # ---- rating head: relu -> BatchNorm1d(batch stats) -> cat(sentiment) -> relu -> Linear(6,5)
    xh = jnp.maximum(bert_logits, 0.0)
    mu = jnp.mean(xh, axis=0, keepdims=True)
    var = jnp.mean((xh - mu) ** 2, axis=0, keepdims=True)                   # biased variance
    xh = (xh - mu) * jax.lax.rsqrt(var + BN_EPS) * bn_g + bn_b
    xh = jnp.maximum(xh, 0.0)
    s_in = jnp.maximum(sent_ref[...], 0.0)                                  # (B, 1)
    # Linear(6, 5) over cat([x, sentiment]) == x @ W[:5] + s * W[5:] + b
    out_ref[...] = (jnp.dot(xh, head_w5, preferred_element_type=jnp.float32)
                    + s_in * head_ws + head_b)


# ------------------------------------------------------------------ params

def init_params(key):
    keys = iter(jax.random.split(key, 32))

    def nrm(shape):
        return jax.random.normal(next(keys), shape, jnp.float32) * 0.02

    return {
        "word_emb": nrm((VOCAB, HIDDEN)),
        "pos_emb": nrm((MAX_POS, HIDDEN)),
        "type_emb": nrm((TYPE_VOCAB, HIDDEN)),
        "emb_ln_g": jnp.ones((1, HIDDEN), jnp.float32),
        "emb_ln_b": jnp.zeros((1, HIDDEN), jnp.float32),
        "wqkv": nrm((N_LAYERS, HIDDEN, 3 * HIDDEN)),
        "bqkv": jnp.zeros((N_LAYERS, 1, 3 * HIDDEN), jnp.float32),
        "wo": nrm((N_LAYERS, HIDDEN, HIDDEN)),
        "bo": jnp.zeros((N_LAYERS, 1, HIDDEN), jnp.float32),
        "ln1_g": jnp.ones((N_LAYERS, 1, HIDDEN), jnp.float32),
        "ln1_b": jnp.zeros((N_LAYERS, 1, HIDDEN), jnp.float32),
        "w1": nrm((N_LAYERS, HIDDEN, INTERMEDIATE)),
        "b1": jnp.zeros((N_LAYERS, 1, INTERMEDIATE), jnp.float32),
        "w2": nrm((N_LAYERS, INTERMEDIATE, HIDDEN)),
        "b2": jnp.zeros((N_LAYERS, 1, HIDDEN), jnp.float32),
        "ln2_g": jnp.ones((N_LAYERS, 1, HIDDEN), jnp.float32),
        "ln2_b": jnp.zeros((N_LAYERS, 1, HIDDEN), jnp.float32),
        "pool_w": nrm((HIDDEN, HIDDEN)),
        "pool_b": jnp.zeros((1, HIDDEN), jnp.float32),
        "cls_w": nrm((HIDDEN, NUM_LABELS)),
        "cls_b": jnp.zeros((1, NUM_LABELS), jnp.float32),
        "bn_gamma": jnp.ones((1, NUM_LABELS), jnp.float32),
        "bn_beta": jnp.zeros((1, NUM_LABELS), jnp.float32),
        "head_w": nrm((NUM_LABELS + 1, NUM_LABELS)),
        "head_b": jnp.zeros((1, NUM_LABELS), jnp.float32),
    }


def pack_params(params):
    """One-time packing: collapse 20+ small tensors into 4 VMEM slabs (fewer entry DMAs),
    fold the 1/sqrt(head_dim) attention scale into the Q columns of Wqkv."""
    scale = 1.0 / (HEAD_DIM ** 0.5)
    wqkv = params["wqkv"].at[:, :, :HIDDEN].multiply(scale)
    wbig = jnp.concatenate([wqkv, params["wo"], params["w1"]], axis=-1)   # (L, H, 192)

    lsmall = jnp.zeros((N_LAYERS, 8, 128), jnp.float32)
    lsmall = lsmall.at[:, 0, :3 * HIDDEN].set(params["bqkv"][:, 0, :])
    lsmall = lsmall.at[:, 1, :HIDDEN].set(params["bo"][:, 0, :])
    lsmall = lsmall.at[:, 2, :HIDDEN].set(params["ln1_g"][:, 0, :])
    lsmall = lsmall.at[:, 3, :HIDDEN].set(params["ln1_b"][:, 0, :])
    lsmall = lsmall.at[:, 4, :INTERMEDIATE].set(params["b1"][:, 0, :])
    lsmall = lsmall.at[:, 5, :HIDDEN].set(params["b2"][:, 0, :])
    lsmall = lsmall.at[:, 6, :HIDDEN].set(params["ln2_g"][:, 0, :])
    lsmall = lsmall.at[:, 7, :HIDDEN].set(params["ln2_b"][:, 0, :])

    hslab = jnp.zeros((48, 64), jnp.float32)
    hslab = hslab.at[0:HIDDEN, 0:HIDDEN].set(params["pool_w"])
    hslab = hslab.at[0:HIDDEN, HIDDEN:HIDDEN + NUM_LABELS].set(params["cls_w"])
    hslab = hslab.at[32, 0:HIDDEN].set(params["emb_ln_g"][0])
    hslab = hslab.at[33, 0:HIDDEN].set(params["emb_ln_b"][0])
    hslab = hslab.at[34, 0:HIDDEN].set(params["pool_b"][0])
    hslab = hslab.at[35, 0:NUM_LABELS].set(params["cls_b"][0])
    hslab = hslab.at[36, 0:NUM_LABELS].set(params["bn_gamma"][0])
    hslab = hslab.at[37, 0:NUM_LABELS].set(params["bn_beta"][0])
    hslab = hslab.at[38, 0:NUM_LABELS].set(params["head_w"][NUM_LABELS, :])
    hslab = hslab.at[39, 0:NUM_LABELS].set(params["head_b"][0])
    hslab = hslab.at[40:40 + NUM_LABELS, 0:NUM_LABELS].set(params["head_w"][:NUM_LABELS, :])

    return {
        "word_emb": params["word_emb"],
        "pos_emb": params["pos_emb"],
        "type_emb": params["type_emb"],
        "wbig": wbig,
        "w2": params["w2"],
        "lsmall": lsmall,
        "hslab": hslab,
    }


# ------------------------------------------------------------------ forward

def t_forward(packed, input_ids, sentiment, token_type_ids=None, attention_mask=None):
    B, S = input_ids.shape
    if token_type_ids is None:
        token_type_ids = jnp.zeros((B, S), jnp.int32)
    if attention_mask is None:
        attention_mask = jnp.ones((B, S), jnp.float32)

    # Embedding-table gathers stay as JAX glue; everything else is one fused kernel.
    emb = (jnp.take(packed["word_emb"], input_ids, axis=0)
           + packed["pos_emb"][:S][None, :, :]
           + jnp.take(packed["type_emb"], token_type_ids, axis=0)
           ).reshape(B * S, HIDDEN).astype(jnp.float32)
    add_mask = ((1.0 - attention_mask.astype(jnp.float32)) * -1e4).reshape(B, 1, S)
    sent = sentiment.astype(jnp.float32).reshape(B, 1)

    kernel = functools.partial(_fused_forward_kernel, batch=B, seq=S)
    return pl.pallas_call(
        kernel,
        out_shape=jax.ShapeDtypeStruct((B, NUM_LABELS), jnp.float32),
        in_specs=[_VMEM] * 7,
        out_specs=_VMEM,
    )(emb, add_mask, sent,
      packed["wbig"], packed["w2"], packed["lsmall"], packed["hslab"])


# ------------------------------------------------------------------ main

if __name__ == "__main__":
    key = jax.random.PRNGKey(0)
    kp, ki, ks = jax.random.split(key, 3)

    params = init_params(kp)
    packed = pack_params(params)

    B, S = 2, 8
    input_ids = jax.random.randint(ki, (B, S), 0, VOCAB, dtype=jnp.int32)
    token_type_ids = jnp.zeros((B, S), jnp.int32)
    attention_mask = jnp.ones((B, S), jnp.float32)
    sentiment = jax.random.uniform(ks, (B,), jnp.float32, 1.0, 5.0)       # rating values

    logits = jax.jit(t_forward)(packed, input_ids, sentiment,
                                token_type_ids, attention_mask)
    logits = jax.block_until_ready(logits)

    assert logits.shape == (B, NUM_LABELS), logits.shape
    assert logits.dtype == jnp.float32
    print("KERNEL_OK")
</pallas_src>

<mosaic_0001>
module attributes {stable_mosaic.version = 11 : i64} {
  func.func @_fused_forward_kernel(%arg0: memref<16x32xf32, #tpu.memory_space<vmem>>, %arg1: memref<2x1x8xf32, #tpu.memory_space<vmem>>, %arg2: memref<2x1xf32, #tpu.memory_space<vmem>>, %arg3: memref<2x32x192xf32, #tpu.memory_space<vmem>>, %arg4: memref<2x64x32xf32, #tpu.memory_space<vmem>>, %arg5: memref<2x8x128xf32, #tpu.memory_space<vmem>>, %arg6: memref<48x64xf32, #tpu.memory_space<vmem>>, %arg7: memref<2x5xf32, #tpu.memory_space<vmem>>) attributes {dimension_semantics = [], scalar_prefetch = 0 : i64, scratch_operands = 0 : i64, tpu.core_type = #tpu.core_type<tc>} {
    %c0 = arith.constant 0 : index
    %c0_0 = arith.constant 0 : index
    %0 = vector.load %arg6[%c0, %c0_0] : memref<48x64xf32, #tpu.memory_space<vmem>>, vector<48x64xf32>
    %1 = vector.extract_strided_slice %0 {offsets = [32, 0], sizes = [1, 32], strides = [1, 1]} : vector<48x64xf32> to vector<1x32xf32>
    %2 = vector.extract_strided_slice %0 {offsets = [33, 0], sizes = [1, 32], strides = [1, 1]} : vector<48x64xf32> to vector<1x32xf32>
    %c0_1 = arith.constant 0 : index
    %c0_2 = arith.constant 0 : index
    %3 = vector.load %arg0[%c0_1, %c0_2] : memref<16x32xf32, #tpu.memory_space<vmem>>, vector<16x32xf32>
    %cst = arith.constant dense<0.000000e+00> : vector<16xf32>
    %4 = vector.multi_reduction <add>, %3, %cst [1] : vector<16x32xf32> to vector<16xf32>
    %5 = vector.shape_cast %4 : vector<16xf32> to vector<16x1xf32>
    %cst_3 = arith.constant 3.200000e+01 : f32
    %6 = vector.broadcast %cst_3 : f32 to vector<16x1xf32>
    %7 = arith.divf %5, %6 : vector<16x1xf32>
    %8 = vector.broadcast %7 : vector<16x1xf32> to vector<16x32xf32>
    %9 = arith.subf %3, %8 : vector<16x32xf32>
    %10 = arith.mulf %9, %9 : vector<16x32xf32>
    %cst_4 = arith.constant dense<0.000000e+00> : vector<16xf32>
    %11 = vector.multi_reduction <add>, %10, %cst_4 [1] : vector<16x32xf32> to vector<16xf32>
    %12 = vector.shape_cast %11 : vector<16xf32> to vector<16x1xf32>
    %cst_5 = arith.constant 3.200000e+01 : f32
    %13 = vector.broadcast %cst_5 : f32 to vector<16x1xf32>
    %14 = arith.divf %12, %13 : vector<16x1xf32>
    %15 = vector.broadcast %7 : vector<16x1xf32> to vector<16x32xf32>
    %16 = arith.subf %3, %15 : vector<16x32xf32>
    %cst_6 = arith.constant 9.99999996E-13 : f32
    %17 = vector.broadcast %cst_6 : f32 to vector<16x1xf32>
    %18 = arith.addf %14, %17 : vector<16x1xf32>
    %19 = math.rsqrt %18 : vector<16x1xf32>
    %20 = vector.broadcast %19 : vector<16x1xf32> to vector<16x32xf32>
    %21 = arith.mulf %16, %20 : vector<16x32xf32>
    %22 = vector.broadcast %1 : vector<1x32xf32> to vector<16x32xf32>
    %23 = arith.mulf %21, %22 : vector<16x32xf32>
    %24 = vector.broadcast %2 : vector<1x32xf32> to vector<16x32xf32>
    %25 = arith.addf %23, %24 : vector<16x32xf32>
    %c0_7 = arith.constant 0 : index
    %c0_8 = arith.constant 0 : index
    %c0_9 = arith.constant 0 : index
    %26 = vector.load %arg1[%c0_7, %c0_8, %c0_9] : memref<2x1x8xf32, #tpu.memory_space<vmem>>, vector<2x1x8xf32>
    %c0_10 = arith.constant 0 : index
    %c0_11 = arith.constant 0 : index
    %c0_12 = arith.constant 0 : index
    %27 = vector.load %arg3[%c0_10, %c0_11, %c0_12] : memref<2x32x192xf32, #tpu.memory_space<vmem>>, vector<1x32x192xf32>
    %28 = vector.shape_cast %27 : vector<1x32x192xf32> to vector<32x192xf32>
    %c0_13 = arith.constant 0 : index
    %c0_14 = arith.constant 0 : index
    %c0_15 = arith.constant 0 : index
    %29 = vector.load %arg5[%c0_13, %c0_14, %c0_15] : memref<2x8x128xf32, #tpu.memory_space<vmem>>, vector<1x8x128xf32>
    %30 = vector.shape_cast %29 : vector<1x8x128xf32> to vector<8x128xf32>
    %31 = vector.extract_strided_slice %28 {offsets = [0, 0], sizes = [32, 96], strides = [1, 1]} : vector<32x192xf32> to vector<32x96xf32>
    %32 = vector.extract_strided_slice %28 {offsets = [0, 96], sizes = [32, 32], strides = [1, 1]} : vector<32x192xf32> to vector<32x32xf32>
    %33 = vector.extract_strided_slice %28 {offsets = [0, 128], sizes = [32, 64], strides = [1, 1]} : vector<32x192xf32> to vector<32x64xf32>
    %c0_16 = arith.constant 0 : index
    %c0_17 = arith.constant 0 : index
    %c0_18 = arith.constant 0 : index
    %34 = vector.load %arg4[%c0_16, %c0_17, %c0_18] : memref<2x64x32xf32, #tpu.memory_space<vmem>>, vector<1x64x32xf32>
    %35 = vector.shape_cast %34 : vector<1x64x32xf32> to vector<64x32xf32>
    %36 = vector.extract_strided_slice %30 {offsets = [0, 0], sizes = [1, 96], strides = [1, 1]} : vector<8x128xf32> to vector<1x96xf32>
    %37 = vector.extract_strided_slice %30 {offsets = [1, 0], sizes = [1, 32], strides = [1, 1]} : vector<8x128xf32> to vector<1x32xf32>
    %38 = vector.extract_strided_slice %30 {offsets = [2, 0], sizes = [1, 32], strides = [1, 1]} : vector<8x128xf32> to vector<1x32xf32>
    %39 = vector.extract_strided_slice %30 {offsets = [3, 0], sizes = [1, 32], strides = [1, 1]} : vector<8x128xf32> to vector<1x32xf32>
    %40 = vector.extract_strided_slice %30 {offsets = [4, 0], sizes = [1, 64], strides = [1, 1]} : vector<8x128xf32> to vector<1x64xf32>
    %41 = vector.extract_strided_slice %30 {offsets = [5, 0], sizes = [1, 32], strides = [1, 1]} : vector<8x128xf32> to vector<1x32xf32>
    %42 = vector.extract_strided_slice %30 {offsets = [6, 0], sizes = [1, 32], strides = [1, 1]} : vector<8x128xf32> to vector<1x32xf32>
    %43 = vector.extract_strided_slice %30 {offsets = [7, 0], sizes = [1, 32], strides = [1, 1]} : vector<8x128xf32> to vector<1x32xf32>
    %cst_19 = arith.constant dense<0.000000e+00> : vector<16x96xf32>
    %44 = tpu.matmul %25, %31, %cst_19 {dimension_numbers = #tpu.dot_dimension_numbers<[1], [0], [0], [1], [0, 0, 1, 1], [], []>} : vector<16x32xf32>, vector<32x96xf32>, vector<16x96xf32> -> vector<16x96xf32>
    %45 = vector.broadcast %36 : vector<1x96xf32> to vector<16x96xf32>
    %46 = arith.addf %44, %45 : vector<16x96xf32>
    %47 = vector.extract_strided_slice %46 {offsets = [0, 0], sizes = [16, 16], strides = [1, 1]} : vector<16x96xf32> to vector<16x16xf32>
    %48 = vector.shape_cast %47 : vector<16x16xf32> to vector<2x8x16xf32>
    %49 = vector.extract_strided_slice %46 {offsets = [0, 32], sizes = [16, 16], strides = [1, 1]} : vector<16x96xf32> to vector<16x16xf32>
    %50 = vector.shape_cast %49 : vector<16x16xf32> to vector<2x8x16xf32>
    %51 = vector.extract_strided_slice %46 {offsets = [0, 64], sizes = [16, 16], strides = [1, 1]} : vector<16x96xf32> to vector<16x16xf32>
    %52 = vector.shape_cast %51 : vector<16x16xf32> to vector<2x8x16xf32>
    "tpu.trace_start"() <{level = 10 : i32, message = "bqd,bkd->bqk"}> : () -> ()
    %cst_20 = arith.constant dense<0.000000e+00> : vector<2x8x8xf32>
    %53 = tpu.matmul %48, %50, %cst_20 {dimension_numbers = #tpu.dot_dimension_numbers<[2], [2], [1], [1], [0, 0, 0, 1, 1, 1], [0], [0]>} : vector<2x8x16xf32>, vector<2x8x16xf32>, vector<2x8x8xf32> -> vector<2x8x8xf32>
    "tpu.trace_stop"() : () -> ()
    %54 = vector.broadcast %26 : vector<2x1x8xf32> to vector<2x8x8xf32>
    %55 = arith.addf %53, %54 : vector<2x8x8xf32>
    %cst_21 = arith.constant dense<0xFF800000> : vector<2x8xf32>
    %56 = vector.multi_reduction <maximumf>, %55, %cst_21 [2] : vector<2x8x8xf32> to vector<2x8xf32>
    %57 = vector.shape_cast %56 : vector<2x8xf32> to vector<2x8x1xf32>
    %58 = vector.broadcast %57 : vector<2x8x1xf32> to vector<2x8x8xf32>
    %59 = arith.subf %55, %58 : vector<2x8x8xf32>
    %60 = math.exp %59 : vector<2x8x8xf32>
    %cst_22 = arith.constant dense<0.000000e+00> : vector<2x8xf32>
    %61 = vector.multi_reduction <add>, %60, %cst_22 [2] : vector<2x8x8xf32> to vector<2x8xf32>
    %62 = vector.shape_cast %61 : vector<2x8xf32> to vector<2x8x1xf32>
    %63 = tpu.reciprocal %62 {approx = true} : vector<2x8x1xf32> -> vector<2x8x1xf32>
    %64 = vector.broadcast %63 : vector<2x8x1xf32> to vector<2x8x8xf32>
    %65 = arith.mulf %60, %64 : vector<2x8x8xf32>
    "tpu.trace_start"() <{level = 10 : i32, message = "bqk,bkd->bqd"}> : () -> ()
    %cst_23 = arith.constant dense<0.000000e+00> : vector<2x8x16xf32>
    %66 = tpu.matmul %65, %52, %cst_23 {dimension_numbers = #tpu.dot_dimension_numbers<[2], [1], [1], [2], [0, 0, 0, 1, 1, 2], [0], [0]>} : vector<2x8x8xf32>, vector<2x8x16xf32>, vector<2x8x16xf32> -> vector<2x8x16xf32>
    "tpu.trace_stop"() : () -> ()
    %67 = vector.shape_cast %66 : vector<2x8x16xf32> to vector<16x16xf32>
    %68 = vector.extract_strided_slice %46 {offsets = [0, 16], sizes = [16, 16], strides = [1, 1]} : vector<16x96xf32> to vector<16x16xf32>
    %69 = vector.shape_cast %68 : vector<16x16xf32> to vector<2x8x16xf32>
    %70 = vector.extract_strided_slice %46 {offsets = [0, 48], sizes = [16, 16], strides = [1, 1]} : vector<16x96xf32> to vector<16x16xf32>
    %71 = vector.shape_cast %70 : vector<16x16xf32> to vector<2x8x16xf32>
    %72 = vector.extract_strided_slice %46 {offsets = [0, 80], sizes = [16, 16], strides = [1, 1]} : vector<16x96xf32> to vector<16x16xf32>
    %73 = vector.shape_cast %72 : vector<16x16xf32> to vector<2x8x16xf32>
    "tpu.trace_start"() <{level = 10 : i32, message = "bqd,bkd->bqk"}> : () -> ()
    %cst_24 = arith.constant dense<0.000000e+00> : vector<2x8x8xf32>
    %74 = tpu.matmul %69, %71, %cst_24 {dimension_numbers = #tpu.dot_dimension_numbers<[2], [2], [1], [1], [0, 0, 0, 1, 1, 1], [0], [0]>} : vector<2x8x16xf32>, vector<2x8x16xf32>, vector<2x8x8xf32> -> vector<2x8x8xf32>
    "tpu.trace_stop"() : () -> ()
    %75 = vector.broadcast %26 : vector<2x1x8xf32> to vector<2x8x8xf32>
    %76 = arith.addf %74, %75 : vector<2x8x8xf32>
    %cst_25 = arith.constant dense<0xFF800000> : vector<2x8xf32>
    %77 = vector.multi_reduction <maximumf>, %76, %cst_25 [2] : vector<2x8x8xf32> to vector<2x8xf32>
    %78 = vector.shape_cast %77 : vector<2x8xf32> to vector<2x8x1xf32>
    %79 = vector.broadcast %78 : vector<2x8x1xf32> to vector<2x8x8xf32>
    %80 = arith.subf %76, %79 : vector<2x8x8xf32>
    %81 = math.exp %80 : vector<2x8x8xf32>
    %cst_26 = arith.constant dense<0.000000e+00> : vector<2x8xf32>
    %82 = vector.multi_reduction <add>, %81, %cst_26 [2] : vector<2x8x8xf32> to vector<2x8xf32>
    %83 = vector.shape_cast %82 : vector<2x8xf32> to vector<2x8x1xf32>
    %84 = tpu.reciprocal %83 {approx = true} : vector<2x8x1xf32> -> vector<2x8x1xf32>
    %85 = vector.broadcast %84 : vector<2x8x1xf32> to vector<2x8x8xf32>
    %86 = arith.mulf %81, %85 : vector<2x8x8xf32>
    "tpu.trace_start"() <{level = 10 : i32, message = "bqk,bkd->bqd"}> : () -> ()
    %cst_27 = arith.constant dense<0.000000e+00> : vector<2x8x16xf32>
    %87 = tpu.matmul %86, %73, %cst_27 {dimension_numbers = #tpu.dot_dimension_numbers<[2], [1], [1], [2], [0, 0, 0, 1, 1, 2], [0], [0]>} : vector<2x8x8xf32>, vector<2x8x16xf32>, vector<2x8x16xf32> -> vector<2x8x16xf32>
    "tpu.trace_stop"() : () -> ()
    %88 = vector.shape_cast %87 : vector<2x8x16xf32> to vector<16x16xf32>
    %89 = tpu.concatenate %67, %88 in 1 : vector<16x16xf32>, vector<16x16xf32> -> vector<16x32xf32>
    %cst_28 = arith.constant dense<0.000000e+00> : vector<16x32xf32>
    %90 = tpu.matmul %89, %32, %cst_28 {dimension_numbers = #tpu.dot_dimension_numbers<[1], [0], [0], [1], [0, 0, 1, 1], [], []>} : vector<16x32xf32>, vector<32x32xf32>, vector<16x32xf32> -> vector<16x32xf32>
    %91 = vector.broadcast %37 : vector<1x32xf32> to vector<16x32xf32>
    %92 = arith.addf %90, %91 : vector<16x32xf32>
    %93 = arith.addf %92, %25 : vector<16x32xf32>
    %cst_29 = arith.constant dense<0.000000e+00> : vector<16xf32>
    %94 = vector.multi_reduction <add>, %93, %cst_29 [1] : vector<16x32xf32> to vector<16xf32>
    %95 = vector.shape_cast %94 : vector<16xf32> to vector<16x1xf32>
    %cst_30 = arith.constant 3.200000e+01 : f32
    %96 = vector.broadcast %cst_30 : f32 to vector<16x1xf32>
    %97 = arith.divf %95, %96 : vector<16x1xf32>
    %98 = vector.broadcast %97 : vector<16x1xf32> to vector<16x32xf32>
    %99 = arith.subf %93, %98 : vector<16x32xf32>
    %100 = arith.mulf %99, %99 : vector<16x32xf32>
    %cst_31 = arith.constant dense<0.000000e+00> : vector<16xf32>
    %101 = vector.multi_reduction <add>, %100, %cst_31 [1] : vector<16x32xf32> to vector<16xf32>
    %102 = vector.shape_cast %101 : vector<16xf32> to vector<16x1xf32>
    %cst_32 = arith.constant 3.200000e+01 : f32
    %103 = vector.broadcast %cst_32 : f32 to vector<16x1xf32>
    %104 = arith.divf %102, %103 : vector<16x1xf32>
    %105 = vector.broadcast %97 : vector<16x1xf32> to vector<16x32xf32>
    %106 = arith.subf %93, %105 : vector<16x32xf32>
    %cst_33 = arith.constant 9.99999996E-13 : f32
    %107 = vector.broadcast %cst_33 : f32 to vector<16x1xf32>
    %108 = arith.addf %104, %107 : vector<16x1xf32>
    %109 = math.rsqrt %108 : vector<16x1xf32>
    %110 = vector.broadcast %109 : vector<16x1xf32> to vector<16x32xf32>
    %111 = arith.mulf %106, %110 : vector<16x32xf32>
    %112 = vector.broadcast %38 : vector<1x32xf32> to vector<16x32xf32>
    %113 = arith.mulf %111, %112 : vector<16x32xf32>
    %114 = vector.broadcast %39 : vector<1x32xf32> to vector<16x32xf32>
    %115 = arith.addf %113, %114 : vector<16x32xf32>
    %cst_34 = arith.constant dense<0.000000e+00> : vector<16x64xf32>
    %116 = tpu.matmul %115, %33, %cst_34 {dimension_numbers = #tpu.dot_dimension_numbers<[1], [0], [0], [1], [0, 0, 1, 1], [], []>} : vector<16x32xf32>, vector<32x64xf32>, vector<16x64xf32> -> vector<16x64xf32>
    %117 = vector.broadcast %40 : vector<1x64xf32> to vector<16x64xf32>
    %118 = arith.addf %116, %117 : vector<16x64xf32>
    %119 = arith.mulf %118, %118 : vector<16x64xf32>
    %120 = arith.mulf %118, %119 : vector<16x64xf32>
    %cst_35 = arith.constant 4.471500e-02 : f32
    %121 = vector.broadcast %cst_35 : f32 to vector<16x64xf32>
    %122 = arith.mulf %121, %120 : vector<16x64xf32>
    %123 = arith.addf %118, %122 : vector<16x64xf32>
    %cst_36 = arith.constant 0.797884583 : f32
    %124 = vector.broadcast %cst_36 : f32 to vector<16x64xf32>
    %125 = arith.mulf %124, %123 : vector<16x64xf32>
    %126 = math.tanh %125 : vector<16x64xf32>
    %cst_37 = arith.constant 1.000000e+00 : f32
    %127 = vector.broadcast %cst_37 : f32 to vector<16x64xf32>
    %128 = arith.addf %127, %126 : vector<16x64xf32>
    %cst_38 = arith.constant 5.000000e-01 : f32
    %129 = vector.broadcast %cst_38 : f32 to vector<16x64xf32>
    %130 = arith.mulf %129, %128 : vector<16x64xf32>
    %131 = arith.mulf %118, %130 : vector<16x64xf32>
    %cst_39 = arith.constant dense<0.000000e+00> : vector<16x32xf32>
    %132 = tpu.matmul %131, %35, %cst_39 {dimension_numbers = #tpu.dot_dimension_numbers<[1], [0], [0], [1], [0, 0, 1, 1], [], []>} : vector<16x64xf32>, vector<64x32xf32>, vector<16x32xf32> -> vector<16x32xf32>
    %133 = vector.broadcast %41 : vector<1x32xf32> to vector<16x32xf32>
    %134 = arith.addf %132, %133 : vector<16x32xf32>
    %135 = arith.addf %134, %115 : vector<16x32xf32>
    %cst_40 = arith.constant dense<0.000000e+00> : vector<16xf32>
    %136 = vector.multi_reduction <add>, %135, %cst_40 [1] : vector<16x32xf32> to vector<16xf32>
    %137 = vector.shape_cast %136 : vector<16xf32> to vector<16x1xf32>
    %cst_41 = arith.constant 3.200000e+01 : f32
    %138 = vector.broadcast %cst_41 : f32 to vector<16x1xf32>
    %139 = arith.divf %137, %138 : vector<16x1xf32>
    %140 = vector.broadcast %139 : vector<16x1xf32> to vector<16x32xf32>
    %141 = arith.subf %135, %140 : vector<16x32xf32>
    %142 = arith.mulf %141, %141 : vector<16x32xf32>
    %cst_42 = arith.constant dense<0.000000e+00> : vector<16xf32>
    %143 = vector.multi_reduction <add>, %142, %cst_42 [1] : vector<16x32xf32> to vector<16xf32>
    %144 = vector.shape_cast %143 : vector<16xf32> to vector<16x1xf32>
    %cst_43 = arith.constant 3.200000e+01 : f32
    %145 = vector.broadcast %cst_43 : f32 to vector<16x1xf32>
    %146 = arith.divf %144, %145 : vector<16x1xf32>
    %147 = vector.broadcast %139 : vector<16x1xf32> to vector<16x32xf32>
    %148 = arith.subf %135, %147 : vector<16x32xf32>
    %cst_44 = arith.constant 9.99999996E-13 : f32
    %149 = vector.broadcast %cst_44 : f32 to vector<16x1xf32>
    %150 = arith.addf %146, %149 : vector<16x1xf32>
    %151 = math.rsqrt %150 : vector<16x1xf32>
    %152 = vector.broadcast %151 : vector<16x1xf32> to vector<16x32xf32>
    %153 = arith.mulf %148, %152 : vector<16x32xf32>
    %154 = vector.broadcast %42 : vector<1x32xf32> to vector<16x32xf32>
    %155 = arith.mulf %153, %154 : vector<16x32xf32>
    %156 = vector.broadcast %43 : vector<1x32xf32> to vector<16x32xf32>
    %157 = arith.addf %155, %156 : vector<16x32xf32>
    %c1 = arith.constant 1 : index
    %c0_45 = arith.constant 0 : index
    %c0_46 = arith.constant 0 : index
    %158 = vector.load %arg3[%c1, %c0_45, %c0_46] : memref<2x32x192xf32, #tpu.memory_space<vmem>>, vector<1x32x192xf32>
    %159 = vector.shape_cast %158 : vector<1x32x192xf32> to vector<32x192xf32>
    %c1_47 = arith.constant 1 : index
    %c0_48 = arith.constant 0 : index
    %c0_49 = arith.constant 0 : index
    %160 = vector.load %arg5[%c1_47, %c0_48, %c0_49] : memref<2x8x128xf32, #tpu.memory_space<vmem>>, vector<1x8x128xf32>
    %161 = vector.shape_cast %160 : vector<1x8x128xf32> to vector<8x128xf32>
    %162 = vector.extract_strided_slice %159 {offsets = [0, 0], sizes = [32, 96], strides = [1, 1]} : vector<32x192xf32> to vector<32x96xf32>
    %163 = vector.extract_strided_slice %159 {offsets = [0, 96], sizes = [32, 32], strides = [1, 1]} : vector<32x192xf32> to vector<32x32xf32>
    %164 = vector.extract_strided_slice %159 {offsets = [0, 128], sizes = [32, 64], strides = [1, 1]} : vector<32x192xf32> to vector<32x64xf32>
    %c1_50 = arith.constant 1 : index
    %c0_51 = arith.constant 0 : index
    %c0_52 = arith.constant 0 : index
    %165 = vector.load %arg4[%c1_50, %c0_51, %c0_52] : memref<2x64x32xf32, #tpu.memory_space<vmem>>, vector<1x64x32xf32>
    %166 = vector.shape_cast %165 : vector<1x64x32xf32> to vector<64x32xf32>
    %167 = vector.extract_strided_slice %161 {offsets = [0, 0], sizes = [1, 96], strides = [1, 1]} : vector<8x128xf32> to vector<1x96xf32>
    %168 = vector.extract_strided_slice %161 {offsets = [1, 0], sizes = [1, 32], strides = [1, 1]} : vector<8x128xf32> to vector<1x32xf32>
    %169 = vector.extract_strided_slice %161 {offsets = [2, 0], sizes = [1, 32], strides = [1, 1]} : vector<8x128xf32> to vector<1x32xf32>
    %170 = vector.extract_strided_slice %161 {offsets = [3, 0], sizes = [1, 32], strides = [1, 1]} : vector<8x128xf32> to vector<1x32xf32>
    %171 = vector.extract_strided_slice %161 {offsets = [4, 0], sizes = [1, 64], strides = [1, 1]} : vector<8x128xf32> to vector<1x64xf32>
    %172 = vector.extract_strided_slice %161 {offsets = [5, 0], sizes = [1, 32], strides = [1, 1]} : vector<8x128xf32> to vector<1x32xf32>
    %173 = vector.extract_strided_slice %161 {offsets = [6, 0], sizes = [1, 32], strides = [1, 1]} : vector<8x128xf32> to vector<1x32xf32>
    %174 = vector.extract_strided_slice %161 {offsets = [7, 0], sizes = [1, 32], strides = [1, 1]} : vector<8x128xf32> to vector<1x32xf32>
    %cst_53 = arith.constant dense<0.000000e+00> : vector<16x96xf32>
    %175 = tpu.matmul %157, %162, %cst_53 {dimension_numbers = #tpu.dot_dimension_numbers<[1], [0], [0], [1], [0, 0, 1, 1], [], []>} : vector<16x32xf32>, vector<32x96xf32>, vector<16x96xf32> -> vector<16x96xf32>
    %176 = vector.broadcast %167 : vector<1x96xf32> to vector<16x96xf32>
    %177 = arith.addf %175, %176 : vector<16x96xf32>
    %178 = vector.extract_strided_slice %177 {offsets = [0, 0], sizes = [16, 16], strides = [1, 1]} : vector<16x96xf32> to vector<16x16xf32>
    %179 = vector.shape_cast %178 : vector<16x16xf32> to vector<2x8x16xf32>
    %180 = vector.extract_strided_slice %177 {offsets = [0, 32], sizes = [16, 16], strides = [1, 1]} : vector<16x96xf32> to vector<16x16xf32>
    %181 = vector.shape_cast %180 : vector<16x16xf32> to vector<2x8x16xf32>
    %182 = vector.extract_strided_slice %177 {offsets = [0, 64], sizes = [16, 16], strides = [1, 1]} : vector<16x96xf32> to vector<16x16xf32>
    %183 = vector.shape_cast %182 : vector<16x16xf32> to vector<2x8x16xf32>
    "tpu.trace_start"() <{level = 10 : i32, message = "bqd,bkd->bqk"}> : () -> ()
    %cst_54 = arith.constant dense<0.000000e+00> : vector<2x8x8xf32>
    %184 = tpu.matmul %179, %181, %cst_54 {dimension_numbers = #tpu.dot_dimension_numbers<[2], [2], [1], [1], [0, 0, 0, 1, 1, 1], [0], [0]>} : vector<2x8x16xf32>, vector<2x8x16xf32>, vector<2x8x8xf32> -> vector<2x8x8xf32>
    "tpu.trace_stop"() : () -> ()
    %185 = vector.broadcast %26 : vector<2x1x8xf32> to vector<2x8x8xf32>
    %186 = arith.addf %184, %185 : vector<2x8x8xf32>
    %cst_55 = arith.constant dense<0xFF800000> : vector<2x8xf32>
    %187 = vector.multi_reduction <maximumf>, %186, %cst_55 [2] : vector<2x8x8xf32> to vector<2x8xf32>
    %188 = vector.shape_cast %187 : vector<2x8xf32> to vector<2x8x1xf32>
    %189 = vector.broadcast %188 : vector<2x8x1xf32> to vector<2x8x8xf32>
    %190 = arith.subf %186, %189 : vector<2x8x8xf32>
    %191 = math.exp %190 : vector<2x8x8xf32>
    %cst_56 = arith.constant dense<0.000000e+00> : vector<2x8xf32>
    %192 = vector.multi_reduction <add>, %191, %cst_56 [2] : vector<2x8x8xf32> to vector<2x8xf32>
    %193 = vector.shape_cast %192 : vector<2x8xf32> to vector<2x8x1xf32>
    %194 = tpu.reciprocal %193 {approx = true} : vector<2x8x1xf32> -> vector<2x8x1xf32>
    %195 = vector.broadcast %194 : vector<2x8x1xf32> to vector<2x8x8xf32>
    %196 = arith.mulf %191, %195 : vector<2x8x8xf32>
    "tpu.trace_start"() <{level = 10 : i32, message = "bqk,bkd->bqd"}> : () -> ()
    %cst_57 = arith.constant dense<0.000000e+00> : vector<2x8x16xf32>
    %197 = tpu.matmul %196, %183, %cst_57 {dimension_numbers = #tpu.dot_dimension_numbers<[2], [1], [1], [2], [0, 0, 0, 1, 1, 2], [0], [0]>} : vector<2x8x8xf32>, vector<2x8x16xf32>, vector<2x8x16xf32> -> vector<2x8x16xf32>
    "tpu.trace_stop"() : () -> ()
    %198 = vector.shape_cast %197 : vector<2x8x16xf32> to vector<16x16xf32>
    %199 = vector.extract_strided_slice %177 {offsets = [0, 16], sizes = [16, 16], strides = [1, 1]} : vector<16x96xf32> to vector<16x16xf32>
    %200 = vector.shape_cast %199 : vector<16x16xf32> to vector<2x8x16xf32>
    %201 = vector.extract_strided_slice %177 {offsets = [0, 48], sizes = [16, 16], strides = [1, 1]} : vector<16x96xf32> to vector<16x16xf32>
    %202 = vector.shape_cast %201 : vector<16x16xf32> to vector<2x8x16xf32>
    %203 = vector.extract_strided_slice %177 {offsets = [0, 80], sizes = [16, 16], strides = [1, 1]} : vector<16x96xf32> to vector<16x16xf32>
    %204 = vector.shape_cast %203 : vector<16x16xf32> to vector<2x8x16xf32>
    "tpu.trace_start"() <{level = 10 : i32, message = "bqd,bkd->bqk"}> : () -> ()
    %cst_58 = arith.constant dense<0.000000e+00> : vector<2x8x8xf32>
    %205 = tpu.matmul %200, %202, %cst_58 {dimension_numbers = #tpu.dot_dimension_numbers<[2], [2], [1], [1], [0, 0, 0, 1, 1, 1], [0], [0]>} : vector<2x8x16xf32>, vector<2x8x16xf32>, vector<2x8x8xf32> -> vector<2x8x8xf32>
    "tpu.trace_stop"() : () -> ()
    %206 = vector.broadcast %26 : vector<2x1x8xf32> to vector<2x8x8xf32>
    %207 = arith.addf %205, %206 : vector<2x8x8xf32>
    %cst_59 = arith.constant dense<0xFF800000> : vector<2x8xf32>
    %208 = vector.multi_reduction <maximumf>, %207, %cst_59 [2] : vector<2x8x8xf32> to vector<2x8xf32>
    %209 = vector.shape_cast %208 : vector<2x8xf32> to vector<2x8x1xf32>
    %210 = vector.broadcast %209 : vector<2x8x1xf32> to vector<2x8x8xf32>
    %211 = arith.subf %207, %210 : vector<2x8x8xf32>
    %212 = math.exp %211 : vector<2x8x8xf32>
    %cst_60 = arith.constant dense<0.000000e+00> : vector<2x8xf32>
    %213 = vector.multi_reduction <add>, %212, %cst_60 [2] : vector<2x8x8xf32> to vector<2x8xf32>
    %214 = vector.shape_cast %213 : vector<2x8xf32> to vector<2x8x1xf32>
    %215 = tpu.reciprocal %214 {approx = true} : vector<2x8x1xf32> -> vector<2x8x1xf32>
    %216 = vector.broadcast %215 : vector<2x8x1xf32> to vector<2x8x8xf32>
    %217 = arith.mulf %212, %216 : vector<2x8x8xf32>
    "tpu.trace_start"() <{level = 10 : i32, message = "bqk,bkd->bqd"}> : () -> ()
    %cst_61 = arith.constant dense<0.000000e+00> : vector<2x8x16xf32>
    %218 = tpu.matmul %217, %204, %cst_61 {dimension_numbers = #tpu.dot_dimension_numbers<[2], [1], [1], [2], [0, 0, 0, 1, 1, 2], [0], [0]>} : vector<2x8x8xf32>, vector<2x8x16xf32>, vector<2x8x16xf32> -> vector<2x8x16xf32>
    "tpu.trace_stop"() : () -> ()
    %219 = vector.shape_cast %218 : vector<2x8x16xf32> to vector<16x16xf32>
    %220 = tpu.concatenate %198, %219 in 1 : vector<16x16xf32>, vector<16x16xf32> -> vector<16x32xf32>
    %cst_62 = arith.constant dense<0.000000e+00> : vector<16x32xf32>
    %221 = tpu.matmul %220, %163, %cst_62 {dimension_numbers = #tpu.dot_dimension_numbers<[1], [0], [0], [1], [0, 0, 1, 1], [], []>} : vector<16x32xf32>, vector<32x32xf32>, vector<16x32xf32> -> vector<16x32xf32>
    %222 = vector.broadcast %168 : vector<1x32xf32> to vector<16x32xf32>
    %223 = arith.addf %221, %222 : vector<16x32xf32>
    %224 = arith.addf %223, %157 : vector<16x32xf32>
    %cst_63 = arith.constant dense<0.000000e+00> : vector<16xf32>
    %225 = vector.multi_reduction <add>, %224, %cst_63 [1] : vector<16x32xf32> to vector<16xf32>
    %226 = vector.shape_cast %225 : vector<16xf32> to vector<16x1xf32>
    %cst_64 = arith.constant 3.200000e+01 : f32
    %227 = vector.broadcast %cst_64 : f32 to vector<16x1xf32>
    %228 = arith.divf %226, %227 : vector<16x1xf32>
    %229 = vector.broadcast %228 : vector<16x1xf32> to vector<16x32xf32>
    %230 = arith.subf %224, %229 : vector<16x32xf32>
    %231 = arith.mulf %230, %230 : vector<16x32xf32>
    %cst_65 = arith.constant dense<0.000000e+00> : vector<16xf32>
    %232 = vector.multi_reduction <add>, %231, %cst_65 [1] : vector<16x32xf32> to vector<16xf32>
    %233 = vector.shape_cast %232 : vector<16xf32> to vector<16x1xf32>
    %cst_66 = arith.constant 3.200000e+01 : f32
    %234 = vector.broadcast %cst_66 : f32 to vector<16x1xf32>
    %235 = arith.divf %233, %234 : vector<16x1xf32>
    %236 = vector.broadcast %228 : vector<16x1xf32> to vector<16x32xf32>
    %237 = arith.subf %224, %236 : vector<16x32xf32>
    %cst_67 = arith.constant 9.99999996E-13 : f32
    %238 = vector.broadcast %cst_67 : f32 to vector<16x1xf32>
    %239 = arith.addf %235, %238 : vector<16x1xf32>
    %240 = math.rsqrt %239 : vector<16x1xf32>
    %241 = vector.broadcast %240 : vector<16x1xf32> to vector<16x32xf32>
    %242 = arith.mulf %237, %241 : vector<16x32xf32>
    %243 = vector.broadcast %169 : vector<1x32xf32> to vector<16x32xf32>
    %244 = arith.mulf %242, %243 : vector<16x32xf32>
    %245 = vector.broadcast %170 : vector<1x32xf32> to vector<16x32xf32>
    %246 = arith.addf %244, %245 : vector<16x32xf32>
    %cst_68 = arith.constant dense<0.000000e+00> : vector<16x64xf32>
    %247 = tpu.matmul %246, %164, %cst_68 {dimension_numbers = #tpu.dot_dimension_numbers<[1], [0], [0], [1], [0, 0, 1, 1], [], []>} : vector<16x32xf32>, vector<32x64xf32>, vector<16x64xf32> -> vector<16x64xf32>
    %248 = vector.broadcast %171 : vector<1x64xf32> to vector<16x64xf32>
    %249 = arith.addf %247, %248 : vector<16x64xf32>
    %250 = arith.mulf %249, %249 : vector<16x64xf32>
    %251 = arith.mulf %249, %250 : vector<16x64xf32>
    %cst_69 = arith.constant 4.471500e-02 : f32
    %252 = vector.broadcast %cst_69 : f32 to vector<16x64xf32>
    %253 = arith.mulf %252, %251 : vector<16x64xf32>
    %254 = arith.addf %249, %253 : vector<16x64xf32>
    %cst_70 = arith.constant 0.797884583 : f32
    %255 = vector.broadcast %cst_70 : f32 to vector<16x64xf32>
    %256 = arith.mulf %255, %254 : vector<16x64xf32>
    %257 = math.tanh %256 : vector<16x64xf32>
    %cst_71 = arith.constant 1.000000e+00 : f32
    %258 = vector.broadcast %cst_71 : f32 to vector<16x64xf32>
    %259 = arith.addf %258, %257 : vector<16x64xf32>
    %cst_72 = arith.constant 5.000000e-01 : f32
    %260 = vector.broadcast %cst_72 : f32 to vector<16x64xf32>
    %261 = arith.mulf %260, %259 : vector<16x64xf32>
    %262 = arith.mulf %249, %261 : vector<16x64xf32>
    %cst_73 = arith.constant dense<0.000000e+00> : vector<16x32xf32>
    %263 = tpu.matmul %262, %166, %cst_73 {dimension_numbers = #tpu.dot_dimension_numbers<[1], [0], [0], [1], [0, 0, 1, 1], [], []>} : vector<16x64xf32>, vector<64x32xf32>, vector<16x32xf32> -> vector<16x32xf32>
    %264 = vector.broadcast %172 : vector<1x32xf32> to vector<16x32xf32>
    %265 = arith.addf %263, %264 : vector<16x32xf32>
    %266 = arith.addf %265, %246 : vector<16x32xf32>
    %cst_74 = arith.constant dense<0.000000e+00> : vector<16xf32>
    %267 = vector.multi_reduction <add>, %266, %cst_74 [1] : vector<16x32xf32> to vector<16xf32>
    %268 = vector.shape_cast %267 : vector<16xf32> to vector<16x1xf32>
    %cst_75 = arith.constant 3.200000e+01 : f32
    %269 = vector.broadcast %cst_75 : f32 to vector<16x1xf32>
    %270 = arith.divf %268, %269 : vector<16x1xf32>
    %271 = vector.broadcast %270 : vector<16x1xf32> to vector<16x32xf32>
    %272 = arith.subf %266, %271 : vector<16x32xf32>
    %273 = arith.mulf %272, %272 : vector<16x32xf32>
    %cst_76 = arith.constant dense<0.000000e+00> : vector<16xf32>
    %274 = vector.multi_reduction <add>, %273, %cst_76 [1] : vector<16x32xf32> to vector<16xf32>
    %275 = vector.shape_cast %274 : vector<16xf32> to vector<16x1xf32>
    %cst_77 = arith.constant 3.200000e+01 : f32
    %276 = vector.broadcast %cst_77 : f32 to vector<16x1xf32>
    %277 = arith.divf %275, %276 : vector<16x1xf32>
    %278 = vector.broadcast %270 : vector<16x1xf32> to vector<16x32xf32>
    %279 = arith.subf %266, %278 : vector<16x32xf32>
    %cst_78 = arith.constant 9.99999996E-13 : f32
    %280 = vector.broadcast %cst_78 : f32 to vector<16x1xf32>
    %281 = arith.addf %277, %280 : vector<16x1xf32>
    %282 = math.rsqrt %281 : vector<16x1xf32>
    %283 = vector.broadcast %282 : vector<16x1xf32> to vector<16x32xf32>
    %284 = arith.mulf %279, %283 : vector<16x32xf32>
    %285 = vector.broadcast %173 : vector<1x32xf32> to vector<16x32xf32>
    %286 = arith.mulf %284, %285 : vector<16x32xf32>
    %287 = vector.broadcast %174 : vector<1x32xf32> to vector<16x32xf32>
    %288 = arith.addf %286, %287 : vector<16x32xf32>
    %289 = vector.extract_strided_slice %0 {offsets = [0, 0], sizes = [32, 32], strides = [1, 1]} : vector<48x64xf32> to vector<32x32xf32>
    %290 = vector.extract_strided_slice %0 {offsets = [0, 32], sizes = [32, 5], strides = [1, 1]} : vector<48x64xf32> to vector<32x5xf32>
    %291 = vector.extract_strided_slice %0 {offsets = [34, 0], sizes = [1, 32], strides = [1, 1]} : vector<48x64xf32> to vector<1x32xf32>
    %292 = vector.extract_strided_slice %0 {offsets = [35, 0], sizes = [1, 5], strides = [1, 1]} : vector<48x64xf32> to vector<1x5xf32>
    %293 = vector.extract_strided_slice %0 {offsets = [36, 0], sizes = [1, 5], strides = [1, 1]} : vector<48x64xf32> to vector<1x5xf32>
    %294 = vector.extract_strided_slice %0 {offsets = [37, 0], sizes = [1, 5], strides = [1, 1]} : vector<48x64xf32> to vector<1x5xf32>
    %295 = vector.extract_strided_slice %0 {offsets = [38, 0], sizes = [1, 5], strides = [1, 1]} : vector<48x64xf32> to vector<1x5xf32>
    %296 = vector.extract_strided_slice %0 {offsets = [39, 0], sizes = [1, 5], strides = [1, 1]} : vector<48x64xf32> to vector<1x5xf32>
    %297 = vector.extract_strided_slice %0 {offsets = [40, 0], sizes = [5, 5], strides = [1, 1]} : vector<48x64xf32> to vector<5x5xf32>
    %298 = vector.shape_cast %288 : vector<16x32xf32> to vector<2x8x32xf32>
    %299 = vector.extract_strided_slice %298 {offsets = [0, 0, 0], sizes = [2, 1, 32], strides = [1, 1, 1]} : vector<2x8x32xf32> to vector<2x1x32xf32>
    %300 = vector.shape_cast %299 : vector<2x1x32xf32> to vector<2x32xf32>
    %cst_79 = arith.constant dense<0.000000e+00> : vector<2x32xf32>
    %301 = tpu.matmul %300, %289, %cst_79 {dimension_numbers = #tpu.dot_dimension_numbers<[1], [0], [0], [1], [0, 0, 1, 1], [], []>} : vector<2x32xf32>, vector<32x32xf32>, vector<2x32xf32> -> vector<2x32xf32>
    %302 = vector.broadcast %291 : vector<1x32xf32> to vector<2x32xf32>
    %303 = arith.addf %301, %302 : vector<2x32xf32>
    %304 = math.tanh %303 : vector<2x32xf32>
    %cst_80 = arith.constant dense<0.000000e+00> : vector<2x5xf32>
    %305 = tpu.matmul %304, %290, %cst_80 {dimension_numbers = #tpu.dot_dimension_numbers<[1], [0], [0], [1], [0, 0, 1, 1], [], []>} : vector<2x32xf32>, vector<32x5xf32>, vector<2x5xf32> -> vector<2x5xf32>
    %306 = vector.broadcast %292 : vector<1x5xf32> to vector<2x5xf32>
    %307 = arith.addf %305, %306 : vector<2x5xf32>
    %cst_81 = arith.constant 0.000000e+00 : f32
    %308 = vector.broadcast %cst_81 : f32 to vector<2x5xf32>
    %309 = arith.maximumf %307, %308 : vector<2x5xf32>
    %cst_82 = arith.constant dense<0.000000e+00> : vector<5xf32>
    %310 = vector.multi_reduction <add>, %309, %cst_82 [0] : vector<2x5xf32> to vector<5xf32>
    %311 = vector.shape_cast %310 : vector<5xf32> to vector<1x5xf32>
    %cst_83 = arith.constant 2.000000e+00 : f32
    %312 = vector.broadcast %cst_83 : f32 to vector<1x5xf32>
    %313 = arith.divf %311, %312 : vector<1x5xf32>
    %314 = vector.broadcast %313 : vector<1x5xf32> to vector<2x5xf32>
    %315 = arith.subf %309, %314 : vector<2x5xf32>
    %316 = arith.mulf %315, %315 : vector<2x5xf32>
    %cst_84 = arith.constant dense<0.000000e+00> : vector<5xf32>
    %317 = vector.multi_reduction <add>, %316, %cst_84 [0] : vector<2x5xf32> to vector<5xf32>
    %318 = vector.shape_cast %317 : vector<5xf32> to vector<1x5xf32>
    %cst_85 = arith.constant 2.000000e+00 : f32
    %319 = vector.broadcast %cst_85 : f32 to vector<1x5xf32>
    %320 = arith.divf %318, %319 : vector<1x5xf32>
    %321 = vector.broadcast %313 : vector<1x5xf32> to vector<2x5xf32>
    %322 = arith.subf %309, %321 : vector<2x5xf32>
    %cst_86 = arith.constant 9.99999974E-6 : f32
    %323 = vector.broadcast %cst_86 : f32 to vector<1x5xf32>
    %324 = arith.addf %320, %323 : vector<1x5xf32>
    %325 = math.rsqrt %324 : vector<1x5xf32>
    %326 = vector.broadcast %325 : vector<1x5xf32> to vector<2x5xf32>
    %327 = arith.mulf %322, %326 : vector<2x5xf32>
    %328 = vector.broadcast %293 : vector<1x5xf32> to vector<2x5xf32>
    %329 = arith.mulf %327, %328 : vector<2x5xf32>
    %330 = vector.broadcast %294 : vector<1x5xf32> to vector<2x5xf32>
    %331 = arith.addf %329, %330 : vector<2x5xf32>
    %cst_87 = arith.constant 0.000000e+00 : f32
    %332 = vector.broadcast %cst_87 : f32 to vector<2x5xf32>
    %333 = arith.maximumf %331, %332 : vector<2x5xf32>
    %c0_88 = arith.constant 0 : index
    %c0_89 = arith.constant 0 : index
    %334 = vector.load %arg2[%c0_88, %c0_89] : memref<2x1xf32, #tpu.memory_space<vmem>>, vector<2x1xf32>
    %cst_90 = arith.constant 0.000000e+00 : f32
    %335 = vector.broadcast %cst_90 : f32 to vector<2x1xf32>
    %336 = arith.maximumf %334, %335 : vector<2x1xf32>
    %cst_91 = arith.constant dense<0.000000e+00> : vector<2x5xf32>
    %337 = tpu.matmul %333, %297, %cst_91 {dimension_numbers = #tpu.dot_dimension_numbers<[1], [0], [0], [1], [0, 0, 1, 1], [], []>} : vector<2x5xf32>, vector<5x5xf32>, vector<2x5xf32> -> vector<2x5xf32>
    %338 = vector.broadcast %336 : vector<2x1xf32> to vector<2x5xf32>
    %339 = vector.broadcast %295 : vector<1x5xf32> to vector<2x5xf32>
    %340 = arith.mulf %338, %339 : vector<2x5xf32>
    %341 = arith.addf %337, %340 : vector<2x5xf32>
    %342 = vector.broadcast %296 : vector<1x5xf32> to vector<2x5xf32>
    %343 = arith.addf %341, %342 : vector<2x5xf32>
    %c0_92 = arith.constant 0 : index
    %c0_93 = arith.constant 0 : index
    %344 = vector.load %arg7[%c0_92, %c0_93] : memref<2x5xf32, #tpu.memory_space<vmem>>, vector<2x5xf32>
    tpu.vector_store %arg7[%c0_92, %c0_93], %343 {strides = array<i32>} : memref<2x5xf32, #tpu.memory_space<vmem>>, vector<2x5xf32>,
    return
  }
}

</mosaic_0001>

<llo_original>
// kernel: t_forward.1
$region0: #{t_forward.1}
  #allocation0 [shape = 'u32[]', space=smem, size = 0x4, offset = 0x4, fixed_abs, tag = 'smem constant byte address 0x4 - core index']
  #allocation1 [shape = 'u32[144,128]{1,0:T(1,128)}', space=vmem, size = 0x12000, scoped, tag = 'internal scratch']
  %s0 = inlined_call_operand.vmem [shape: f32[16,32], index: 0, kind: input, shape index: {}]
  %s1 = inlined_call_operand.vmem [shape: f32[2,1,8], index: 1, kind: input, shape index: {}]
  %s2 = inlined_call_operand.vmem [shape: f32[2,1], index: 2, kind: input, shape index: {}]
  %s3 = inlined_call_operand.vmem [shape: f32[2,32,192], index: 3, kind: input, shape index: {}]
  %s4 = inlined_call_operand.vmem [shape: f32[2,64,32], index: 4, kind: input, shape index: {}]
  %s5 = inlined_call_operand.vmem [shape: f32[2,8,128], index: 5, kind: input, shape index: {}]
  %s6 = inlined_call_operand.vmem [shape: f32[48,64], index: 6, kind: input, shape index: {}]
  %s7 = inlined_call_operand.hbm [shape: f32[2,5], index: 7, kind: output, shape index: {}]
  %s8 = sld [smem:[#allocation0]]
  $region38: #{t_forward.1} parent=0
    _
  %s10 = ssub.s32 1, %s8
  %s11 = scalar_select 0, %s10, %s8
  $region1: #{t_forward.1} parent=0
    #allocation2 [shape = 'u8[1024]{0}', space=vmem, size = 0x400, scoped, tag = 'output window, operand 0, single buffered']
    #allocation3 [shape = 's32[1]{0}', space=sflag, size = 0x4, scoped, tag = 'scoped memory for t_forward.1']
    %12 = vsyncpa [#allocation3], 0
    // Predicated region
    $region2: #{t_forward.1} parent=1 // pred_check
      _
    $region3: #{t_forward.1} parent=1 // pred_check_branch
      %14 = sbr.rel (0) target = $region5
    $region4: #{t_forward.1} parent=1 // pred_region
      _
    $region5: #{t_forward.1} parent=1 // pred_fallthru
      _
    // Predicated region
    $region6: #{t_forward.1} parent=1 // pred_check
      _
    $region7: #{t_forward.1} parent=1 // pred_check_branch
      %16 = sbr.rel (0) target = $region9
    $region8: #{t_forward.1} parent=1 // pred_region
      _
    $region9: #{t_forward.1} parent=1 // pred_fallthru
      _
    // Predicated region
    $region10: #{t_forward.1} parent=1 // pred_check
      _
    $region11: #{t_forward.1} parent=1 // pred_check_branch
      %18 = sbr.rel (0) target = $region13
    $region12: #{t_forward.1} parent=1 // pred_region
      _
    $region13: #{t_forward.1} parent=1 // pred_fallthru
      _
    // Predicated region
    $region14: #{t_forward.1} parent=1 // pred_check
      _
    $region15: #{t_forward.1} parent=1 // pred_check_branch
      %20 = sbr.rel (0) target = $region17
    $region16: #{t_forward.1} parent=1 // pred_region
      _
    $region17: #{t_forward.1} parent=1 // pred_fallthru
      _
    // Predicated region
    $region18: #{t_forward.1} parent=1 // pred_check
      _
    $region19: #{t_forward.1} parent=1 // pred_check_branch
      %22 = sbr.rel (0) target = $region21
    $region20: #{t_forward.1} parent=1 // pred_region
      _
    $region21: #{t_forward.1} parent=1 // pred_fallthru
      _
    // Predicated region
    $region22: #{t_forward.1} parent=1 // pred_check
      _
    $region23: #{t_forward.1} parent=1 // pred_check_branch
      %24 = sbr.rel (0) target = $region25
    $region24: #{t_forward.1} parent=1 // pred_region
      _
    $region25: #{t_forward.1} parent=1 // pred_fallthru
      _
    // Predicated region
    $region26: #{t_forward.1} parent=1 // pred_check
      _
    $region27: #{t_forward.1} parent=1 // pred_check_branch
      %26 = sbr.rel (0) target = $region29
    $region28: #{t_forward.1} parent=1 // pred_region
      _
    $region29: #{t_forward.1} parent=1 // pred_fallthru
      _
    %v27 = vld [vmem:[%s6] sm:$0xff]
    %v28 = vld [vmem:[%s6 + $0x8] sm:$0xff]
    %v29 = vld [vmem:[%s6 + $0x10] sm:$0xff]
    %v30 = vld [vmem:[%s6 + $0x18] sm:$0xff]
    %v31 = vld [vmem:[%s6 + $0x20] sm:$0xff]
    %v32 = vld [vmem:[%s6 + $0x28] sm:$0xff]
    %v33 = vld [vmem:[%s0] sm:$0xff]
    %v34 = vld [vmem:[%s0 + $0x8] sm:$0xff]
    %vm35 = vcmask 261120
    %v36 = vsel %vm35, %v33, 0.0
    %37 = vadd.xlane.f32.xlu0 %v36
    %v38 = vpop.xlane.xlu0 %37
    %v39 = vsel %vm35, %v34, 0.0
    %40 = vadd.xlane.f32.xlu0 %v39
    %v41 = vpop.xlane.xlu0 %40
    %v42 = vrcp.pop 32.0
    %v43 = vmul.f32 %v38, %v42
    %v44 = vmul.f32 %v41, %v42
    %v45 = vsub.f32 %v33, %v43
    %v46 = vsub.f32 %v34, %v44
    %v47 = vmul.f32 %v45, %v45
    %v48 = vmul.f32 %v46, %v46
    %v49 = vsel %vm35, %v47, 0.0
    %50 = vadd.xlane.f32.xlu0 %v49
    %v51 = vpop.xlane.xlu0 %50
    %v52 = vsel %vm35, %v48, 0.0
    %53 = vadd.xlane.f32.xlu0 %v52
    %v54 = vpop.xlane.xlu0 %53
    %v55 = vmul.f32 %v51, %v42
    %v56 = vmul.f32 %v54, %v42
    %v57 = vadd.f32 %v55, 1e-12
    %v58 = vadd.f32 %v56, 1e-12
    %v59 = vrsqrt.pop %v57
    %v60 = vrsqrt.pop %v58
    %v61 = vmul.f32 %v45, %v59
    %v62 = vmul.f32 %v46, %v60
    %v63 = vlaneseq
    %v64 = vshrl.u32 %v63, 7
    %v65 = vsub.s32 0, %v64
    %v66 = vrot.slane %v31, %v65
    %v67 = vmul.f32 %v61, %v66
    %v68 = vmul.f32 %v62, %v66
    %v69 = vlaneseq
    %v70 = vshrl.u32 %v69, 7
    %v71 = vsub.s32 1, %v70
    %v72 = vrot.slane %v31, %v71
    %v73 = vadd.f32 %v67, %v72
    %v74 = vadd.f32 %v68, %v72
    %v75 = vld [vmem:[%s1] sm:$0x1]
    %v76 = vld [vmem:[%s1 + $0x1] sm:$0x1]
    %v77 = vld [vmem:[%s3] sm:$0xff]
    %v78 = vld [vmem:[%s3 + $0x8] sm:$0xff]
    %v79 = vld [vmem:[%s3 + $0x10] sm:$0xff]
    %v80 = vld [vmem:[%s3 + $0x18] sm:$0xff]
    %v81 = vld [vmem:[%s3 + $0x20] sm:$0xff]
    %v82 = vld [vmem:[%s3 + $0x28] sm:$0xff]
    %v83 = vld [vmem:[%s3 + $0x30] sm:$0xff]
    %v84 = vld [vmem:[%s3 + $0x38] sm:$0xff]
    %v85 = vld [vmem:[%s5] sm:$0xff]
    %v86 = vld [vmem:[%s4] sm:$0xff]
    %v87 = vld [vmem:[%s4 + $0x8] sm:$0xff]
    %v88 = vld [vmem:[%s4 + $0x10] sm:$0xff]
    %v89 = vld [vmem:[%s4 + $0x18] sm:$0xff]
    %v90 = vld [vmem:[%s4 + $0x20] sm:$0xff]
    %v91 = vld [vmem:[%s4 + $0x28] sm:$0xff]
    %v92 = vld [vmem:[%s4 + $0x30] sm:$0xff]
    %v93 = vld [vmem:[%s4 + $0x38] sm:$0xff]
    %v94 = vlaneseq
    %v95 = vshrl.u32 %v94, 7
    %v96 = vsub.s32 0, %v95
    %v97 = vrot.slane %v85, %v96
    %v99 = vsel %vm35, %v73, 0
    %v102 = vsel %vm35, %v74, 0
    %104 = vmatprep.subr.mxu0 0.0
    %105 = vmatpush1.msra.mxu0 %v77
    %106 = vmatprep.subr.mxu0 0.0
    %107 = vmatpush1.msra.mxu0 %v79
    %108 = vmatprep.subr.mxu0 0.0
    %109 = vmatpush1.msra.mxu0 %v81
    %110 = vmatprep.subr.mxu0 0.0
    %111 = vmatpush1.msra.mxu0 %v83
    %112 = vmatprep.subr.mxu0 0.0
    %113 = vmatpush1.msra.mxu0 0.0
    %114 = vmatprep.subr.mxu0 0.0
    %115 = vmatpush1.msra.mxu0 0.0
    %116 = vmatprep.subr.mxu0 0.0
    %117 = vmatpush1.msra.mxu0 0.0
    %118 = vmatprep.subr.mxu0 0.0
    %119 = vmatpush1.msra.mxu0 0.0
    %120 = vmatprep.subr.mxu0 0.0
    %121 = vmatpush1.msra.mxu0 0.0
    %122 = vmatprep.subr.mxu0 0.0
    %123 = vmatpush1.msra.mxu0 0.0
    %124 = vmatprep.subr.mxu0 0.0
    %125 = vmatpush1.msra.mxu0 0.0
    %126 = vmatprep.subr.mxu0 0.0
    %127 = vmatpush1.msra.mxu0 0.0
    %128 = vmatprep.subr.mxu0 0.0
    %129 = vmatpush1.msra.mxu0 0.0
    %130 = vmatprep.subr.mxu0 0.0
    %131 = vmatpush1.msra.mxu0 0.0
    %132 = vmatprep.subr.mxu0 0.0
    %133 = vmatpush1.msra.mxu0 0.0
    %134 = vmatprep.subr.mxu0 0.0
    %135 = vmatpush1.msra.mxu0 0.0
    %136 = vmatprep.subr.mxu0 0.0
    %137 = vmatpush1.msra.mxu0 0.0
    %138 = vmatprep.subr.mxu0 0.0
    %139 = vmatpush1.msra.mxu0 0.0
    %140 = vmatprep.subr.mxu0 0.0
    %141 = vmatpush1.msra.mxu0 0.0
    %142 = vmatprep.subr.mxu0 0.0
    %143 = vmatpush1.msra.mxu0 0.0
    %144 = vmatprep.subr.mxu0 0.0
    %145 = vmatpush1.msra.mxu0 0.0
    %146 = vmatprep.subr.mxu0 0.0
    %147 = vmatpush1.msra.mxu0 0.0
    %148 = vmatprep.subr.mxu0 0.0
    %149 = vmatpush1.msra.mxu0 0.0
    %150 = vmatprep.subr.mxu0 0.0
    %151 = vmatpush1.msra.mxu0 0.0
    %152 = vmatprep.subr.mxu0 0.0
    %153 = vmatpush1.msra.mxu0 0.0
    %154 = vmatprep.subr.mxu0 0.0
    %155 = vmatpush1.msra.mxu0 0.0
    %156 = vmatprep.subr.mxu0 0.0
    %157 = vmatpush1.msra.mxu0 0.0
    %158 = vmatprep.subr.mxu0 0.0
    %159 = vmatpush1.msra.mxu0 0.0
    %160 = vmatprep.subr.mxu0 0.0
    %161 = vmatpush1.msra.mxu0 0.0
    %162 = vmatprep.subr.mxu0 0.0
    %163 = vmatpush1.msra.mxu0 0.0
    %164 = vmatprep.subr.mxu0 0.0
    %165 = vmatpush1.msra.mxu0 0.0
    %166 = vmatprep.subr.mxu0 0.0
    %167 = vmatpush1.msra.mxu0 0.0
    %168 = vmatprep.mubr.f32.mxu0 0.0
    %169 = vmatmul.mubr.f32.gmra.mrb[0].mxu0 %v99
    %v170 = vpop.f32.mrb[0].mxu0
    %v171 = vadd.f32 %v97, %v170
    %v172 = vpop.f32.mrb[0].mxu0
    %173 = vmatprep.mubr.f32.mxu0 0.0
    %174 = vmatmul.mubr.f32.gmra.mrb[0].mxu0 %v102
    %v175 = vpop.f32.mrb[0].mxu0
    %v176 = vadd.f32 %v97, %v175
    %v177 = vpop.f32.mrb[0].mxu0
    %178 = vdwg.mxu0
    %v181 = vlaneseq
    %v182 = vshrl.u32 %v181, 7
    %v183 = vsub.s32 0, %v182
    %v184 = vrot.slane %v75, %v183
    %v185 = vlaneseq
    %v186 = vshrl.u32 %v185, 7
    %v187 = vsub.s32 0, %v186
    %v188 = vrot.slane %v76, %v187
    %192 = vrot.lane.b32.xlu0 %v171, 96
    %v193 = vpop.permute.xlu0 %192
    %vm194 = vcmask 130048
    %v195 = vsel %vm194, %v171, 0
    %v197 = vsel %vm194, %v193, 0
    %199 = vmatprep.subr.mxu0 0.0
    %200 = vmatpush1.xpose.msra.mxu0 %v197
    %201 = vmatprep.subr.mxu0 0.0
    %202 = vmatpush1.xpose.msra.mxu0 0.0
    %203 = vmatprep.subr.mxu0 0.0
    %204 = vmatpush1.xpose.msra.mxu0 0.0
    %205 = vmatprep.subr.mxu0 0.0
    %206 = vmatpush1.xpose.msra.mxu0 0.0
    %207 = vmatprep.subr.mxu0 0.0
    %208 = vmatpush1.xpose.msra.mxu0 0.0
    %209 = vmatprep.subr.mxu0 0.0
    %210 = vmatpush1.xpose.msra.mxu0 0.0
    %211 = vmatprep.subr.mxu0 0.0
    %212 = vmatpush1.xpose.msra.mxu0 0.0
    %213 = vmatprep.subr.mxu0 0.0
    %214 = vmatpush1.xpose.msra.mxu0 0.0
    %215 = vmatprep.subr.mxu0 0.0
    %216 = vmatpush1.xpose.msra.mxu0 0.0
    %217 = vmatprep.subr.mxu0 0.0
    %218 = vmatpush1.xpose.msra.mxu0 0.0
    %219 = vmatprep.subr.mxu0 0.0
    %220 = vmatpush1.xpose.msra.mxu0 0.0
    %221 = vmatprep.subr.mxu0 0.0
    %222 = vmatpush1.xpose.msra.mxu0 0.0
    %223 = vmatprep.subr.mxu0 0.0
    %224 = vmatpush1.xpose.msra.mxu0 0.0
    %225 = vmatprep.subr.mxu0 0.0
    %226 = vmatpush1.xpose.msra.mxu0 0.0
    %227 = vmatprep.subr.mxu0 0.0
    %228 = vmatpush1.xpose.msra.mxu0 0.0
    %229 = vmatprep.subr.mxu0 0.0
    %230 = vmatpush1.xpose.msra.mxu0 0.0
    %231 = vmatprep.subr.mxu0 0.0
    %232 = vmatpush1.xpose.msra.mxu0 0.0
    %233 = vmatprep.subr.mxu0 0.0
    %234 = vmatpush1.xpose.msra.mxu0 0.0
    %235 = vmatprep.subr.mxu0 0.0
    %236 = vmatpush1.xpose.msra.mxu0 0.0
    %237 = vmatprep.subr.mxu0 0.0
    %238 = vmatpush1.xpose.msra.mxu0 0.0
    %239 = vmatprep.subr.mxu0 0.0
    %240 = vmatpush1.xpose.msra.mxu0 0.0
    %241 = vmatprep.subr.mxu0 0.0
    %242 = vmatpush1.xpose.msra.mxu0 0.0
    %243 = vmatprep.subr.mxu0 0.0
    %244 = vmatpush1.xpose.msra.mxu0 0.0
    %245 = vmatprep.subr.mxu0 0.0
    %246 = vmatpush1.xpose.msra.mxu0 0.0
    %247 = vmatprep.subr.mxu0 0.0
    %248 = vmatpush1.xpose.msra.mxu0 0.0
    %249 = vmatprep.subr.mxu0 0.0
    %250 = vmatpush1.xpose.msra.mxu0 0.0
    %251 = vmatprep.subr.mxu0 0.0
    %252 = vmatpush1.xpose.msra.mxu0 0.0
    %253 = vmatprep.subr.mxu0 0.0
    %254 = vmatpush1.xpose.msra.mxu0 0.0
    %255 = vmatprep.subr.mxu0 0.0
    %256 = vmatpush1.xpose.msra.mxu0 0.0
    %257 = vmatprep.subr.mxu0 0.0
    %258 = vmatpush1.xpose.msra.mxu0 0.0
    %259 = vmatprep.subr.mxu0 0.0
    %260 = vmatpush1.xpose.msra.mxu0 0.0
    %261 = vmatprep.subr.mxu0 0.0
    %262 = vmatpush1.xpose.msra.mxu0 0.0
    %263 = vmatprep.mubr.f32.mxu0 0.0
    %264 = vmatmul.mubr.f32.gmra.mrb[0].mxu0 %v195
    %v265 = vpop.f32.mrb[0].mxu0
    %v266 = vadd.f32 %v184, %v265
    %v267 = vpop.f32.mrb[0].mxu0
    %268 = vdwg.mxu0
    %270 = vrot.lane.b32.xlu0 %v176, 96
    %v271 = vpop.permute.xlu0 %270
    %v272 = vsel %vm194, %v176, 0
    %v274 = vsel %vm194, %v271, 0
    %276 = vmatprep.subr.mxu0 0.0
    %277 = vmatpush1.xpose.msra.mxu0 %v274
    %278 = vmatprep.subr.mxu0 0.0
    %279 = vmatpush1.xpose.msra.mxu0 0.0
    %280 = vmatprep.subr.mxu0 0.0
    %281 = vmatpush1.xpose.msra.mxu0 0.0
    %282 = vmatprep.subr.mxu0 0.0
    %283 = vmatpush1.xpose.msra.mxu0 0.0
    %284 = vmatprep.subr.mxu0 0.0
    %285 = vmatpush1.xpose.msra.mxu0 0.0
    %286 = vmatprep.subr.mxu0 0.0
    %287 = vmatpush1.xpose.msra.mxu0 0.0
    %288 = vmatprep.subr.mxu0 0.0
    %289 = vmatpush1.xpose.msra.mxu0 0.0
    %290 = vmatprep.subr.mxu0 0.0
    %291 = vmatpush1.xpose.msra.mxu0 0.0
    %292 = vmatprep.subr.mxu0 0.0
    %293 = vmatpush1.xpose.msra.mxu0 0.0
    %294 = vmatprep.subr.mxu0 0.0
    %295 = vmatpush1.xpose.msra.mxu0 0.0
    %296 = vmatprep.subr.mxu0 0.0
    %297 = vmatpush1.xpose.msra.mxu0 0.0
    %298 = vmatprep.subr.mxu0 0.0
    %299 = vmatpush1.xpose.msra.mxu0 0.0
    %300 = vmatprep.subr.mxu0 0.0
    %301 = vmatpush1.xpose.msra.mxu0 0.0
    %302 = vmatprep.subr.mxu0 0.0
    %303 = vmatpush1.xpose.msra.mxu0 0.0
    %304 = vmatprep.subr.mxu0 0.0
    %305 = vmatpush1.xpose.msra.mxu0 0.0
    %306 = vmatprep.subr.mxu0 0.0
    %307 = vmatpush1.xpose.msra.mxu0 0.0
    %308 = vmatprep.subr.mxu0 0.0
    %309 = vmatpush1.xpose.msra.mxu0 0.0
    %310 = vmatprep.subr.mxu0 0.0
    %311 = vmatpush1.xpose.msra.mxu0 0.0
    %312 = vmatprep.subr.mxu0 0.0
    %313 = vmatpush1.xpose.msra.mxu0 0.0
    %314 = vmatprep.subr.mxu0 0.0
    %315 = vmatpush1.xpose.msra.mxu0 0.0
    %316 = vmatprep.subr.mxu0 0.0
    %317 = vmatpush1.xpose.msra.mxu0 0.0
    %318 = vmatprep.subr.mxu0 0.0
    %319 = vmatpush1.xpose.msra.mxu0 0.0
    %320 = vmatprep.subr.mxu0 0.0
    %321 = vmatpush1.xpose.msra.mxu0 0.0
    %322 = vmatprep.subr.mxu0 0.0
    %323 = vmatpush1.xpose.msra.mxu0 0.0
    %324 = vmatprep.subr.mxu0 0.0
    %325 = vmatpush1.xpose.msra.mxu0 0.0
    %326 = vmatprep.subr.mxu0 0.0
    %327 = vmatpush1.xpose.msra.mxu0 0.0
    %328 = vmatprep.subr.mxu0 0.0
    %329 = vmatpush1.xpose.msra.mxu0 0.0
    %330 = vmatprep.subr.mxu0 0.0
    %331 = vmatpush1.xpose.msra.mxu0 0.0
    %332 = vmatprep.subr.mxu0 0.0
    %333 = vmatpush1.xpose.msra.mxu0 0.0
    %334 = vmatprep.subr.mxu0 0.0
    %335 = vmatpush1.xpose.msra.mxu0 0.0
    %336 = vmatprep.subr.mxu0 0.0
    %337 = vmatpush1.xpose.msra.mxu0 0.0
    %338 = vmatprep.subr.mxu0 0.0
    %339 = vmatpush1.xpose.msra.mxu0 0.0
    %340 = vmatprep.mubr.f32.mxu0 0.0
    %341 = vmatmul.mubr.f32.gmra.mrb[0].mxu0 %v272
    %v342 = vpop.f32.mrb[0].mxu0
    %v343 = vadd.f32 %v188, %v342
    %v344 = vpop.f32.mrb[0].mxu0
    %345 = vdwg.mxu0
    %vm346 = vcmask 64512
    %v347 = vsel %vm346, %v266, -inf
    %348 = vmax.xlane.f32.xlu0 %v347
    %v349 = vpop.xlane.xlu0 %348
    %v350 = vsel %vm346, %v343, -inf
    %351 = vmax.xlane.f32.xlu0 %v350
    %v352 = vpop.xlane.xlu0 %351
    %v353 = vsub.f32 %v266, %v349
    %v354 = vsub.f32 %v343, %v352
    %v355 = vmul.f32 %v353, 1.442695
    %v356 = vpow.pop %v355
    %v357 = vmul.f32 %v354, 1.442695
    %v358 = vpow.pop %v357
    %v359 = vsel %vm346, %v356, 0.0
    %360 = vadd.xlane.f32.xlu0 %v359
    %v361 = vpop.xlane.xlu0 %360
    %v362 = vsel %vm346, %v358, 0.0
    %363 = vadd.xlane.f32.xlu0 %v362
    %v364 = vpop.xlane.xlu0 %363
    %v365 = vrcp.pop %v361
    %v366 = vrcp.pop %v364
    %v367 = vmul.f32 %v356, %v365
    %v368 = vmul.f32 %v358, %v366
    %369 = vrot.lane.b32.xlu0 %v171, 64
    %v370 = vpop.permute.xlu0 %369
    %v373 = vsel %vm346, %v367, 0
    %375 = vmatprep.subr.mxu0 0.0
    %376 = vmatpush1.msra.mxu0 %v370
    %377 = vmatprep.subr.mxu0 0.0
    %378 = vmatpush1.msra.mxu0 0.0
    %379 = vmatprep.subr.mxu0 0.0
    %380 = vmatpush1.msra.mxu0 0.0
    %381 = vmatprep.subr.mxu0 0.0
    %382 = vmatpush1.msra.mxu0 0.0
    %383 = vmatprep.subr.mxu0 0.0
    %384 = vmatpush1.msra.mxu0 0.0
    %385 = vmatprep.subr.mxu0 0.0
    %386 = vmatpush1.msra.mxu0 0.0
    %387 = vmatprep.subr.mxu0 0.0
    %388 = vmatpush1.msra.mxu0 0.0
    %389 = vmatprep.subr.mxu0 0.0
    %390 = vmatpush1.msra.mxu0 0.0
    %391 = vmatprep.subr.mxu0 0.0
    %392 = vmatpush1.msra.mxu0 0.0
    %393 = vmatprep.subr.mxu0 0.0
    %394 = vmatpush1.msra.mxu0 0.0
    %395 = vmatprep.subr.mxu0 0.0
    %396 = vmatpush1.msra.mxu0 0.0
    %397 = vmatprep.subr.mxu0 0.0
    %398 = vmatpush1.msra.mxu0 0.0
    %399 = vmatprep.subr.mxu0 0.0
    %400 = vmatpush1.msra.mxu0 0.0
    %401 = vmatprep.subr.mxu0 0.0
    %402 = vmatpush1.msra.mxu0 0.0
    %403 = vmatprep.subr.mxu0 0.0
    %404 = vmatpush1.msra.mxu0 0.0
    %405 = vmatprep.subr.mxu0 0.0
    %406 = vmatpush1.msra.mxu0 0.0
    %407 = vmatprep.subr.mxu0 0.0
    %408 = vmatpush1.msra.mxu0 0.0
    %409 = vmatprep.subr.mxu0 0.0
    %410 = vmatpush1.msra.mxu0 0.0
    %411 = vmatprep.subr.mxu0 0.0
    %412 = vmatpush1.msra.mxu0 0.0
    %413 = vmatprep.subr.mxu0 0.0
    %414 = vmatpush1.msra.mxu0 0.0
    %415 = vmatprep.subr.mxu0 0.0
    %416 = vmatpush1.msra.mxu0 0.0
    %417 = vmatprep.subr.mxu0 0.0
    %418 = vmatpush1.msra.mxu0 0.0
    %419 = vmatprep.subr.mxu0 0.0
    %420 = vmatpush1.msra.mxu0 0.0
    %421 = vmatprep.subr.mxu0 0.0
    %422 = vmatpush1.msra.mxu0 0.0
    %423 = vmatprep.subr.mxu0 0.0
    %424 = vmatpush1.msra.mxu0 0.0
    %425 = vmatprep.subr.mxu0 0.0
    %426 = vmatpush1.msra.mxu0 0.0
    %427 = vmatprep.subr.mxu0 0.0
    %428 = vmatpush1.msra.mxu0 0.0
    %429 = vmatprep.subr.mxu0 0.0
    %430 = vmatpush1.msra.mxu0 0.0
    %431 = vmatprep.subr.mxu0 0.0
    %432 = vmatpush1.msra.mxu0 0.0
    %433 = vmatprep.subr.mxu0 0.0
    %434 = vmatpush1.msra.mxu0 0.0
    %435 = vmatprep.subr.mxu0 0.0
    %436 = vmatpush1.msra.mxu0 0.0
    %437 = vmatprep.subr.mxu0 0.0
    %438 = vmatpush1.msra.mxu0 0.0
    %439 = vmatprep.mubr.f32.mxu0 0.0
    %440 = vmatmul.mubr.f32.gmra.mrb[0].mxu0 %v373
    %v441 = vpop.f32.mrb[0].mxu0
    %v442 = vadd.f32 0.0, %v441
    %v443 = vpop.f32.mrb[0].mxu0
    %444 = vdwg.mxu0
    %445 = vrot.lane.b32.xlu0 %v176, 64
    %v446 = vpop.permute.xlu0 %445
    %v449 = vsel %vm346, %v368, 0
    %451 = vmatprep.subr.mxu0 0.0
    %452 = vmatpush1.msra.mxu0 %v446
    %453 = vmatprep.subr.mxu0 0.0
    %454 = vmatpush1.msra.mxu0 0.0
    %455 = vmatprep.subr.mxu0 0.0
    %456 = vmatpush1.msra.mxu0 0.0
    %457 = vmatprep.subr.mxu0 0.0
    %458 = vmatpush1.msra.mxu0 0.0
    %459 = vmatprep.subr.mxu0 0.0
    %460 = vmatpush1.msra.mxu0 0.0
    %461 = vmatprep.subr.mxu0 0.0
    %462 = vmatpush1.msra.mxu0 0.0
    %463 = vmatprep.subr.mxu0 0.0
    %464 = vmatpush1.msra.mxu0 0.0
    %465 = vmatprep.subr.mxu0 0.0
    %466 = vmatpush1.msra.mxu0 0.0
    %467 = vmatprep.subr.mxu0 0.0
    %468 = vmatpush1.msra.mxu0 0.0
    %469 = vmatprep.subr.mxu0 0.0
    %470 = vmatpush1.msra.mxu0 0.0
    %471 = vmatprep.subr.mxu0 0.0
    %472 = vmatpush1.msra.mxu0 0.0
    %473 = vmatprep.subr.mxu0 0.0
    %474 = vmatpush1.msra.mxu0 0.0
    %475 = vmatprep.subr.mxu0 0.0
    %476 = vmatpush1.msra.mxu0 0.0
    %477 = vmatprep.subr.mxu0 0.0
    %478 = vmatpush1.msra.mxu0 0.0
    %479 = vmatprep.subr.mxu0 0.0
    %480 = vmatpush1.msra.mxu0 0.0
    %481 = vmatprep.subr.mxu0 0.0
    %482 = vmatpush1.msra.mxu0 0.0
    %483 = vmatprep.subr.mxu0 0.0
    %484 = vmatpush1.msra.mxu0 0.0
    %485 = vmatprep.subr.mxu0 0.0
    %486 = vmatpush1.msra.mxu0 0.0
    %487 = vmatprep.subr.mxu0 0.0
    %488 = vmatpush1.msra.mxu0 0.0
    %489 = vmatprep.subr.mxu0 0.0
    %490 = vmatpush1.msra.mxu0 0.0
    %491 = vmatprep.subr.mxu0 0.0
    %492 = vmatpush1.msra.mxu0 0.0
    %493 = vmatprep.subr.mxu0 0.0
    %494 = vmatpush1.msra.mxu0 0.0
    %495 = vmatprep.subr.mxu0 0.0
    %496 = vmatpush1.msra.mxu0 0.0
    %497 = vmatprep.subr.mxu0 0.0
    %498 = vmatpush1.msra.mxu0 0.0
    %499 = vmatprep.subr.mxu0 0.0
    %500 = vmatpush1.msra.mxu0 0.0
    %501 = vmatprep.subr.mxu0 0.0
    %502 = vmatpush1.msra.mxu0 0.0
    %503 = vmatprep.subr.mxu0 0.0
    %504 = vmatpush1.msra.mxu0 0.0
    %505 = vmatprep.subr.mxu0 0.0
    %506 = vmatpush1.msra.mxu0 0.0
    %507 = vmatprep.subr.mxu0 0.0
    %508 = vmatpush1.msra.mxu0 0.0
    %509 = vmatprep.subr.mxu0 0.0
    %510 = vmatpush1.msra.mxu0 0.0
    %511 = vmatprep.subr.mxu0 0.0
    %512 = vmatpush1.msra.mxu0 0.0
    %513 = vmatprep.subr.mxu0 0.0
    %514 = vmatpush1.msra.mxu0 0.0
    %515 = vmatprep.mubr.f32.mxu0 0.0
    %516 = vmatmul.mubr.f32.gmra.mrb[0].mxu0 %v449
    %v517 = vpop.f32.mrb[0].mxu0
    %v518 = vadd.f32 0.0, %v517
    %v519 = vpop.f32.mrb[0].mxu0
    %520 = vdwg.mxu0
    %521 = vrot.lane.b32.xlu0 %v171, 112
    %v522 = vpop.permute.xlu0 %521
    %523 = vrot.lane.b32.xlu0 %v171, 80
    %v524 = vpop.permute.xlu0 %523
    %v525 = vsel %vm194, %v522, 0
    %v527 = vsel %vm194, %v524, 0
    %529 = vmatprep.subr.mxu0 0.0
    %530 = vmatpush1.xpose.msra.mxu0 %v527
    %531 = vmatprep.subr.mxu0 0.0
    %532 = vmatpush1.xpose.msra.mxu0 0.0
    %533 = vmatprep.subr.mxu0 0.0
    %534 = vmatpush1.xpose.msra.mxu0 0.0
    %535 = vmatprep.subr.mxu0 0.0
    %536 = vmatpush1.xpose.msra.mxu0 0.0
    %537 = vmatprep.subr.mxu0 0.0
    %538 = vmatpush1.xpose.msra.mxu0 0.0
    %539 = vmatprep.subr.mxu0 0.0
    %540 = vmatpush1.xpose.msra.mxu0 0.0
    %541 = vmatprep.subr.mxu0 0.0
    %542 = vmatpush1.xpose.msra.mxu0 0.0
    %543 = vmatprep.subr.mxu0 0.0
    %544 = vmatpush1.xpose.msra.mxu0 0.0
    %545 = vmatprep.subr.mxu0 0.0
    %546 = vmatpush1.xpose.msra.mxu0 0.0
    %547 = vmatprep.subr.mxu0 0.0
    %548 = vmatpush1.xpose.msra.mxu0 0.0
    %549 = vmatprep.subr.mxu0 0.0
    %550 = vmatpush1.xpose.msra.mxu0 0.0
    %551 = vmatprep.subr.mxu0 0.0
    %552 = vmatpush1.xpose.msra.mxu0 0.0
    %553 = vmatprep.subr.mxu0 0.0
    %554 = vmatpush1.xpose.msra.mxu0 0.0
    %555 = vmatprep.subr.mxu0 0.0
    %556 = vmatpush1.xpose.msra.mxu0 0.0
    %557 = vmatprep.subr.mxu0 0.0
    %558 = vmatpush1.xpose.msra.mxu0 0.0
    %559 = vmatprep.subr.mxu0 0.0
    %560 = vmatpush1.xpose.msra.mxu0 0.0
    %561 = vmatprep.subr.mxu0 0.0
    %562 = vmatpush1.xpose.msra.mxu0 0.0
    %563 = vmatprep.subr.mxu0 0.0
    %564 = vmatpush1.xpose.msra.mxu0 0.0
    %565 = vmatprep.subr.mxu0 0.0
    %566 = vmatpush1.xpose.msra.mxu0 0.0
    %567 = vmatprep.subr.mxu0 0.0
    %568 = vmatpush1.xpose.msra.mxu0 0.0
    %569 = vmatprep.subr.mxu0 0.0
    %570 = vmatpush1.xpose.msra.mxu0 0.0
    %571 = vmatprep.subr.mxu0 0.0
    %572 = vmatpush1.xpose.msra.mxu0 0.0
    %573 = vmatprep.subr.mxu0 0.0
    %574 = vmatpush1.xpose.msra.mxu0 0.0
    %575 = vmatprep.subr.mxu0 0.0
    %576 = vmatpush1.xpose.msra.mxu0 0.0
    %577 = vmatprep.subr.mxu0 0.0
    %578 = vmatpush1.xpose.msra.mxu0 0.0
    %579 = vmatprep.subr.mxu0 0.0
    %580 = vmatpush1.xpose.msra.mxu0 0.0
    %581 = vmatprep.subr.mxu0 0.0
    %582 = vmatpush1.xpose.msra.mxu0 0.0
    %583 = vmatprep.subr.mxu0 0.0
    %584 = vmatpush1.xpose.msra.mxu0 0.0
    %585 = vmatprep.subr.mxu0 0.0
    %586 = vmatpush1.xpose.msra.mxu0 0.0
    %587 = vmatprep.subr.mxu0 0.0
    %588 = vmatpush1.xpose.msra.mxu0 0.0
    %589 = vmatprep.subr.mxu0 0.0
    %590 = vmatpush1.xpose.msra.mxu0 0.0
    %591 = vmatprep.subr.mxu0 0.0
    %592 = vmatpush1.xpose.msra.mxu0 0.0
    %593 = vmatprep.mubr.f32.mxu0 0.0
    %594 = vmatmul.mubr.f32.gmra.mrb[0].mxu0 %v525
    %v595 = vpop.f32.mrb[0].mxu0
    %v596 = vadd.f32 %v184, %v595
    %v597 = vpop.f32.mrb[0].mxu0
    %598 = vdwg.mxu0
    %599 = vrot.lane.b32.xlu0 %v176, 112
    %v600 = vpop.permute.xlu0 %599
    %601 = vrot.lane.b32.xlu0 %v176, 80
    %v602 = vpop.permute.xlu0 %601
    %v603 = vsel %vm194, %v600, 0
    %v605 = vsel %vm194, %v602, 0
    %607 = vmatprep.subr.mxu0 0.0
    %608 = vmatpush1.xpose.msra.mxu0 %v605
    %609 = vmatprep.subr.mxu0 0.0
    %610 = vmatpush1.xpose.msra.mxu0 0.0
    %611 = vmatprep.subr.mxu0 0.0
    %612 = vmatpush1.xpose.msra.mxu0 0.0
    %613 = vmatprep.subr.mxu0 0.0
    %614 = vmatpush1.xpose.msra.mxu0 0.0
    %615 = vmatprep.subr.mxu0 0.0
    %616 = vmatpush1.xpose.msra.mxu0 0.0
    %617 = vmatprep.subr.mxu0 0.0
    %618 = vmatpush1.xpose.msra.mxu0 0.0
    %619 = vmatprep.subr.mxu0 0.0
    %620 = vmatpush1.xpose.msra.mxu0 0.0
    %621 = vmatprep.subr.mxu0 0.0
    %622 = vmatpush1.xpose.msra.mxu0 0.0
    %623 = vmatprep.subr.mxu0 0.0
    %624 = vmatpush1.xpose.msra.mxu0 0.0
    %625 = vmatprep.subr.mxu0 0.0
    %626 = vmatpush1.xpose.msra.mxu0 0.0
    %627 = vmatprep.subr.mxu0 0.0
    %628 = vmatpush1.xpose.msra.mxu0 0.0
    %629 = vmatprep.subr.mxu0 0.0
    %630 = vmatpush1.xpose.msra.mxu0 0.0
    %631 = vmatprep.subr.mxu0 0.0
    %632 = vmatpush1.xpose.msra.mxu0 0.0
    %633 = vmatprep.subr.mxu0 0.0
    %634 = vmatpush1.xpose.msra.mxu0 0.0
    %635 = vmatprep.subr.mxu0 0.0
    %636 = vmatpush1.xpose.msra.mxu0 0.0
    %637 = vmatprep.subr.mxu0 0.0
    %638 = vmatpush1.xpose.msra.mxu0 0.0
    %639 = vmatprep.subr.mxu0 0.0
    %640 = vmatpush1.xpose.msra.mxu0 0.0
    %641 = vmatprep.subr.mxu0 0.0
    %642 = vmatpush1.xpose.msra.mxu0 0.0
    %643 = vmatprep.subr.mxu0 0.0
    %644 = vmatpush1.xpose.msra.mxu0 0.0
    %645 = vmatprep.subr.mxu0 0.0
    %646 = vmatpush1.xpose.msra.mxu0 0.0
    %647 = vmatprep.subr.mxu0 0.0
    %648 = vmatpush1.xpose.msra.mxu0 0.0
    %649 = vmatprep.subr.mxu0 0.0
    %650 = vmatpush1.xpose.msra.mxu0 0.0
    %651 = vmatprep.subr.mxu0 0.0
    %652 = vmatpush1.xpose.msra.mxu0 0.0
    %653 = vmatprep.subr.mxu0 0.0
    %654 = vmatpush1.xpose.msra.mxu0 0.0
    %655 = vmatprep.subr.mxu0 0.0
    %656 = vmatpush1.xpose.msra.mxu0 0.0
    %657 = vmatprep.subr.mxu0 0.0
    %658 = vmatpush1.xpose.msra.mxu0 0.0
    %659 = vmatprep.subr.mxu0 0.0
    %660 = vmatpush1.xpose.msra.mxu0 0.0
    %661 = vmatprep.subr.mxu0 0.0
    %662 = vmatpush1.xpose.msra.mxu0 0.0
    %663 = vmatprep.subr.mxu0 0.0
    %664 = vmatpush1.xpose.msra.mxu0 0.0
    %665 = vmatprep.subr.mxu0 0.0
    %666 = vmatpush1.xpose.msra.mxu0 0.0
    %667 = vmatprep.subr.mxu0 0.0
    %668 = vmatpush1.xpose.msra.mxu0 0.0
    %669 = vmatprep.subr.mxu0 0.0
    %670 = vmatpush1.xpose.msra.mxu0 0.0
    %671 = vmatprep.mubr.f32.mxu0 0.0
    %672 = vmatmul.mubr.f32.gmra.mrb[0].mxu0 %v603
    %v673 = vpop.f32.mrb[0].mxu0
    %v674 = vadd.f32 %v188, %v673
    %v675 = vpop.f32.mrb[0].mxu0
    %676 = vdwg.mxu0
    %v677 = vsel %vm346, %v596, -inf
    %678 = vmax.xlane.f32.xlu0 %v677
    %v679 = vpop.xlane.xlu0 %678
    %v680 = vsel %vm346, %v674, -inf
    %681 = vmax.xlane.f32.xlu0 %v680
    %v682 = vpop.xlane.xlu0 %681
    %v683 = vsub.f32 %v596, %v679
    %v684 = vsub.f32 %v674, %v682
    %v685 = vmul.f32 %v683, 1.442695
    %v686 = vpow.pop %v685
    %v687 = vmul.f32 %v684, 1.442695
    %v688 = vpow.pop %v687
    %v689 = vsel %vm346, %v686, 0.0
    %690 = vadd.xlane.f32.xlu0 %v689
    %v691 = vpop.xlane.xlu0 %690
    %v692 = vsel %vm346, %v688, 0.0
    %693 = vadd.xlane.f32.xlu0 %v692
    %v694 = vpop.xlane.xlu0 %693
    %v695 = vrcp.pop %v691
    %v696 = vrcp.pop %v694
    %v697 = vmul.f32 %v686, %v695
    %v698 = vmul.f32 %v688, %v696
    %699 = vrot.lane.b32.xlu0 %v171, 48
    %v700 = vpop.permute.xlu0 %699
    %v703 = vsel %vm346, %v697, 0
    %705 = vmatprep.subr.mxu0 0.0
    %706 = vmatpush1.msra.mxu0 %v700
    %707 = vmatprep.subr.mxu0 0.0
    %708 = vmatpush1.msra.mxu0 0.0
    %709 = vmatprep.subr.mxu0 0.0
    %710 = vmatpush1.msra.mxu0 0.0
    %711 = vmatprep.subr.mxu0 0.0
    %712 = vmatpush1.msra.mxu0 0.0
    %713 = vmatprep.subr.mxu0 0.0
    %714 = vmatpush1.msra.mxu0 0.0
    %715 = vmatprep.subr.mxu0 0.0
    %716 = vmatpush1.msra.mxu0 0.0
    %717 = vmatprep.subr.mxu0 0.0
    %718 = vmatpush1.msra.mxu0 0.0
    %719 = vmatprep.subr.mxu0 0.0
    %720 = vmatpush1.msra.mxu0 0.0
    %721 = vmatprep.subr.mxu0 0.0
    %722 = vmatpush1.msra.mxu0 0.0
    %723 = vmatprep.subr.mxu0 0.0
    %724 = vmatpush1.msra.mxu0 0.0
    %725 = vmatprep.subr.mxu0 0.0
    %726 = vmatpush1.msra.mxu0 0.0
    %727 = vmatprep.subr.mxu0 0.0
    %728 = vmatpush1.msra.mxu0 0.0
    %729 = vmatprep.subr.mxu0 0.0
    %730 = vmatpush1.msra.mxu0 0.0
    %731 = vmatprep.subr.mxu0 0.0
    %732 = vmatpush1.msra.mxu0 0.0
    %733 = vmatprep.subr.mxu0 0.0
    %734 = vmatpush1.msra.mxu0 0.0
    %735 = vmatprep.subr.mxu0 0.0
    %736 = vmatpush1.msra.mxu0 0.0
    %737 = vmatprep.subr.mxu0 0.0
    %738 = vmatpush1.msra.mxu0 0.0
    %739 = vmatprep.subr.mxu0 0.0
    %740 = vmatpush1.msra.mxu0 0.0
    %741 = vmatprep.subr.mxu0 0.0
    %742 = vmatpush1.msra.mxu0 0.0
    %743 = vmatprep.subr.mxu0 0.0
    %744 = vmatpush1.msra.mxu0 0.0
    %745 = vmatprep.subr.mxu0 0.0
    %746 = vmatpush1.msra.mxu0 0.0
    %747 = vmatprep.subr.mxu0 0.0
    %748 = vmatpush1.msra.mxu0 0.0
    %749 = vmatprep.subr.mxu0 0.0
    %750 = vmatpush1.msra.mxu0 0.0
    %751 = vmatprep.subr.mxu0 0.0
    %752 = vmatpush1.msra.mxu0 0.0
    %753 = vmatprep.subr.mxu0 0.0
    %754 = vmatpush1.msra.mxu0 0.0
    %755 = vmatprep.subr.mxu0 0.0
    %756 = vmatpush1.msra.mxu0 0.0
    %757 = vmatprep.subr.mxu0 0.0
    %758 = vmatpush1.msra.mxu0 0.0
    %759 = vmatprep.subr.mxu0 0.0
    %760 = vmatpush1.msra.mxu0 0.0
    %761 = vmatprep.subr.mxu0 0.0
    %762 = vmatpush1.msra.mxu0 0.0
    %763 = vmatprep.subr.mxu0 0.0
    %764 = vmatpush1.msra.mxu0 0.0
    %765 = vmatprep.subr.mxu0 0.0
    %766 = vmatpush1.msra.mxu0 0.0
    %767 = vmatprep.subr.mxu0 0.0
    %768 = vmatpush1.msra.mxu0 0.0
    %769 = vmatprep.mubr.f32.mxu0 0.0
    %770 = vmatmul.mubr.f32.gmra.mrb[0].mxu0 %v703
    %v771 = vpop.f32.mrb[0].mxu0
    %v772 = vadd.f32 0.0, %v771
    %v773 = vpop.f32.mrb[0].mxu0
    %774 = vdwg.mxu0
    %775 = vrot.lane.b32.xlu0 %v176, 48
    %v776 = vpop.permute.xlu0 %775
    %v779 = vsel %vm346, %v698, 0
    %781 = vmatprep.subr.mxu0 0.0
    %782 = vmatpush1.msra.mxu0 %v776
    %783 = vmatprep.subr.mxu0 0.0
    %784 = vmatpush1.msra.mxu0 0.0
    %785 = vmatprep.subr.mxu0 0.0
    %786 = vmatpush1.msra.mxu0 0.0
    %787 = vmatprep.subr.mxu0 0.0
    %788 = vmatpush1.msra.mxu0 0.0
    %789 = vmatprep.subr.mxu0 0.0
    %790 = vmatpush1.msra.mxu0 0.0
    %791 = vmatprep.subr.mxu0 0.0
    %792 = vmatpush1.msra.mxu0 0.0
    %793 = vmatprep.subr.mxu0 0.0
    %794 = vmatpush1.msra.mxu0 0.0
    %795 = vmatprep.subr.mxu0 0.0
    %796 = vmatpush1.msra.mxu0 0.0
    %797 = vmatprep.subr.mxu0 0.0
    %798 = vmatpush1.msra.mxu0 0.0
    %799 = vmatprep.subr.mxu0 0.0
    %800 = vmatpush1.msra.mxu0 0.0
    %801 = vmatprep.subr.mxu0 0.0
    %802 = vmatpush1.msra.mxu0 0.0
    %803 = vmatprep.subr.mxu0 0.0
    %804 = vmatpush1.msra.mxu0 0.0
    %805 = vmatprep.subr.mxu0 0.0
    %806 = vmatpush1.msra.mxu0 0.0
    %807 = vmatprep.subr.mxu0 0.0
    %808 = vmatpush1.msra.mxu0 0.0
    %809 = vmatprep.subr.mxu0 0.0
    %810 = vmatpush1.msra.mxu0 0.0
    %811 = vmatprep.subr.mxu0 0.0
    %812 = vmatpush1.msra.mxu0 0.0
    %813 = vmatprep.subr.mxu0 0.0
    %814 = vmatpush1.msra.mxu0 0.0
    %815 = vmatprep.subr.mxu0 0.0
    %816 = vmatpush1.msra.mxu0 0.0
    %817 = vmatprep.subr.mxu0 0.0
    %818 = vmatpush1.msra.mxu0 0.0
    %819 = vmatprep.subr.mxu0 0.0
    %820 = vmatpush1.msra.mxu0 0.0
    %821 = vmatprep.subr.mxu0 0.0
    %822 = vmatpush1.msra.mxu0 0.0
    %823 = vmatprep.subr.mxu0 0.0
    %824 = vmatpush1.msra.mxu0 0.0
    %825 = vmatprep.subr.mxu0 0.0
    %826 = vmatpush1.msra.mxu0 0.0
    %827 = vmatprep.subr.mxu0 0.0
    %828 = vmatpush1.msra.mxu0 0.0
    %829 = vmatprep.subr.mxu0 0.0
    %830 = vmatpush1.msra.mxu0 0.0
    %831 = vmatprep.subr.mxu0 0.0
    %832 = vmatpush1.msra.mxu0 0.0
    %833 = vmatprep.subr.mxu0 0.0
    %834 = vmatpush1.msra.mxu0 0.0
    %835 = vmatprep.subr.mxu0 0.0
    %836 = vmatpush1.msra.mxu0 0.0
    %837 = vmatprep.subr.mxu0 0.0
    %838 = vmatpush1.msra.mxu0 0.0
    %839 = vmatprep.subr.mxu0 0.0
    %840 = vmatpush1.msra.mxu0 0.0
    %841 = vmatprep.subr.mxu0 0.0
    %842 = vmatpush1.msra.mxu0 0.0
    %843 = vmatprep.subr.mxu0 0.0
    %844 = vmatpush1.msra.mxu0 0.0
    %845 = vmatprep.mubr.f32.mxu0 0.0
    %846 = vmatmul.mubr.f32.gmra.mrb[0].mxu0 %v779
    %v847 = vpop.f32.mrb[0].mxu0
    %v848 = vadd.f32 0.0, %v847
    %v849 = vpop.f32.mrb[0].mxu0
    %850 = vdwg.mxu0
    %853 = vrot.lane.b32.xlu0 %v772, 16
    %v854 = vpop.permute.xlu0 %853
    %855 = vrot.lane.b32.xlu0 %v848, 16
    %v856 = vpop.permute.xlu0 %855
    %v859 = vsel %vm194, %v442, %v854
    %v860 = vsel %vm194, %v518, %v856
    %v861 = vlaneseq
    %v862 = vshrl.u32 %v861, 7
    %v863 = vsub.s32 1, %v862
    %v864 = vrot.slane %v85, %v863
    %869 = vrot.lane.b32.xlu0 %v77, 32
    %v870 = vpop.permute.xlu0 %869
    %871 = vrot.lane.b32.xlu0 %v79, 32
    %v872 = vpop.permute.xlu0 %871
    %873 = vrot.lane.b32.xlu0 %v81, 32
    %v874 = vpop.permute.xlu0 %873
    %875 = vrot.lane.b32.xlu0 %v83, 32
    %v876 = vpop.permute.xlu0 %875
    %v882 = vsel %vm35, %v859, 0
    %v885 = vsel %vm35, %v860, 0
    %887 = vmatprep.subr.mxu0 0.0
    %888 = vmatpush1.msra.mxu0 %v870
    %889 = vmatprep.subr.mxu0 0.0
    %890 = vmatpush1.msra.mxu0 %v872
    %891 = vmatprep.subr.mxu0 0.0
    %892 = vmatpush1.msra.mxu0 %v874
    %893 = vmatprep.subr.mxu0 0.0
    %894 = vmatpush1.msra.mxu0 %v876
    %895 = vmatprep.subr.mxu0 0.0
    %896 = vmatpush1.msra.mxu0 0.0
    %897 = vmatprep.subr.mxu0 0.0
    %898 = vmatpush1.msra.mxu0 0.0
    %899 = vmatprep.subr.mxu0 0.0
    %900 = vmatpush1.msra.mxu0 0.0
    %901 = vmatprep.subr.mxu0 0.0
    %902 = vmatpush1.msra.mxu0 0.0
    %903 = vmatprep.subr.mxu0 0.0
    %904 = vmatpush1.msra.mxu0 0.0
    %905 = vmatprep.subr.mxu0 0.0
    %906 = vmatpush1.msra.mxu0 0.0
    %907 = vmatprep.subr.mxu0 0.0
    %908 = vmatpush1.msra.mxu0 0.0
    %909 = vmatprep.subr.mxu0 0.0
    %910 = vmatpush1.msra.mxu0 0.0
    %911 = vmatprep.subr.mxu0 0.0
    %912 = vmatpush1.msra.mxu0 0.0
    %913 = vmatprep.subr.mxu0 0.0
    %914 = vmatpush1.msra.mxu0 0.0
    %915 = vmatprep.subr.mxu0 0.0
    %916 = vmatpush1.msra.mxu0 0.0
    %917 = vmatprep.subr.mxu0 0.0
    %918 = vmatpush1.msra.mxu0 0.0
    %919 = vmatprep.subr.mxu0 0.0
    %920 = vmatpush1.msra.mxu0 0.0
    %921 = vmatprep.subr.mxu0 0.0
    %922 = vmatpush1.msra.mxu0 0.0
    %923 = vmatprep.subr.mxu0 0.0
    %924 = vmatpush1.msra.mxu0 0.0
    %925 = vmatprep.subr.mxu0 0.0
    %926 = vmatpush1.msra.mxu0 0.0
    %927 = vmatprep.subr.mxu0 0.0
    %928 = vmatpush1.msra.mxu0 0.0
    %929 = vmatprep.subr.mxu0 0.0
    %930 = vmatpush1.msra.mxu0 0.0
    %931 = vmatprep.subr.mxu0 0.0
    %932 = vmatpush1.msra.mxu0 0.0
    %933 = vmatprep.subr.mxu0 0.0
    %934 = vmatpush1.msra.mxu0 0.0
    %935 = vmatprep.subr.mxu0 0.0
    %936 = vmatpush1.msra.mxu0 0.0
    %937 = vmatprep.subr.mxu0 0.0
    %938 = vmatpush1.msra.mxu0 0.0
    %939 = vmatprep.subr.mxu0 0.0
    %940 = vmatpush1.msra.mxu0 0.0
    %941 = vmatprep.subr.mxu0 0.0
    %942 = vmatpush1.msra.mxu0 0.0
    %943 = vmatprep.subr.mxu0 0.0
    %944 = vmatpush1.msra.mxu0 0.0
    %945 = vmatprep.subr.mxu0 0.0
    %946 = vmatpush1.msra.mxu0 0.0
    %947 = vmatprep.subr.mxu0 0.0
    %948 = vmatpush1.msra.mxu0 0.0
    %949 = vmatprep.subr.mxu0 0.0
    %950 = vmatpush1.msra.mxu0 0.0
    %951 = vmatprep.mubr.f32.mxu0 0.0
    %952 = vmatmul.mubr.f32.gmra.mrb[0].mxu0 %v882
    %v953 = vpop.f32.mrb[0].mxu0
    %v954 = vadd.f32 %v864, %v953
    %v955 = vpop.f32.mrb[0].mxu0
    %956 = vmatprep.mubr.f32.mxu0 0.0
    %957 = vmatmul.mubr.f32.gmra.mrb[0].mxu0 %v885
    %v958 = vpop.f32.mrb[0].mxu0
    %v959 = vadd.f32 %v864, %v958
    %v960 = vpop.f32.mrb[0].mxu0
    %961 = vdwg.mxu0
    %v962 = vadd.f32 %v954, %v73
    %v963 = vadd.f32 %v959, %v74
    %v964 = vsel %vm35, %v962, 0.0
    %965 = vadd.xlane.f32.xlu0 %v964
    %v966 = vpop.xlane.xlu0 %965
    %v967 = vsel %vm35, %v963, 0.0
    %968 = vadd.xlane.f32.xlu0 %v967
    %v969 = vpop.xlane.xlu0 %968
    %v970 = vmul.f32 %v966, %v42
    %v971 = vmul.f32 %v969, %v42
    %v972 = vsub.f32 %v962, %v970
    %v973 = vsub.f32 %v963, %v971
    %v974 = vmul.f32 %v972, %v972
    %v975 = vmul.f32 %v973, %v973
    %v976 = vsel %vm35, %v974, 0.0
    %977 = vadd.xlane.f32.xlu0 %v976
    %v978 = vpop.xlane.xlu0 %977
    %v979 = vsel %vm35, %v975, 0.0
    %980 = vadd.xlane.f32.xlu0 %v979
    %v981 = vpop.xlane.xlu0 %980
    %v982 = vmul.f32 %v978, %v42
    %v983 = vmul.f32 %v981, %v42
    %v984 = vadd.f32 %v982, 1e-12
    %v985 = vadd.f32 %v983, 1e-12
    %v986 = vrsqrt.pop %v984
    %v987 = vrsqrt.pop %v985
    %v988 = vmul.f32 %v972, %v986
    %v989 = vmul.f32 %v973, %v987
    %v990 = vlaneseq
    %v991 = vshrl.u32 %v990, 7
    %v992 = vsub.s32 2, %v991
    %v993 = vrot.slane %v85, %v992
    %v994 = vmul.f32 %v988, %v993
    %v995 = vmul.f32 %v989, %v993
    %v996 = vlaneseq
    %v997 = vshrl.u32 %v996, 7
    %v998 = vsub.s32 3, %v997
    %v999 = vrot.slane %v85, %v998
    %v1000 = vadd.f32 %v994, %v999
    %v1001 = vadd.f32 %v995, %v999
    %v1002 = vlaneseq
    %v1003 = vshrl.u32 %v1002, 7
    %v1004 = vsub.s32 4, %v1003
    %v1005 = vrot.slane %v85, %v1004
    %v1007 = vsel %vm35, %v1000, 0
    %v1010 = vsel %vm35, %v1001, 0
    %1012 = vmatprep.subr.mxu0 0.0
    %1013 = vmatpush1.msra.mxu0 %v78
    %1014 = vmatprep.subr.mxu0 0.0
    %1015 = vmatpush1.msra.mxu0 %v80
    %1016 = vmatprep.subr.mxu0 0.0
    %1017 = vmatpush1.msra.mxu0 %v82
    %1018 = vmatprep.subr.mxu0 0.0
    %1019 = vmatpush1.msra.mxu0 %v84
    %1020 = vmatprep.subr.mxu0 0.0
    %1021 = vmatpush1.msra.mxu0 0.0
    %1022 = vmatprep.subr.mxu0 0.0
    %1023 = vmatpush1.msra.mxu0 0.0
    %1024 = vmatprep.subr.mxu0 0.0
    %1025 = vmatpush1.msra.mxu0 0.0
    %1026 = vmatprep.subr.mxu0 0.0
    %1027 = vmatpush1.msra.mxu0 0.0
    %1028 = vmatprep.subr.mxu0 0.0
    %1029 = vmatpush1.msra.mxu0 0.0
    %1030 = vmatprep.subr.mxu0 0.0
    %1031 = vmatpush1.msra.mxu0 0.0
    %1032 = vmatprep.subr.mxu0 0.0
    %1033 = vmatpush1.msra.mxu0 0.0
    %1034 = vmatprep.subr.mxu0 0.0
    %1035 = vmatpush1.msra.mxu0 0.0
    %1036 = vmatprep.subr.mxu0 0.0
    %1037 = vmatpush1.msra.mxu0 0.0
    %1038 = vmatprep.subr.mxu0 0.0
    %1039 = vmatpush1.msra.mxu0 0.0
    %1040 = vmatprep.subr.mxu0 0.0
    %1041 = vmatpush1.msra.mxu0 0.0
    %1042 = vmatprep.subr.mxu0 0.0
    %1043 = vmatpush1.msra.mxu0 0.0
    %1044 = vmatprep.subr.mxu0 0.0
    %1045 = vmatpush1.msra.mxu0 0.0
    %1046 = vmatprep.subr.mxu0 0.0
    %1047 = vmatpush1.msra.mxu0 0.0
    %1048 = vmatprep.subr.mxu0 0.0
    %1049 = vmatpush1.msra.mxu0 0.0
    %1050 = vmatprep.subr.mxu0 0.0
    %1051 = vmatpush1.msra.mxu0 0.0
    %1052 = vmatprep.subr.mxu0 0.0
    %1053 = vmatpush1.msra.mxu0 0.0
    %1054 = vmatprep.subr.mxu0 0.0
    %1055 = vmatpush1.msra.mxu0 0.0
    %1056 = vmatprep.subr.mxu0 0.0
    %1057 = vmatpush1.msra.mxu0 0.0
    %1058 = vmatprep.subr.mxu0 0.0
    %1059 = vmatpush1.msra.mxu0 0.0
    %1060 = vmatprep.subr.mxu0 0.0
    %1061 = vmatpush1.msra.mxu0 0.0
    %1062 = vmatprep.subr.mxu0 0.0
    %1063 = vmatpush1.msra.mxu0 0.0
    %1064 = vmatprep.subr.mxu0 0.0
    %1065 = vmatpush1.msra.mxu0 0.0
    %1066 = vmatprep.subr.mxu0 0.0
    %1067 = vmatpush1.msra.mxu0 0.0
    %1068 = vmatprep.subr.mxu0 0.0
    %1069 = vmatpush1.msra.mxu0 0.0
    %1070 = vmatprep.subr.mxu0 0.0
    %1071 = vmatpush1.msra.mxu0 0.0
    %1072 = vmatprep.subr.mxu0 0.0
    %1073 = vmatpush1.msra.mxu0 0.0
    %1074 = vmatprep.subr.mxu0 0.0
    %1075 = vmatpush1.msra.mxu0 0.0
    %1076 = vmatprep.mubr.f32.mxu0 0.0
    %1077 = vmatmul.mubr.f32.gmra.mrb[0].mxu0 %v1007
    %v1078 = vpop.f32.mrb[0].mxu0
    %v1079 = vadd.f32 %v1005, %v1078
    %v1080 = vpop.f32.mrb[0].mxu0
    %1081 = vmatprep.mubr.f32.mxu0 0.0
    %1082 = vmatmul.mubr.f32.gmra.mrb[0].mxu0 %v1010
    %v1083 = vpop.f32.mrb[0].mxu0
    %v1084 = vadd.f32 %v1005, %v1083
    %v1085 = vpop.f32.mrb[0].mxu0
    %1086 = vdwg.mxu0
    %v1087 = vmul.f32 %v1079, %v1079
    %v1088 = vmul.f32 %v1084, %v1084
    %v1089 = vmul.f32 %v1079, %v1087
    %v1090 = vmul.f32 %v1084, %v1088
    %v1091 = vmul.f32 %v1089, 0.044715
    %v1092 = vmul.f32 %v1090, 0.044715
    %v1093 = vadd.f32 %v1079, %v1091
    %v1094 = vadd.f32 %v1084, %v1092
    %v1095 = vmul.f32 %v1093, 0.7978846
    %v1096 = vmul.f32 %v1094, 0.7978846
    %v1097 = vtanh.pop %v1095
    %v1098 = vtanh.pop %v1096
    %v1099 = vadd.f32 %v1097, 1.0
    %v1100 = vadd.f32 %v1098, 1.0
    %v1101 = vmul.f32 %v1099, 0.5
    %v1102 = vmul.f32 %v1100, 0.5
    %v1103 = vmul.f32 %v1079, %v1101
    %v1104 = vmul.f32 %v1084, %v1102
    %v1105 = vlaneseq
    %v1106 = vshrl.u32 %v1105, 7
    %v1107 = vsub.s32 5, %v1106
    %v1108 = vrot.slane %v85, %v1107
    %vm1109 = vcmask 523264
    %v1111 = vsel %vm1109, %v1103, 0
    %v1114 = vsel %vm1109, %v1104, 0
    %1116 = vmatprep.subr.mxu0 0.0
    %1117 = vmatpush1.msra.mxu0 %v86
    %1118 = vmatprep.subr.mxu0 0.0
    %1119 = vmatpush1.msra.mxu0 %v87
    %1120 = vmatprep.subr.mxu0 0.0
    %1121 = vmatpush1.msra.mxu0 %v88
    %1122 = vmatprep.subr.mxu0 0.0
    %1123 = vmatpush1.msra.mxu0 %v89
    %1124 = vmatprep.subr.mxu0 0.0
    %1125 = vmatpush1.msra.mxu0 %v90
    %1126 = vmatprep.subr.mxu0 0.0
    %1127 = vmatpush1.msra.mxu0 %v91
    %1128 = vmatprep.subr.mxu0 0.0
    %1129 = vmatpush1.msra.mxu0 %v92
    %1130 = vmatprep.subr.mxu0 0.0
    %1131 = vmatpush1.msra.mxu0 %v93
    %1132 = vmatprep.subr.mxu0 0.0
    %1133 = vmatpush1.msra.mxu0 0.0
    %1134 = vmatprep.subr.mxu0 0.0
    %1135 = vmatpush1.msra.mxu0 0.0
    %1136 = vmatprep.subr.mxu0 0.0
    %1137 = vmatpush1.msra.mxu0 0.0
    %1138 = vmatprep.subr.mxu0 0.0
    %1139 = vmatpush1.msra.mxu0 0.0
    %1140 = vmatprep.subr.mxu0 0.0
    %1141 = vmatpush1.msra.mxu0 0.0
    %1142 = vmatprep.subr.mxu0 0.0
    %1143 = vmatpush1.msra.mxu0 0.0
    %1144 = vmatprep.subr.mxu0 0.0
    %1145 = vmatpush1.msra.mxu0 0.0
    %1146 = vmatprep.subr.mxu0 0.0
    %1147 = vmatpush1.msra.mxu0 0.0
    %1148 = vmatprep.subr.mxu0 0.0
    %1149 = vmatpush1.msra.mxu0 0.0
    %1150 = vmatprep.subr.mxu0 0.0
    %1151 = vmatpush1.msra.mxu0 0.0
    %1152 = vmatprep.subr.mxu0 0.0
    %1153 = vmatpush1.msra.mxu0 0.0
    %1154 = vmatprep.subr.mxu0 0.0
    %1155 = vmatpush1.msra.mxu0 0.0
    %1156 = vmatprep.subr.mxu0 0.0
    %1157 = vmatpush1.msra.mxu0 0.0
    %1158 = vmatprep.subr.mxu0 0.0
    %1159 = vmatpush1.msra.mxu0 0.0
    %1160 = vmatprep.subr.mxu0 0.0
    %1161 = vmatpush1.msra.mxu0 0.0
    %1162 = vmatprep.subr.mxu0 0.0
    %1163 = vmatpush1.msra.mxu0 0.0
    %1164 = vmatprep.subr.mxu0 0.0
    %1165 = vmatpush1.msra.mxu0 0.0
    %1166 = vmatprep.subr.mxu0 0.0
    %1167 = vmatpush1.msra.mxu0 0.0
    %1168 = vmatprep.subr.mxu0 0.0
    %1169 = vmatpush1.msra.mxu0 0.0
    %1170 = vmatprep.subr.mxu0 0.0
    %1171 = vmatpush1.msra.mxu0 0.0
    %1172 = vmatprep.subr.mxu0 0.0
    %1173 = vmatpush1.msra.mxu0 0.0
    %1174 = vmatprep.subr.mxu0 0.0
    %1175 = vmatpush1.msra.mxu0 0.0
    %1176 = vmatprep.subr.mxu0 0.0
    %1177 = vmatpush1.msra.mxu0 0.0
    %1178 = vmatprep.subr.mxu0 0.0
    %1179 = vmatpush1.msra.mxu0 0.0
    %1180 = vmatprep.mubr.f32.mxu0 0.0
    %1181 = vmatmul.mubr.f32.gmra.mrb[0].mxu0 %v1111
    %v1182 = vpop.f32.mrb[0].mxu0
    %v1183 = vadd.f32 %v1108, %v1182
    %v1184 = vpop.f32.mrb[0].mxu0
    %1185 = vmatprep.mubr.f32.mxu0 0.0
    %1186 = vmatmul.mubr.f32.gmra.mrb[0].mxu0 %v1114
    %v1187 = vpop.f32.mrb[0].mxu0
    %v1188 = vadd.f32 %v1108, %v1187
    %v1189 = vpop.f32.mrb[0].mxu0
    %1190 = vdwg.mxu0
    %v1191 = vadd.f32 %v1183, %v1000
    %v1192 = vadd.f32 %v1188, %v1001
    %v1193 = vsel %vm35, %v1191, 0.0
    %1194 = vadd.xlane.f32.xlu0 %v1193
    %v1195 = vpop.xlane.xlu0 %1194
    %v1196 = vsel %vm35, %v1192, 0.0
    %1197 = vadd.xlane.f32.xlu0 %v1196
    %v1198 = vpop.xlane.xlu0 %1197
    %v1199 = vmul.f32 %v1195, %v42
    %v1200 = vmul.f32 %v1198, %v42
    %v1201 = vsub.f32 %v1191, %v1199
    %v1202 = vsub.f32 %v1192, %v1200
    %v1203 = vmul.f32 %v1201, %v1201
    %v1204 = vmul.f32 %v1202, %v1202
    %v1205 = vsel %vm35, %v1203, 0.0
    %1206 = vadd.xlane.f32.xlu0 %v1205
    %v1207 = vpop.xlane.xlu0 %1206
    %v1208 = vsel %vm35, %v1204, 0.0
    %1209 = vadd.xlane.f32.xlu0 %v1208
    %v1210 = vpop.xlane.xlu0 %1209
    %v1211 = vmul.f32 %v1207, %v42
    %v1212 = vmul.f32 %v1210, %v42
    %v1213 = vadd.f32 %v1211, 1e-12
    %v1214 = vadd.f32 %v1212, 1e-12
    %v1215 = vrsqrt.pop %v1213
    %v1216 = vrsqrt.pop %v1214
    %v1217 = vmul.f32 %v1201, %v1215
    %v1218 = vmul.f32 %v1202, %v1216
    %v1219 = vlaneseq
    %v1220 = vshrl.u32 %v1219, 7
    %v1221 = vsub.s32 6, %v1220
    %v1222 = vrot.slane %v85, %v1221
    %v1223 = vmul.f32 %v1217, %v1222
    %v1224 = vmul.f32 %v1218, %v1222
    %v1225 = vlaneseq
    %v1226 = vshrl.u32 %v1225, 7
    %v1227 = vsub.s32 7, %v1226
    %v1228 = vrot.slane %v85, %v1227
    %v1229 = vadd.f32 %v1223, %v1228
    %v1230 = vadd.f32 %v1224, %v1228
    %s1231 = scalar_lea.vmem %s3, 64
    %v1232 = vld [vmem:[%s1231] sm:$0xff]
    %v1233 = vld [vmem:[%s1231 + $0x8] sm:$0xff]
    %v1234 = vld [vmem:[%s1231 + $0x10] sm:$0xff]
    %v1235 = vld [vmem:[%s1231 + $0x18] sm:$0xff]
    %v1236 = vld [vmem:[%s1231 + $0x20] sm:$0xff]
    %v1237 = vld [vmem:[%s1231 + $0x28] sm:$0xff]
    %v1238 = vld [vmem:[%s1231 + $0x30] sm:$0xff]
    %v1239 = vld [vmem:[%s1231 + $0x38] sm:$0xff]
    %s1240 = scalar_lea.vmem %s5, 8
    %v1241 = vld [vmem:[%s1240] sm:$0xff]
    %s1242 = scalar_lea.vmem %s4, 64
    %v1243 = vld [vmem:[%s1242] sm:$0xff]
    %v1244 = vld [vmem:[%s1242 + $0x8] sm:$0xff]
    %v1245 = vld [vmem:[%s1242 + $0x10] sm:$0xff]
    %v1246 = vld [vmem:[%s1242 + $0x18] sm:$0xff]
    %v1247 = vld [vmem:[%s1242 + $0x20] sm:$0xff]
    %v1248 = vld [vmem:[%s1242 + $0x28] sm:$0xff]
    %v1249 = vld [vmem:[%s1242 + $0x30] sm:$0xff]
    %v1250 = vld [vmem:[%s1242 + $0x38] sm:$0xff]
    %v1251 = vlaneseq
    %v1252 = vshrl.u32 %v1251, 7
    %v1253 = vsub.s32 0, %v1252
    %v1254 = vrot.slane %v1241, %v1253
    %v1256 = vsel %vm35, %v1229, 0
    %v1259 = vsel %vm35, %v1230, 0
    %1261 = vmatprep.subr.mxu0 0.0
    %1262 = vmatpush1.msra.mxu0 %v1232
    %1263 = vmatprep.subr.mxu0 0.0
    %1264 = vmatpush1.msra.mxu0 %v1234
    %1265 = vmatprep.subr.mxu0 0.0
    %1266 = vmatpush1.msra.mxu0 %v1236
    %1267 = vmatprep.subr.mxu0 0.0
    %1268 = vmatpush1.msra.mxu0 %v1238
    %1269 = vmatprep.subr.mxu0 0.0
    %1270 = vmatpush1.msra.mxu0 0.0
    %1271 = vmatprep.subr.mxu0 0.0
    %1272 = vmatpush1.msra.mxu0 0.0
    %1273 = vmatprep.subr.mxu0 0.0
    %1274 = vmatpush1.msra.mxu0 0.0
    %1275 = vmatprep.subr.mxu0 0.0
    %1276 = vmatpush1.msra.mxu0 0.0
    %1277 = vmatprep.subr.mxu0 0.0
    %1278 = vmatpush1.msra.mxu0 0.0
    %1279 = vmatprep.subr.mxu0 0.0
    %1280 = vmatpush1.msra.mxu0 0.0
    %1281 = vmatprep.subr.mxu0 0.0
    %1282 = vmatpush1.msra.mxu0 0.0
    %1283 = vmatprep.subr.mxu0 0.0
    %1284 = vmatpush1.msra.mxu0 0.0
    %1285 = vmatprep.subr.mxu0 0.0
    %1286 = vmatpush1.msra.mxu0 0.0
    %1287 = vmatprep.subr.mxu0 0.0
    %1288 = vmatpush1.msra.mxu0 0.0
    %1289 = vmatprep.subr.mxu0 0.0
    %1290 = vmatpush1.msra.mxu0 0.0
    %1291 = vmatprep.subr.mxu0 0.0
    %1292 = vmatpush1.msra.mxu0 0.0
    %1293 = vmatprep.subr.mxu0 0.0
    %1294 = vmatpush1.msra.mxu0 0.0
    %1295 = vmatprep.subr.mxu0 0.0
    %1296 = vmatpush1.msra.mxu0 0.0
    %1297 = vmatprep.subr.mxu0 0.0
    %1298 = vmatpush1.msra.mxu0 0.0
    %1299 = vmatprep.subr.mxu0 0.0
    %1300 = vmatpush1.msra.mxu0 0.0
    %1301 = vmatprep.subr.mxu0 0.0
    %1302 = vmatpush1.msra.mxu0 0.0
    %1303 = vmatprep.subr.mxu0 0.0
    %1304 = vmatpush1.msra.mxu0 0.0
    %1305 = vmatprep.subr.mxu0 0.0
    %1306 = vmatpush1.msra.mxu0 0.0
    %1307 = vmatprep.subr.mxu0 0.0
    %1308 = vmatpush1.msra.mxu0 0.0
    %1309 = vmatprep.subr.mxu0 0.0
    %1310 = vmatpush1.msra.mxu0 0.0
    %1311 = vmatprep.subr.mxu0 0.0
    %1312 = vmatpush1.msra.mxu0 0.0
    %1313 = vmatprep.subr.mxu0 0.0
    %1314 = vmatpush1.msra.mxu0 0.0
    %1315 = vmatprep.subr.mxu0 0.0
    %1316 = vmatpush1.msra.mxu0 0.0
    %1317 = vmatprep.subr.mxu0 0.0
    %1318 = vmatpush1.msra.mxu0 0.0
    %1319 = vmatprep.subr.mxu0 0.0
    %1320 = vmatpush1.msra.mxu0 0.0
    %1321 = vmatprep.subr.mxu0 0.0
    %1322 = vmatpush1.msra.mxu0 0.0
    %1323 = vmatprep.subr.mxu0 0.0
    %1324 = vmatpush1.msra.mxu0 0.0
    %1325 = vmatprep.mubr.f32.mxu0 0.0
    %1326 = vmatmul.mubr.f32.gmra.mrb[0].mxu0 %v1256
    %v1327 = vpop.f32.mrb[0].mxu0
    %v1328 = vadd.f32 %v1254, %v1327
    %v1329 = vpop.f32.mrb[0].mxu0
    %1330 = vmatprep.mubr.f32.mxu0 0.0
    %1331 = vmatmul.mubr.f32.gmra.mrb[0].mxu0 %v1259
    %v1332 = vpop.f32.mrb[0].mxu0
    %v1333 = vadd.f32 %v1254, %v1332
    %v1334 = vpop.f32.mrb[0].mxu0
    %1335 = vdwg.mxu0
    %1337 = vrot.lane.b32.xlu0 %v1328, 96
    %v1338 = vpop.permute.xlu0 %1337
    %v1339 = vsel %vm194, %v1328, 0
    %v1341 = vsel %vm194, %v1338, 0
    %1343 = vmatprep.subr.mxu0 0.0
    %1344 = vmatpush1.xpose.msra.mxu0 %v1341
    %1345 = vmatprep.subr.mxu0 0.0
    %1346 = vmatpush1.xpose.msra.mxu0 0.0
    %1347 = vmatprep.subr.mxu0 0.0
    %1348 = vmatpush1.xpose.msra.mxu0 0.0
    %1349 = vmatprep.subr.mxu0 0.0
    %1350 = vmatpush1.xpose.msra.mxu0 0.0
    %1351 = vmatprep.subr.mxu0 0.0
    %1352 = vmatpush1.xpose.msra.mxu0 0.0
    %1353 = vmatprep.subr.mxu0 0.0
    %1354 = vmatpush1.xpose.msra.mxu0 0.0
    %1355 = vmatprep.subr.mxu0 0.0
    %1356 = vmatpush1.xpose.msra.mxu0 0.0
    %1357 = vmatprep.subr.mxu0 0.0
    %1358 = vmatpush1.xpose.msra.mxu0 0.0
    %1359 = vmatprep.subr.mxu0 0.0
    %1360 = vmatpush1.xpose.msra.mxu0 0.0
    %1361 = vmatprep.subr.mxu0 0.0
    %1362 = vmatpush1.xpose.msra.mxu0 0.0
    %1363 = vmatprep.subr.mxu0 0.0
    %1364 = vmatpush1.xpose.msra.mxu0 0.0
    %1365 = vmatprep.subr.mxu0 0.0
    %1366 = vmatpush1.xpose.msra.mxu0 0.0
    %1367 = vmatprep.subr.mxu0 0.0
    %1368 = vmatpush1.xpose.msra.mxu0 0.0
    %1369 = vmatprep.subr.mxu0 0.0
    %1370 = vmatpush1.xpose.msra.mxu0 0.0
    %1371 = vmatprep.subr.mxu0 0.0
    %1372 = vmatpush1.xpose.msra.mxu0 0.0
    %1373 = vmatprep.subr.mxu0 0.0
    %1374 = vmatpush1.xpose.msra.mxu0 0.0
    %1375 = vmatprep.subr.mxu0 0.0
    %1376 = vmatpush1.xpose.msra.mxu0 0.0
    %1377 = vmatprep.subr.mxu0 0.0
    %1378 = vmatpush1.xpose.msra.mxu0 0.0
    %1379 = vmatprep.subr.mxu0 0.0
    %1380 = vmatpush1.xpose.msra.mxu0 0.0
    %1381 = vmatprep.subr.mxu0 0.0
    %1382 = vmatpush1.xpose.msra.mxu0 0.0
    %1383 = vmatprep.subr.mxu0 0.0
    %1384 = vmatpush1.xpose.msra.mxu0 0.0
    %1385 = vmatprep.subr.mxu0 0.0
    %1386 = vmatpush1.xpose.msra.mxu0 0.0
    %1387 = vmatprep.subr.mxu0 0.0
    %1388 = vmatpush1.xpose.msra.mxu0 0.0
    %1389 = vmatprep.subr.mxu0 0.0
    %1390 = vmatpush1.xpose.msra.mxu0 0.0
    %1391 = vmatprep.subr.mxu0 0.0
    %1392 = vmatpush1.xpose.msra.mxu0 0.0
    %1393 = vmatprep.subr.mxu0 0.0
    %1394 = vmatpush1.xpose.msra.mxu0 0.0
    %1395 = vmatprep.subr.mxu0 0.0
    %1396 = vmatpush1.xpose.msra.mxu0 0.0
    %1397 = vmatprep.subr.mxu0 0.0
    %1398 = vmatpush1.xpose.msra.mxu0 0.0
    %1399 = vmatprep.subr.mxu0 0.0
    %1400 = vmatpush1.xpose.msra.mxu0 0.0
    %1401 = vmatprep.subr.mxu0 0.0
    %1402 = vmatpush1.xpose.msra.mxu0 0.0
    %1403 = vmatprep.subr.mxu0 0.0
    %1404 = vmatpush1.xpose.msra.mxu0 0.0
    %1405 = vmatprep.subr.mxu0 0.0
    %1406 = vmatpush1.xpose.msra.mxu0 0.0
    %1407 = vmatprep.mubr.f32.mxu0 0.0
    %1408 = vmatmul.mubr.f32.gmra.mrb[0].mxu0 %v1339
    %v1409 = vpop.f32.mrb[0].mxu0
    %v1410 = vadd.f32 %v184, %v1409
    %v1411 = vpop.f32.mrb[0].mxu0
    %1412 = vdwg.mxu0
    %1414 = vrot.lane.b32.xlu0 %v1333, 96
    %v1415 = vpop.permute.xlu0 %1414
    %v1416 = vsel %vm194, %v1333, 0
    %v1418 = vsel %vm194, %v1415, 0
    %1420 = vmatprep.subr.mxu0 0.0
    %1421 = vmatpush1.xpose.msra.mxu0 %v1418
    %1422 = vmatprep.subr.mxu0 0.0
    %1423 = vmatpush1.xpose.msra.mxu0 0.0
    %1424 = vmatprep.subr.mxu0 0.0
    %1425 = vmatpush1.xpose.msra.mxu0 0.0
    %1426 = vmatprep.subr.mxu0 0.0
    %1427 = vmatpush1.xpose.msra.mxu0 0.0
    %1428 = vmatprep.subr.mxu0 0.0
    %1429 = vmatpush1.xpose.msra.mxu0 0.0
    %1430 = vmatprep.subr.mxu0 0.0
    %1431 = vmatpush1.xpose.msra.mxu0 0.0
    %1432 = vmatprep.subr.mxu0 0.0
    %1433 = vmatpush1.xpose.msra.mxu0 0.0
    %1434 = vmatprep.subr.mxu0 0.0
    %1435 = vmatpush1.xpose.msra.mxu0 0.0
    %1436 = vmatprep.subr.mxu0 0.0
    %1437 = vmatpush1.xpose.msra.mxu0 0.0
    %1438 = vmatprep.subr.mxu0 0.0
    %1439 = vmatpush1.xpose.msra.mxu0 0.0
    %1440 = vmatprep.subr.mxu0 0.0
    %1441 = vmatpush1.xpose.msra.mxu0 0.0
    %1442 = vmatprep.subr.mxu0 0.0
    %1443 = vmatpush1.xpose.msra.mxu0 0.0
    %1444 = vmatprep.subr.mxu0 0.0
    %1445 = vmatpush1.xpose.msra.mxu0 0.0
    %1446 = vmatprep.subr.mxu0 0.0
    %1447 = vmatpush1.xpose.msra.mxu0 0.0
    %1448 = vmatprep.subr.mxu0 0.0
    %1449 = vmatpush1.xpose.msra.mxu0 0.0
    %1450 = vmatprep.subr.mxu0 0.0
    %1451 = vmatpush1.xpose.msra.mxu0 0.0
    %1452 = vmatprep.subr.mxu0 0.0
    %1453 = vmatpush1.xpose.msra.mxu0 0.0
    %1454 = vmatprep.subr.mxu0 0.0
    %1455 = vmatpush1.xpose.msra.mxu0 0.0
    %1456 = vmatprep.subr.mxu0 0.0
    %1457 = vmatpush1.xpose.msra.mxu0 0.0
    %1458 = vmatprep.subr.mxu0 0.0
    %1459 = vmatpush1.xpose.msra.mxu0 0.0
    %1460 = vmatprep.subr.mxu0 0.0
    %1461 = vmatpush1.xpose.msra.mxu0 0.0
    %1462 = vmatprep.subr.mxu0 0.0
    %1463 = vmatpush1.xpose.msra.mxu0 0.0
    %1464 = vmatprep.subr.mxu0 0.0
    %1465 = vmatpush1.xpose.msra.mxu0 0.0
    %1466 = vmatprep.subr.mxu0 0.0
    %1467 = vmatpush1.xpose.msra.mxu0 0.0
    %1468 = vmatprep.subr.mxu0 0.0
    %1469 = vmatpush1.xpose.msra.mxu0 0.0
    %1470 = vmatprep.subr.mxu0 0.0
    %1471 = vmatpush1.xpose.msra.mxu0 0.0
    %1472 = vmatprep.subr.mxu0 0.0
    %1473 = vmatpush1.xpose.msra.mxu0 0.0
    %1474 = vmatprep.subr.mxu0 0.0
    %1475 = vmatpush1.xpose.msra.mxu0 0.0
    %1476 = vmatprep.subr.mxu0 0.0
    %1477 = vmatpush1.xpose.msra.mxu0 0.0
    %1478 = vmatprep.subr.mxu0 0.0
    %1479 = vmatpush1.xpose.msra.mxu0 0.0
    %1480 = vmatprep.subr.mxu0 0.0
    %1481 = vmatpush1.xpose.msra.mxu0 0.0
    %1482 = vmatprep.subr.mxu0 0.0
    %1483 = vmatpush1.xpose.msra.mxu0 0.0
    %1484 = vmatprep.mubr.f32.mxu0 0.0
    %1485 = vmatmul.mubr.f32.gmra.mrb[0].mxu0 %v1416
    %v1486 = vpop.f32.mrb[0].mxu0
    %v1487 = vadd.f32 %v188, %v1486
    %v1488 = vpop.f32.mrb[0].mxu0
    %1489 = vdwg.mxu0
    %v1490 = vsel %vm346, %v1410, -inf
    %1491 = vmax.xlane.f32.xlu0 %v1490
    %v1492 = vpop.xlane.xlu0 %1491
    %v1493 = vsel %vm346, %v1487, -inf
    %1494 = vmax.xlane.f32.xlu0 %v1493
    %v1495 = vpop.xlane.xlu0 %1494
    %v1496 = vsub.f32 %v1410, %v1492
    %v1497 = vsub.f32 %v1487, %v1495
    %v1498 = vmul.f32 %v1496, 1.442695
    %v1499 = vpow.pop %v1498
    %v1500 = vmul.f32 %v1497, 1.442695
    %v1501 = vpow.pop %v1500
    %v1502 = vsel %vm346, %v1499, 0.0
    %1503 = vadd.xlane.f32.xlu0 %v1502
    %v1504 = vpop.xlane.xlu0 %1503
    %v1505 = vsel %vm346, %v1501, 0.0
    %1506 = vadd.xlane.f32.xlu0 %v1505
    %v1507 = vpop.xlane.xlu0 %1506
    %v1508 = vrcp.pop %v1504
    %v1509 = vrcp.pop %v1507
    %v1510 = vmul.f32 %v1499, %v1508
    %v1511 = vmul.f32 %v1501, %v1509
    %1512 = vrot.lane.b32.xlu0 %v1328, 64
    %v1513 = vpop.permute.xlu0 %1512
    %v1516 = vsel %vm346, %v1510, 0
    %1518 = vmatprep.subr.mxu0 0.0
    %1519 = vmatpush1.msra.mxu0 %v1513
    %1520 = vmatprep.subr.mxu0 0.0
    %1521 = vmatpush1.msra.mxu0 0.0
    %1522 = vmatprep.subr.mxu0 0.0
    %1523 = vmatpush1.msra.mxu0 0.0
    %1524 = vmatprep.subr.mxu0 0.0
    %1525 = vmatpush1.msra.mxu0 0.0
    %1526 = vmatprep.subr.mxu0 0.0
    %1527 = vmatpush1.msra.mxu0 0.0
    %1528 = vmatprep.subr.mxu0 0.0
    %1529 = vmatpush1.msra.mxu0 0.0
    %1530 = vmatprep.subr.mxu0 0.0
    %1531 = vmatpush1.msra.mxu0 0.0
    %1532 = vmatprep.subr.mxu0 0.0
    %1533 = vmatpush1.msra.mxu0 0.0
    %1534 = vmatprep.subr.mxu0 0.0
    %1535 = vmatpush1.msra.mxu0 0.0
    %1536 = vmatprep.subr.mxu0 0.0
    %1537 = vmatpush1.msra.mxu0 0.0
    %1538 = vmatprep.subr.mxu0 0.0
    %1539 = vmatpush1.msra.mxu0 0.0
    %1540 = vmatprep.subr.mxu0 0.0
    %1541 = vmatpush1.msra.mxu0 0.0
    %1542 = vmatprep.subr.mxu0 0.0
    %1543 = vmatpush1.msra.mxu0 0.0
    %1544 = vmatprep.subr.mxu0 0.0
    %1545 = vmatpush1.msra.mxu0 0.0
    %1546 = vmatprep.subr.mxu0 0.0
    %1547 = vmatpush1.msra.mxu0 0.0
    %1548 = vmatprep.subr.mxu0 0.0
    %1549 = vmatpush1.msra.mxu0 0.0
    %1550 = vmatprep.subr.mxu0 0.0
    %1551 = vmatpush1.msra.mxu0 0.0
    %1552 = vmatprep.subr.mxu0 0.0
    %1553 = vmatpush1.msra.mxu0 0.0
    %1554 = vmatprep.subr.mxu0 0.0
    %1555 = vmatpush1.msra.mxu0 0.0
    %1556 = vmatprep.subr.mxu0 0.0
    %1557 = vmatpush1.msra.mxu0 0.0
    %1558 = vmatprep.subr.mxu0 0.0
    %1559 = vmatpush1.msra.mxu0 0.0
    %1560 = vmatprep.subr.mxu0 0.0
    %1561 = vmatpush1.msra.mxu0 0.0
    %1562 = vmatprep.subr.mxu0 0.0
    %1563 = vmatpush1.msra.mxu0 0.0
    %1564 = vmatprep.subr.mxu0 0.0
    %1565 = vmatpush1.msra.mxu0 0.0
    %1566 = vmatprep.subr.mxu0 0.0
    %1567 = vmatpush1.msra.mxu0 0.0
    %1568 = vmatprep.subr.mxu0 0.0
    %1569 = vmatpush1.msra.mxu0 0.0
    %1570 = vmatprep.subr.mxu0 0.0
    %1571 = vmatpush1.msra.mxu0 0.0
    %1572 = vmatprep.subr.mxu0 0.0
    %1573 = vmatpush1.msra.mxu0 0.0
    %1574 = vmatprep.subr.mxu0 0.0
    %1575 = vmatpush1.msra.mxu0 0.0
    %1576 = vmatprep.subr.mxu0 0.0
    %1577 = vmatpush1.msra.mxu0 0.0
    %1578 = vmatprep.subr.mxu0 0.0
    %1579 = vmatpush1.msra.mxu0 0.0
    %1580 = vmatprep.subr.mxu0 0.0
    %1581 = vmatpush1.msra.mxu0 0.0
    %1582 = vmatprep.mubr.f32.mxu0 0.0
    %1583 = vmatmul.mubr.f32.gmra.mrb[0].mxu0 %v1516
    %v1584 = vpop.f32.mrb[0].mxu0
    %v1585 = vadd.f32 0.0, %v1584
    %v1586 = vpop.f32.mrb[0].mxu0
    %1587 = vdwg.mxu0
    %1588 = vrot.lane.b32.xlu0 %v1333, 64
    %v1589 = vpop.permute.xlu0 %1588
    %v1592 = vsel %vm346, %v1511, 0
    %1594 = vmatprep.subr.mxu0 0.0
    %1595 = vmatpush1.msra.mxu0 %v1589
    %1596 = vmatprep.subr.mxu0 0.0
    %1597 = vmatpush1.msra.mxu0 0.0
    %1598 = vmatprep.subr.mxu0 0.0
    %1599 = vmatpush1.msra.mxu0 0.0
    %1600 = vmatprep.subr.mxu0 0.0
    %1601 = vmatpush1.msra.mxu0 0.0
    %1602 = vmatprep.subr.mxu0 0.0
    %1603 = vmatpush1.msra.mxu0 0.0
    %1604 = vmatprep.subr.mxu0 0.0
    %1605 = vmatpush1.msra.mxu0 0.0
    %1606 = vmatprep.subr.mxu0 0.0
    %1607 = vmatpush1.msra.mxu0 0.0
    %1608 = vmatprep.subr.mxu0 0.0
    %1609 = vmatpush1.msra.mxu0 0.0
    %1610 = vmatprep.subr.mxu0 0.0
    %1611 = vmatpush1.msra.mxu0 0.0
    %1612 = vmatprep.subr.mxu0 0.0
    %1613 = vmatpush1.msra.mxu0 0.0
    %1614 = vmatprep.subr.mxu0 0.0
    %1615 = vmatpush1.msra.mxu0 0.0
    %1616 = vmatprep.subr.mxu0 0.0
    %1617 = vmatpush1.msra.mxu0 0.0
    %1618 = vmatprep.subr.mxu0 0.0
    %1619 = vmatpush1.msra.mxu0 0.0
    %1620 = vmatprep.subr.mxu0 0.0
    %1621 = vmatpush1.msra.mxu0 0.0
    %1622 = vmatprep.subr.mxu0 0.0
    %1623 = vmatpush1.msra.mxu0 0.0
    %1624 = vmatprep.subr.mxu0 0.0
    %1625 = vmatpush1.msra.mxu0 0.0
    %1626 = vmatprep.subr.mxu0 0.0
    %1627 = vmatpush1.msra.mxu0 0.0
    %1628 = vmatprep.subr.mxu0 0.0
    %1629 = vmatpush1.msra.mxu0 0.0
    %1630 = vmatprep.subr.mxu0 0.0
    %1631 = vmatpush1.msra.mxu0 0.0
    %1632 = vmatprep.subr.mxu0 0.0
    %1633 = vmatpush1.msra.mxu0 0.0
    %1634 = vmatprep.subr.mxu0 0.0
    %1635 = vmatpush1.msra.mxu0 0.0
    %1636 = vmatprep.subr.mxu0 0.0
    %1637 = vmatpush1.msra.mxu0 0.0
    %1638 = vmatprep.subr.mxu0 0.0
    %1639 = vmatpush1.msra.mxu0 0.0
    %1640 = vmatprep.subr.mxu0 0.0
    %1641 = vmatpush1.msra.mxu0 0.0
    %1642 = vmatprep.subr.mxu0 0.0
    %1643 = vmatpush1.msra.mxu0 0.0
    %1644 = vmatprep.subr.mxu0 0.0
    %1645 = vmatpush1.msra.mxu0 0.0
    %1646 = vmatprep.subr.mxu0 0.0
    %1647 = vmatpush1.msra.mxu0 0.0
    %1648 = vmatprep.subr.mxu0 0.0
    %1649 = vmatpush1.msra.mxu0 0.0
    %1650 = vmatprep.subr.mxu0 0.0
    %1651 = vmatpush1.msra.mxu0 0.0
    %1652 = vmatprep.subr.mxu0 0.0
    %1653 = vmatpush1.msra.mxu0 0.0
    %1654 = vmatprep.subr.mxu0 0.0
    %1655 = vmatpush1.msra.mxu0 0.0
    %1656 = vmatprep.subr.mxu0 0.0
    %1657 = vmatpush1.msra.mxu0 0.0
    %1658 = vmatprep.mubr.f32.mxu0 0.0
    %1659 = vmatmul.mubr.f32.gmra.mrb[0].mxu0 %v1592
    %v1660 = vpop.f32.mrb[0].mxu0
    %v1661 = vadd.f32 0.0, %v1660
    %v1662 = vpop.f32.mrb[0].mxu0
    %1663 = vdwg.mxu0
    %1664 = vrot.lane.b32.xlu0 %v1328, 112
    %v1665 = vpop.permute.xlu0 %1664
    %1666 = vrot.lane.b32.xlu0 %v1328, 80
    %v1667 = vpop.permute.xlu0 %1666
    %v1668 = vsel %vm194, %v1665, 0
    %v1670 = vsel %vm194, %v1667, 0
    %1672 = vmatprep.subr.mxu0 0.0
    %1673 = vmatpush1.xpose.msra.mxu0 %v1670
    %1674 = vmatprep.subr.mxu0 0.0
    %1675 = vmatpush1.xpose.msra.mxu0 0.0
    %1676 = vmatprep.subr.mxu0 0.0
    %1677 = vmatpush1.xpose.msra.mxu0 0.0
    %1678 = vmatprep.subr.mxu0 0.0
    %1679 = vmatpush1.xpose.msra.mxu0 0.0
    %1680 = vmatprep.subr.mxu0 0.0
    %1681 = vmatpush1.xpose.msra.mxu0 0.0
    %1682 = vmatprep.subr.mxu0 0.0
    %1683 = vmatpush1.xpose.msra.mxu0 0.0
    %1684 = vmatprep.subr.mxu0 0.0
    %1685 = vmatpush1.xpose.msra.mxu0 0.0
    %1686 = vmatprep.subr.mxu0 0.0
    %1687 = vmatpush1.xpose.msra.mxu0 0.0
    %1688 = vmatprep.subr.mxu0 0.0
    %1689 = vmatpush1.xpose.msra.mxu0 0.0
    %1690 = vmatprep.subr.mxu0 0.0
    %1691 = vmatpush1.xpose.msra.mxu0 0.0
    %1692 = vmatprep.subr.mxu0 0.0
    %1693 = vmatpush1.xpose.msra.mxu0 0.0
    %1694 = vmatprep.subr.mxu0 0.0
    %1695 = vmatpush1.xpose.msra.mxu0 0.0
    %1696 = vmatprep.subr.mxu0 0.0
    %1697 = vmatpush1.xpose.msra.mxu0 0.0
    %1698 = vmatprep.subr.mxu0 0.0
    %1699 = vmatpush1.xpose.msra.mxu0 0.0
    %1700 = vmatprep.subr.mxu0 0.0
    %1701 = vmatpush1.xpose.msra.mxu0 0.0
    %1702 = vmatprep.subr.mxu0 0.0
    %1703 = vmatpush1.xpose.msra.mxu0 0.0
    %1704 = vmatprep.subr.mxu0 0.0
    %1705 = vmatpush1.xpose.msra.mxu0 0.0
    %1706 = vmatprep.subr.mxu0 0.0
    %1707 = vmatpush1.xpose.msra.mxu0 0.0
    %1708 = vmatprep.subr.mxu0 0.0
    %1709 = vmatpush1.xpose.msra.mxu0 0.0
    %1710 = vmatprep.subr.mxu0 0.0
    %1711 = vmatpush1.xpose.msra.mxu0 0.0
    %1712 = vmatprep.subr.mxu0 0.0
    %1713 = vmatpush1.xpose.msra.mxu0 0.0
    %1714 = vmatprep.subr.mxu0 0.0
    %1715 = vmatpush1.xpose.msra.mxu0 0.0
    %1716 = vmatprep.subr.mxu0 0.0
    %1717 = vmatpush1.xpose.msra.mxu0 0.0
    %1718 = vmatprep.subr.mxu0 0.0
    %1719 = vmatpush1.xpose.msra.mxu0 0.0
    %1720 = vmatprep.subr.mxu0 0.0
    %1721 = vmatpush1.xpose.msra.mxu0 0.0
    %1722 = vmatprep.subr.mxu0 0.0
    %1723 = vmatpush1.xpose.msra.mxu0 0.0
    %1724 = vmatprep.subr.mxu0 0.0
    %1725 = vmatpush1.xpose.msra.mxu0 0.0
    %1726 = vmatprep.subr.mxu0 0.0
    %1727 = vmatpush1.xpose.msra.mxu0 0.0
    %1728 = vmatprep.subr.mxu0 0.0
    %1729 = vmatpush1.xpose.msra.mxu0 0.0
    %1730 = vmatprep.subr.mxu0 0.0
    %1731 = vmatpush1.xpose.msra.mxu0 0.0
    %1732 = vmatprep.subr.mxu0 0.0
    %1733 = vmatpush1.xpose.msra.mxu0 0.0
    %1734 = vmatprep.subr.mxu0 0.0
    %1735 = vmatpush1.xpose.msra.mxu0 0.0
    %1736 = vmatprep.mubr.f32.mxu0 0.0
    %1737 = vmatmul.mubr.f32.gmra.mrb[0].mxu0 %v1668
    %v1738 = vpop.f32.mrb[0].mxu0
    %v1739 = vadd.f32 %v184, %v1738
    %v1740 = vpop.f32.mrb[0].mxu0
    %1741 = vdwg.mxu0
    %1742 = vrot.lane.b32.xlu0 %v1333, 112
    %v1743 = vpop.permute.xlu0 %1742
    %1744 = vrot.lane.b32.xlu0 %v1333, 80
    %v1745 = vpop.permute.xlu0 %1744
    %v1746 = vsel %vm194, %v1743, 0
    %v1748 = vsel %vm194, %v1745, 0
    %1750 = vmatprep.subr.mxu0 0.0
    %1751 = vmatpush1.xpose.msra.mxu0 %v1748
    %1752 = vmatprep.subr.mxu0 0.0
    %1753 = vmatpush1.xpose.msra.mxu0 0.0
    %1754 = vmatprep.subr.mxu0 0.0
    %1755 = vmatpush1.xpose.msra.mxu0 0.0
    %1756 = vmatprep.subr.mxu0 0.0
    %1757 = vmatpush1.xpose.msra.mxu0 0.0
    %1758 = vmatprep.subr.mxu0 0.0
    %1759 = vmatpush1.xpose.msra.mxu0 0.0
    %1760 = vmatprep.subr.mxu0 0.0
    %1761 = vmatpush1.xpose.msra.mxu0 0.0
    %1762 = vmatprep.subr.mxu0 0.0
    %1763 = vmatpush1.xpose.msra.mxu0 0.0
    %1764 = vmatprep.subr.mxu0 0.0
    %1765 = vmatpush1.xpose.msra.mxu0 0.0
    %1766 = vmatprep.subr.mxu0 0.0
    %1767 = vmatpush1.xpose.msra.mxu0 0.0
    %1768 = vmatprep.subr.mxu0 0.0
    %1769 = vmatpush1.xpose.msra.mxu0 0.0
    %1770 = vmatprep.subr.mxu0 0.0
    %1771 = vmatpush1.xpose.msra.mxu0 0.0
    %1772 = vmatprep.subr.mxu0 0.0
    %1773 = vmatpush1.xpose.msra.mxu0 0.0
    %1774 = vmatprep.subr.mxu0 0.0
    %1775 = vmatpush1.xpose.msra.mxu0 0.0
    %1776 = vmatprep.subr.mxu0 0.0
    %1777 = vmatpush1.xpose.msra.mxu0 0.0
    %1778 = vmatprep.subr.mxu0 0.0
    %1779 = vmatpush1.xpose.msra.mxu0 0.0
    %1780 = vmatprep.subr.mxu0 0.0
    %1781 = vmatpush1.xpose.msra.mxu0 0.0
    %1782 = vmatprep.subr.mxu0 0.0
    %1783 = vmatpush1.xpose.msra.mxu0 0.0
    %1784 = vmatprep.subr.mxu0 0.0
    %1785 = vmatpush1.xpose.msra.mxu0 0.0
    %1786 = vmatprep.subr.mxu0 0.0
    %1787 = vmatpush1.xpose.msra.mxu0 0.0
    %1788 = vmatprep.subr.mxu0 0.0
    %1789 = vmatpush1.xpose.msra.mxu0 0.0
    %1790 = vmatprep.subr.mxu0 0.0
    %1791 = vmatpush1.xpose.msra.mxu0 0.0
    %1792 = vmatprep.subr.mxu0 0.0
    %1793 = vmatpush1.xpose.msra.mxu0 0.0
    %1794 = vmatprep.subr.mxu0 0.0
    %1795 = vmatpush1.xpose.msra.mxu0 0.0
    %1796 = vmatprep.subr.mxu0 0.0
    %1797 = vmatpush1.xpose.msra.mxu0 0.0
    %1798 = vmatprep.subr.mxu0 0.0
    %1799 = vmatpush1.xpose.msra.mxu0 0.0
    %1800 = vmatprep.subr.mxu0 0.0
    %1801 = vmatpush1.xpose.msra.mxu0 0.0
    %1802 = vmatprep.subr.mxu0 0.0
    %1803 = vmatpush1.xpose.msra.mxu0 0.0
    %1804 = vmatprep.subr.mxu0 0.0
    %1805 = vmatpush1.xpose.msra.mxu0 0.0
    %1806 = vmatprep.subr.mxu0 0.0
    %1807 = vmatpush1.xpose.msra.mxu0 0.0
    %1808 = vmatprep.subr.mxu0 0.0
    %1809 = vmatpush1.xpose.msra.mxu0 0.0
    %1810 = vmatprep.subr.mxu0 0.0
    %1811 = vmatpush1.xpose.msra.mxu0 0.0
    %1812 = vmatprep.subr.mxu0 0.0
    %1813 = vmatpush1.xpose.msra.mxu0 0.0
    %1814 = vmatprep.mubr.f32.mxu0 0.0
    %1815 = vmatmul.mubr.f32.gmra.mrb[0].mxu0 %v1746
    %v1816 = vpop.f32.mrb[0].mxu0
    %v1817 = vadd.f32 %v188, %v1816
    %v1818 = vpop.f32.mrb[0].mxu0
    %1819 = vdwg.mxu0
    %v1820 = vsel %vm346, %v1739, -inf
    %1821 = vmax.xlane.f32.xlu0 %v1820
    %v1822 = vpop.xlane.xlu0 %1821
    %v1823 = vsel %vm346, %v1817, -inf
    %1824 = vmax.xlane.f32.xlu0 %v1823
    %v1825 = vpop.xlane.xlu0 %1824
    %v1826 = vsub.f32 %v1739, %v1822
    %v1827 = vsub.f32 %v1817, %v1825
    %v1828 = vmul.f32 %v1826, 1.442695
    %v1829 = vpow.pop %v1828
    %v1830 = vmul.f32 %v1827, 1.442695
    %v1831 = vpow.pop %v1830
    %v1832 = vsel %vm346, %v1829, 0.0
    %1833 = vadd.xlane.f32.xlu0 %v1832
    %v1834 = vpop.xlane.xlu0 %1833
    %v1835 = vsel %vm346, %v1831, 0.0
    %1836 = vadd.xlane.f32.xlu0 %v1835
    %v1837 = vpop.xlane.xlu0 %1836
    %v1838 = vrcp.pop %v1834
    %v1839 = vrcp.pop %v1837
    %v1840 = vmul.f32 %v1829, %v1838
    %v1841 = vmul.f32 %v1831, %v1839
    %1842 = vrot.lane.b32.xlu0 %v1328, 48
    %v1843 = vpop.permute.xlu0 %1842
    %v1846 = vsel %vm346, %v1840, 0
    %1848 = vmatprep.subr.mxu0 0.0
    %1849 = vmatpush1.msra.mxu0 %v1843
    %1850 = vmatprep.subr.mxu0 0.0
    %1851 = vmatpush1.msra.mxu0 0.0
    %1852 = vmatprep.subr.mxu0 0.0
    %1853 = vmatpush1.msra.mxu0 0.0
    %1854 = vmatprep.subr.mxu0 0.0
    %1855 = vmatpush1.msra.mxu0 0.0
    %1856 = vmatprep.subr.mxu0 0.0
    %1857 = vmatpush1.msra.mxu0 0.0
    %1858 = vmatprep.subr.mxu0 0.0
    %1859 = vmatpush1.msra.mxu0 0.0
    %1860 = vmatprep.subr.mxu0 0.0
    %1861 = vmatpush1.msra.mxu0 0.0
    %1862 = vmatprep.subr.mxu0 0.0
    %1863 = vmatpush1.msra.mxu0 0.0
    %1864 = vmatprep.subr.mxu0 0.0
    %1865 = vmatpush1.msra.mxu0 0.0
    %1866 = vmatprep.subr.mxu0 0.0
    %1867 = vmatpush1.msra.mxu0 0.0
    %1868 = vmatprep.subr.mxu0 0.0
    %1869 = vmatpush1.msra.mxu0 0.0
    %1870 = vmatprep.subr.mxu0 0.0
    %1871 = vmatpush1.msra.mxu0 0.0
    %1872 = vmatprep.subr.mxu0 0.0
    %1873 = vmatpush1.msra.mxu0 0.0
    %1874 = vmatprep.subr.mxu0 0.0
    %1875 = vmatpush1.msra.mxu0 0.0
    %1876 = vmatprep.subr.mxu0 0.0
    %1877 = vmatpush1.msra.mxu0 0.0
    %1878 = vmatprep.subr.mxu0 0.0
    %1879 = vmatpush1.msra.mxu0 0.0
    %1880 = vmatprep.subr.mxu0 0.0
    %1881 = vmatpush1.msra.mxu0 0.0
    %1882 = vmatprep.subr.mxu0 0.0
    %1883 = vmatpush1.msra.mxu0 0.0
    %1884 = vmatprep.subr.mxu0 0.0
    %1885 = vmatpush1.msra.mxu0 0.0
    %1886 = vmatprep.subr.mxu0 0.0
    %1887 = vmatpush1.msra.mxu0 0.0
    %1888 = vmatprep.subr.mxu0 0.0
    %1889 = vmatpush1.msra.mxu0 0.0
    %1890 = vmatprep.subr.mxu0 0.0
    %1891 = vmatpush1.msra.mxu0 0.0
    %1892 = vmatprep.subr.mxu0 0.0
    %1893 = vmatpush1.msra.mxu0 0.0
    %1894 = vmatprep.subr.mxu0 0.0
    %1895 = vmatpush1.msra.mxu0 0.0
    %1896 = vmatprep.subr.mxu0 0.0
    %1897 = vmatpush1.msra.mxu0 0.0
    %1898 = vmatprep.subr.mxu0 0.0
    %1899 = vmatpush1.msra.mxu0 0.0
    %1900 = vmatprep.subr.mxu0 0.0
    %1901 = vmatpush1.msra.mxu0 0.0
    %1902 = vmatprep.subr.mxu0 0.0
    %1903 = vmatpush1.msra.mxu0 0.0
    %1904 = vmatprep.subr.mxu0 0.0
    %1905 = vmatpush1.msra.mxu0 0.0
    %1906 = vmatprep.subr.mxu0 0.0
    %1907 = vmatpush1.msra.mxu0 0.0
    %1908 = vmatprep.subr.mxu0 0.0
    %1909 = vmatpush1.msra.mxu0 0.0
    %1910 = vmatprep.subr.mxu0 0.0
    %1911 = vmatpush1.msra.mxu0 0.0
    %1912 = vmatprep.mubr.f32.mxu0 0.0
    %1913 = vmatmul.mubr.f32.gmra.mrb[0].mxu0 %v1846
    %v1914 = vpop.f32.mrb[0].mxu0
    %v1915 = vadd.f32 0.0, %v1914
    %v1916 = vpop.f32.mrb[0].mxu0
    %1917 = vdwg.mxu0
    %1918 = vrot.lane.b32.xlu0 %v1333, 48
    %v1919 = vpop.permute.xlu0 %1918
    %v1922 = vsel %vm346, %v1841, 0
    %1924 = vmatprep.subr.mxu0 0.0
    %1925 = vmatpush1.msra.mxu0 %v1919
    %1926 = vmatprep.subr.mxu0 0.0
    %1927 = vmatpush1.msra.mxu0 0.0
    %1928 = vmatprep.subr.mxu0 0.0
    %1929 = vmatpush1.msra.mxu0 0.0
    %1930 = vmatprep.subr.mxu0 0.0
    %1931 = vmatpush1.msra.mxu0 0.0
    %1932 = vmatprep.subr.mxu0 0.0
    %1933 = vmatpush1.msra.mxu0 0.0
    %1934 = vmatprep.subr.mxu0 0.0
    %1935 = vmatpush1.msra.mxu0 0.0
    %1936 = vmatprep.subr.mxu0 0.0
    %1937 = vmatpush1.msra.mxu0 0.0
    %1938 = vmatprep.subr.mxu0 0.0
    %1939 = vmatpush1.msra.mxu0 0.0
    %1940 = vmatprep.subr.mxu0 0.0
    %1941 = vmatpush1.msra.mxu0 0.0
    %1942 = vmatprep.subr.mxu0 0.0
    %1943 = vmatpush1.msra.mxu0 0.0
    %1944 = vmatprep.subr.mxu0 0.0
    %1945 = vmatpush1.msra.mxu0 0.0
    %1946 = vmatprep.subr.mxu0 0.0
    %1947 = vmatpush1.msra.mxu0 0.0
    %1948 = vmatprep.subr.mxu0 0.0
    %1949 = vmatpush1.msra.mxu0 0.0
    %1950 = vmatprep.subr.mxu0 0.0
    %1951 = vmatpush1.msra.mxu0 0.0
    %1952 = vmatprep.subr.mxu0 0.0
    %1953 = vmatpush1.msra.mxu0 0.0
    %1954 = vmatprep.subr.mxu0 0.0
    %1955 = vmatpush1.msra.mxu0 0.0
    %1956 = vmatprep.subr.mxu0 0.0
    %1957 = vmatpush1.msra.mxu0 0.0
    %1958 = vmatprep.subr.mxu0 0.0
    %1959 = vmatpush1.msra.mxu0 0.0
    %1960 = vmatprep.subr.mxu0 0.0
    %1961 = vmatpush1.msra.mxu0 0.0
    %1962 = vmatprep.subr.mxu0 0.0
    %1963 = vmatpush1.msra.mxu0 0.0
    %1964 = vmatprep.subr.mxu0 0.0
    %1965 = vmatpush1.msra.mxu0 0.0
    %1966 = vmatprep.subr.mxu0 0.0
    %1967 = vmatpush1.msra.mxu0 0.0
    %1968 = vmatprep.subr.mxu0 0.0
    %1969 = vmatpush1.msra.mxu0 0.0
    %1970 = vmatprep.subr.mxu0 0.0
    %1971 = vmatpush1.msra.mxu0 0.0
    %1972 = vmatprep.subr.mxu0 0.0
    %1973 = vmatpush1.msra.mxu0 0.0
    %1974 = vmatprep.subr.mxu0 0.0
    %1975 = vmatpush1.msra.mxu0 0.0
    %1976 = vmatprep.subr.mxu0 0.0
    %1977 = vmatpush1.msra.mxu0 0.0
    %1978 = vmatprep.subr.mxu0 0.0
    %1979 = vmatpush1.msra.mxu0 0.0
    %1980 = vmatprep.subr.mxu0 0.0
    %1981 = vmatpush1.msra.mxu0 0.0
    %1982 = vmatprep.subr.mxu0 0.0
    %1983 = vmatpush1.msra.mxu0 0.0
    %1984 = vmatprep.subr.mxu0 0.0
    %1985 = vmatpush1.msra.mxu0 0.0
    %1986 = vmatprep.subr.mxu0 0.0
    %1987 = vmatpush1.msra.mxu0 0.0
    %1988 = vmatprep.mubr.f32.mxu0 0.0
    %1989 = vmatmul.mubr.f32.gmra.mrb[0].mxu0 %v1922
    %v1990 = vpop.f32.mrb[0].mxu0
    %v1991 = vadd.f32 0.0, %v1990
    %v1992 = vpop.f32.mrb[0].mxu0
    %1993 = vdwg.mxu0
    %1996 = vrot.lane.b32.xlu0 %v1915, 16
    %v1997 = vpop.permute.xlu0 %1996
    %1998 = vrot.lane.b32.xlu0 %v1991, 16
    %v1999 = vpop.permute.xlu0 %1998
    %v2002 = vsel %vm194, %v1585, %v1997
    %v2003 = vsel %vm194, %v1661, %v1999
    %v2004 = vlaneseq
    %v2005 = vshrl.u32 %v2004, 7
    %v2006 = vsub.s32 1, %v2005
    %v2007 = vrot.slane %v1241, %v2006
    %2012 = vrot.lane.b32.xlu0 %v1232, 32
    %v2013 = vpop.permute.xlu0 %2012
    %2014 = vrot.lane.b32.xlu0 %v1234, 32
    %v2015 = vpop.permute.xlu0 %2014
    %2016 = vrot.lane.b32.xlu0 %v1236, 32
    %v2017 = vpop.permute.xlu0 %2016
    %2018 = vrot.lane.b32.xlu0 %v1238, 32
    %v2019 = vpop.permute.xlu0 %2018
    %v2025 = vsel %vm35, %v2002, 0
    %v2028 = vsel %vm35, %v2003, 0
    %2030 = vmatprep.subr.mxu0 0.0
    %2031 = vmatpush1.msra.mxu0 %v2013
    %2032 = vmatprep.subr.mxu0 0.0
    %2033 = vmatpush1.msra.mxu0 %v2015
    %2034 = vmatprep.subr.mxu0 0.0
    %2035 = vmatpush1.msra.mxu0 %v2017
    %2036 = vmatprep.subr.mxu0 0.0
    %2037 = vmatpush1.msra.mxu0 %v2019
    %2038 = vmatprep.subr.mxu0 0.0
    %2039 = vmatpush1.msra.mxu0 0.0
    %2040 = vmatprep.subr.mxu0 0.0
    %2041 = vmatpush1.msra.mxu0 0.0
    %2042 = vmatprep.subr.mxu0 0.0
    %2043 = vmatpush1.msra.mxu0 0.0
    %2044 = vmatprep.subr.mxu0 0.0
    %2045 = vmatpush1.msra.mxu0 0.0
    %2046 = vmatprep.subr.mxu0 0.0
    %2047 = vmatpush1.msra.mxu0 0.0
    %2048 = vmatprep.subr.mxu0 0.0
    %2049 = vmatpush1.msra.mxu0 0.0
    %2050 = vmatprep.subr.mxu0 0.0
    %2051 = vmatpush1.msra.mxu0 0.0
    %2052 = vmatprep.subr.mxu0 0.0
    %2053 = vmatpush1.msra.mxu0 0.0
    %2054 = vmatprep.subr.mxu0 0.0
    %2055 = vmatpush1.msra.mxu0 0.0
    %2056 = vmatprep.subr.mxu0 0.0
    %2057 = vmatpush1.msra.mxu0 0.0
    %2058 = vmatprep.subr.mxu0 0.0
    %2059 = vmatpush1.msra.mxu0 0.0
    %2060 = vmatprep.subr.mxu0 0.0
    %2061 = vmatpush1.msra.mxu0 0.0
    %2062 = vmatprep.subr.mxu0 0.0
    %2063 = vmatpush1.msra.mxu0 0.0
    %2064 = vmatprep.subr.mxu0 0.0
    %2065 = vmatpush1.msra.mxu0 0.0
    %2066 = vmatprep.subr.mxu0 0.0
    %2067 = vmatpush1.msra.mxu0 0.0
    %2068 = vmatprep.subr.mxu0 0.0
    %2069 = vmatpush1.msra.mxu0 0.0
    %2070 = vmatprep.subr.mxu0 0.0
    %2071 = vmatpush1.msra.mxu0 0.0
    %2072 = vmatprep.subr.mxu0 0.0
    %2073 = vmatpush1.msra.mxu0 0.0
    %2074 = vmatprep.subr.mxu0 0.0
    %2075 = vmatpush1.msra.mxu0 0.0
    %2076 = vmatprep.subr.mxu0 0.0
    %2077 = vmatpush1.msra.mxu0 0.0
    %2078 = vmatprep.subr.mxu0 0.0
    %2079 = vmatpush1.msra.mxu0 0.0
    %2080 = vmatprep.subr.mxu0 0.0
    %2081 = vmatpush1.msra.mxu0 0.0
    %2082 = vmatprep.subr.mxu0 0.0
    %2083 = vmatpush1.msra.mxu0 0.0
    %2084 = vmatprep.subr.mxu0 0.0
    %2085 = vmatpush1.msra.mxu0 0.0
    %2086 = vmatprep.subr.mxu0 0.0
    %2087 = vmatpush1.msra.mxu0 0.0
    %2088 = vmatprep.subr.mxu0 0.0
    %2089 = vmatpush1.msra.mxu0 0.0
    %2090 = vmatprep.subr.mxu0 0.0
    %2091 = vmatpush1.msra.mxu0 0.0
    %2092 = vmatprep.subr.mxu0 0.0
    %2093 = vmatpush1.msra.mxu0 0.0
    %2094 = vmatprep.mubr.f32.mxu0 0.0
    %2095 = vmatmul.mubr.f32.gmra.mrb[0].mxu0 %v2025
    %v2096 = vpop.f32.mrb[0].mxu0
    %v2097 = vadd.f32 %v2007, %v2096
    %v2098 = vpop.f32.mrb[0].mxu0
    %2099 = vmatprep.mubr.f32.mxu0 0.0
    %2100 = vmatmul.mubr.f32.gmra.mrb[0].mxu0 %v2028
    %v2101 = vpop.f32.mrb[0].mxu0
    %v2102 = vadd.f32 %v2007, %v2101
    %v2103 = vpop.f32.mrb[0].mxu0
    %2104 = vdwg.mxu0
    %v2105 = vadd.f32 %v2097, %v1229
    %v2106 = vadd.f32 %v2102, %v1230
    %v2107 = vsel %vm35, %v2105, 0.0
    %2108 = vadd.xlane.f32.xlu0 %v2107
    %v2109 = vpop.xlane.xlu0 %2108
    %v2110 = vsel %vm35, %v2106, 0.0
    %2111 = vadd.xlane.f32.xlu0 %v2110
    %v2112 = vpop.xlane.xlu0 %2111
    %v2113 = vmul.f32 %v2109, %v42
    %v2114 = vmul.f32 %v2112, %v42
    %v2115 = vsub.f32 %v2105, %v2113
    %v2116 = vsub.f32 %v2106, %v2114
    %v2117 = vmul.f32 %v2115, %v2115
    %v2118 = vmul.f32 %v2116, %v2116
    %v2119 = vsel %vm35, %v2117, 0.0
    %2120 = vadd.xlane.f32.xlu0 %v2119
    %v2121 = vpop.xlane.xlu0 %2120
    %v2122 = vsel %vm35, %v2118, 0.0
    %2123 = vadd.xlane.f32.xlu0 %v2122
    %v2124 = vpop.xlane.xlu0 %2123
    %v2125 = vmul.f32 %v2121, %v42
    %v2126 = vmul.f32 %v2124, %v42
    %v2127 = vadd.f32 %v2125, 1e-12
    %v2128 = vadd.f32 %v2126, 1e-12
    %v2129 = vrsqrt.pop %v2127
    %v2130 = vrsqrt.pop %v2128
    %v2131 = vmul.f32 %v2115, %v2129
    %v2132 = vmul.f32 %v2116, %v2130
    %v2133 = vlaneseq
    %v2134 = vshrl.u32 %v2133, 7
    %v2135 = vsub.s32 2, %v2134
    %v2136 = vrot.slane %v1241, %v2135
    %v2137 = vmul.f32 %v2131, %v2136
    %v2138 = vmul.f32 %v2132, %v2136
    %v2139 = vlaneseq
    %v2140 = vshrl.u32 %v2139, 7
    %v2141 = vsub.s32 3, %v2140
    %v2142 = vrot.slane %v1241, %v2141
    %v2143 = vadd.f32 %v2137, %v2142
    %v2144 = vadd.f32 %v2138, %v2142
    %v2145 = vlaneseq
    %v2146 = vshrl.u32 %v2145, 7
    %v2147 = vsub.s32 4, %v2146
    %v2148 = vrot.slane %v1241, %v2147
    %v2150 = vsel %vm35, %v2143, 0
    %v2153 = vsel %vm35, %v2144, 0
    %2155 = vmatprep.subr.mxu0 0.0
    %2156 = vmatpush1.msra.mxu0 %v1233
    %2157 = vmatprep.subr.mxu0 0.0
    %2158 = vmatpush1.msra.mxu0 %v1235
    %2159 = vmatprep.subr.mxu0 0.0
    %2160 = vmatpush1.msra.mxu0 %v1237
    %2161 = vmatprep.subr.mxu0 0.0
    %2162 = vmatpush1.msra.mxu0 %v1239
    %2163 = vmatprep.subr.mxu0 0.0
    %2164 = vmatpush1.msra.mxu0 0.0
    %2165 = vmatprep.subr.mxu0 0.0
    %2166 = vmatpush1.msra.mxu0 0.0
    %2167 = vmatprep.subr.mxu0 0.0
    %2168 = vmatpush1.msra.mxu0 0.0
    %2169 = vmatprep.subr.mxu0 0.0
    %2170 = vmatpush1.msra.mxu0 0.0
    %2171 = vmatprep.subr.mxu0 0.0
    %2172 = vmatpush1.msra.mxu0 0.0
    %2173 = vmatprep.subr.mxu0 0.0
    %2174 = vmatpush1.msra.mxu0 0.0
    %2175 = vmatprep.subr.mxu0 0.0
    %2176 = vmatpush1.msra.mxu0 0.0
    %2177 = vmatprep.subr.mxu0 0.0
    %2178 = vmatpush1.msra.mxu0 0.0
    %2179 = vmatprep.subr.mxu0 0.0
    %2180 = vmatpush1.msra.mxu0 0.0
    %2181 = vmatprep.subr.mxu0 0.0
    %2182 = vmatpush1.msra.mxu0 0.0
    %2183 = vmatprep.subr.mxu0 0.0
    %2184 = vmatpush1.msra.mxu0 0.0
    %2185 = vmatprep.subr.mxu0 0.0
    %2186 = vmatpush1.msra.mxu0 0.0
    %2187 = vmatprep.subr.mxu0 0.0
    %2188 = vmatpush1.msra.mxu0 0.0
    %2189 = vmatprep.subr.mxu0 0.0
    %2190 = vmatpush1.msra.mxu0 0.0
    %2191 = vmatprep.subr.mxu0 0.0
    %2192 = vmatpush1.msra.mxu0 0.0
    %2193 = vmatprep.subr.mxu0 0.0
    %2194 = vmatpush1.msra.mxu0 0.0
    %2195 = vmatprep.subr.mxu0 0.0
    %2196 = vmatpush1.msra.mxu0 0.0
    %2197 = vmatprep.subr.mxu0 0.0
    %2198 = vmatpush1.msra.mxu0 0.0
    %2199 = vmatprep.subr.mxu0 0.0
    %2200 = vmatpush1.msra.mxu0 0.0
    %2201 = vmatprep.subr.mxu0 0.0
    %2202 = vmatpush1.msra.mxu0 0.0
    %2203 = vmatprep.subr.mxu0 0.0
    %2204 = vmatpush1.msra.mxu0 0.0
    %2205 = vmatprep.subr.mxu0 0.0
    %2206 = vmatpush1.msra.mxu0 0.0
    %2207 = vmatprep.subr.mxu0 0.0
    %2208 = vmatpush1.msra.mxu0 0.0
    %2209 = vmatprep.subr.mxu0 0.0
    %2210 = vmatpush1.msra.mxu0 0.0
    %2211 = vmatprep.subr.mxu0 0.0
    %2212 = vmatpush1.msra.mxu0 0.0
    %2213 = vmatprep.subr.mxu0 0.0
    %2214 = vmatpush1.msra.mxu0 0.0
    %2215 = vmatprep.subr.mxu0 0.0
    %2216 = vmatpush1.msra.mxu0 0.0
    %2217 = vmatprep.subr.mxu0 0.0
    %2218 = vmatpush1.msra.mxu0 0.0
    %2219 = vmatprep.mubr.f32.mxu0 0.0
    %2220 = vmatmul.mubr.f32.gmra.mrb[0].mxu0 %v2150
    %v2221 = vpop.f32.mrb[0].mxu0
    %v2222 = vadd.f32 %v2148, %v2221
    %v2223 = vpop.f32.mrb[0].mxu0
    %2224 = vmatprep.mubr.f32.mxu0 0.0
    %2225 = vmatmul.mubr.f32.gmra.mrb[0].mxu0 %v2153
    %v2226 = vpop.f32.mrb[0].mxu0
    %v2227 = vadd.f32 %v2148, %v2226
    %v2228 = vpop.f32.mrb[0].mxu0
    %2229 = vdwg.mxu0
    %v2230 = vmul.f32 %v2222, %v2222
    %v2231 = vmul.f32 %v2227, %v2227
    %v2232 = vmul.f32 %v2222, %v2230
    %v2233 = vmul.f32 %v2227, %v2231
    %v2234 = vmul.f32 %v2232, 0.044715
    %v2235 = vmul.f32 %v2233, 0.044715
    %v2236 = vadd.f32 %v2222, %v2234
    %v2237 = vadd.f32 %v2227, %v2235
    %v2238 = vmul.f32 %v2236, 0.7978846
    %v2239 = vmul.f32 %v2237, 0.7978846
    %v2240 = vtanh.pop %v2238
    %v2241 = vtanh.pop %v2239
    %v2242 = vadd.f32 %v2240, 1.0
    %v2243 = vadd.f32 %v2241, 1.0
    %v2244 = vmul.f32 %v2242, 0.5
    %v2245 = vmul.f32 %v2243, 0.5
    %v2246 = vmul.f32 %v2222, %v2244
    %v2247 = vmul.f32 %v2227, %v2245
    %v2248 = vlaneseq
    %v2249 = vshrl.u32 %v2248, 7
    %v2250 = vsub.s32 5, %v2249
    %v2251 = vrot.slane %v1241, %v2250
    %v2253 = vsel %vm1109, %v2246, 0
    %v2256 = vsel %vm1109, %v2247, 0
    %2258 = vmatprep.subr.mxu0 0.0
    %2259 = vmatpush1.msra.mxu0 %v1243
    %2260 = vmatprep.subr.mxu0 0.0
    %2261 = vmatpush1.msra.mxu0 %v1244
    %2262 = vmatprep.subr.mxu0 0.0
    %2263 = vmatpush1.msra.mxu0 %v1245
    %2264 = vmatprep.subr.mxu0 0.0
    %2265 = vmatpush1.msra.mxu0 %v1246
    %2266 = vmatprep.subr.mxu0 0.0
    %2267 = vmatpush1.msra.mxu0 %v1247
    %2268 = vmatprep.subr.mxu0 0.0
    %2269 = vmatpush1.msra.mxu0 %v1248
    %2270 = vmatprep.subr.mxu0 0.0
    %2271 = vmatpush1.msra.mxu0 %v1249
    %2272 = vmatprep.subr.mxu0 0.0
    %2273 = vmatpush1.msra.mxu0 %v1250
    %2274 = vmatprep.subr.mxu0 0.0
    %2275 = vmatpush1.msra.mxu0 0.0
    %2276 = vmatprep.subr.mxu0 0.0
    %2277 = vmatpush1.msra.mxu0 0.0
    %2278 = vmatprep.subr.mxu0 0.0
    %2279 = vmatpush1.msra.mxu0 0.0
    %2280 = vmatprep.subr.mxu0 0.0
    %2281 = vmatpush1.msra.mxu0 0.0
    %2282 = vmatprep.subr.mxu0 0.0
    %2283 = vmatpush1.msra.mxu0 0.0
    %2284 = vmatprep.subr.mxu0 0.0
    %2285 = vmatpush1.msra.mxu0 0.0
    %2286 = vmatprep.subr.mxu0 0.0
    %2287 = vmatpush1.msra.mxu0 0.0
    %2288 = vmatprep.subr.mxu0 0.0
    %2289 = vmatpush1.msra.mxu0 0.0
    %2290 = vmatprep.subr.mxu0 0.0
    %2291 = vmatpush1.msra.mxu0 0.0
    %2292 = vmatprep.subr.mxu0 0.0
    %2293 = vmatpush1.msra.mxu0 0.0
    %2294 = vmatprep.subr.mxu0 0.0
    %2295 = vmatpush1.msra.mxu0 0.0
    %2296 = vmatprep.subr.mxu0 0.0
    %2297 = vmatpush1.msra.mxu0 0.0
    %2298 = vmatprep.subr.mxu0 0.0
    %2299 = vmatpush1.msra.mxu0 0.0
    %2300 = vmatprep.subr.mxu0 0.0
    %2301 = vmatpush1.msra.mxu0 0.0
    %2302 = vmatprep.subr.mxu0 0.0
    %2303 = vmatpush1.msra.mxu0 0.0
    %2304 = vmatprep.subr.mxu0 0.0
    %2305 = vmatpush1.msra.mxu0 0.0
    %2306 = vmatprep.subr.mxu0 0.0
    %2307 = vmatpush1.msra.mxu0 0.0
    %2308 = vmatprep.subr.mxu0 0.0
    %2309 = vmatpush1.msra.mxu0 0.0
    %2310 = vmatprep.subr.mxu0 0.0
    %2311 = vmatpush1.msra.mxu0 0.0
    %2312 = vmatprep.subr.mxu0 0.0
    %2313 = vmatpush1.msra.mxu0 0.0
    %2314 = vmatprep.subr.mxu0 0.0
    %2315 = vmatpush1.msra.mxu0 0.0
    %2316 = vmatprep.subr.mxu0 0.0
    %2317 = vmatpush1.msra.mxu0 0.0
    %2318 = vmatprep.subr.mxu0 0.0
    %2319 = vmatpush1.msra.mxu0 0.0
    %2320 = vmatprep.subr.mxu0 0.0
    %2321 = vmatpush1.msra.mxu0 0.0
    %2322 = vmatprep.mubr.f32.mxu0 0.0
    %2323 = vmatmul.mubr.f32.gmra.mrb[0].mxu0 %v2253
    %v2324 = vpop.f32.mrb[0].mxu0
    %v2325 = vadd.f32 %v2251, %v2324
    %v2326 = vpop.f32.mrb[0].mxu0
    %2327 = vmatprep.mubr.f32.mxu0 0.0
    %2328 = vmatmul.mubr.f32.gmra.mrb[0].mxu0 %v2256
    %v2329 = vpop.f32.mrb[0].mxu0
    %v2330 = vadd.f32 %v2251, %v2329
    %v2331 = vpop.f32.mrb[0].mxu0
    %2332 = vdwg.mxu0
    %v2333 = vadd.f32 %v2325, %v2143
    %v2334 = vadd.f32 %v2330, %v2144
    %v2335 = vsel %vm35, %v2333, 0.0
    %2336 = vadd.xlane.f32.xlu0 %v2335
    %v2337 = vpop.xlane.xlu0 %2336
    %v2338 = vsel %vm35, %v2334, 0.0
    %2339 = vadd.xlane.f32.xlu0 %v2338
    %v2340 = vpop.xlane.xlu0 %2339
    %v2341 = vmul.f32 %v2337, %v42
    %v2342 = vmul.f32 %v2340, %v42
    %v2343 = vsub.f32 %v2333, %v2341
    %v2344 = vsub.f32 %v2334, %v2342
    %v2345 = vmul.f32 %v2343, %v2343
    %v2346 = vmul.f32 %v2344, %v2344
    %v2347 = vsel %vm35, %v2345, 0.0
    %2348 = vadd.xlane.f32.xlu0 %v2347
    %v2349 = vpop.xlane.xlu0 %2348
    %v2350 = vsel %vm35, %v2346, 0.0
    %2351 = vadd.xlane.f32.xlu0 %v2350
    %v2352 = vpop.xlane.xlu0 %2351
    %v2353 = vmul.f32 %v2349, %v42
    %v2354 = vmul.f32 %v2352, %v42
    %v2355 = vadd.f32 %v2353, 1e-12
    %v2356 = vadd.f32 %v2354, 1e-12
    %v2357 = vrsqrt.pop %v2355
    %v2358 = vrsqrt.pop %v2356
    %v2359 = vmul.f32 %v2343, %v2357
    %v2360 = vmul.f32 %v2344, %v2358
    %v2361 = vlaneseq
    %v2362 = vshrl.u32 %v2361, 7
    %v2363 = vsub.s32 6, %v2362
    %v2364 = vrot.slane %v1241, %v2363
    %v2365 = vmul.f32 %v2359, %v2364
    %v2366 = vmul.f32 %v2360, %v2364
    %v2367 = vlaneseq
    %v2368 = vshrl.u32 %v2367, 7
    %v2369 = vsub.s32 7, %v2368
    %v2370 = vrot.slane %v1241, %v2369
    %v2371 = vadd.f32 %v2365, %v2370
    %v2372 = vadd.f32 %v2366, %v2370
    %v2373 = vlaneseq
    %v2374 = vshrl.u32 %v2373, 7
    %v2375 = vsub.s32 2, %v2374
    %v2376 = vrot.slane %v31, %v2375
    %v2379 = vrot.slane %v2372, 7
    %vm2380 = vcmask 1041409
    %v2381 = vsel %vm2380, %v2379, %v2371
    %v2382 = vsel %vm35, %v2381, 0
    %2384 = vmatprep.subr.mxu0 0.0
    %2385 = vmatpush1.msra.mxu0 %v27
    %2386 = vmatprep.subr.mxu0 0.0
    %2387 = vmatpush1.msra.mxu0 %v28
    %2388 = vmatprep.subr.mxu0 0.0
    %2389 = vmatpush1.msra.mxu0 %v29
    %2390 = vmatprep.subr.mxu0 0.0
    %2391 = vmatpush1.msra.mxu0 %v30
    %2392 = vmatprep.subr.mxu0 0.0
    %2393 = vmatpush1.msra.mxu0 0.0
    %2394 = vmatprep.subr.mxu0 0.0
    %2395 = vmatpush1.msra.mxu0 0.0
    %2396 = vmatprep.subr.mxu0 0.0
    %2397 = vmatpush1.msra.mxu0 0.0
    %2398 = vmatprep.subr.mxu0 0.0
    %2399 = vmatpush1.msra.mxu0 0.0
    %2400 = vmatprep.subr.mxu0 0.0
    %2401 = vmatpush1.msra.mxu0 0.0
    %2402 = vmatprep.subr.mxu0 0.0
    %2403 = vmatpush1.msra.mxu0 0.0
    %2404 = vmatprep.subr.mxu0 0.0
    %2405 = vmatpush1.msra.mxu0 0.0
    %2406 = vmatprep.subr.mxu0 0.0
    %2407 = vmatpush1.msra.mxu0 0.0
    %2408 = vmatprep.subr.mxu0 0.0
    %2409 = vmatpush1.msra.mxu0 0.0
    %2410 = vmatprep.subr.mxu0 0.0
    %2411 = vmatpush1.msra.mxu0 0.0
    %2412 = vmatprep.subr.mxu0 0.0
    %2413 = vmatpush1.msra.mxu0 0.0
    %2414 = vmatprep.subr.mxu0 0.0
    %2415 = vmatpush1.msra.mxu0 0.0
    %2416 = vmatprep.subr.mxu0 0.0
    %2417 = vmatpush1.msra.mxu0 0.0
    %2418 = vmatprep.subr.mxu0 0.0
    %2419 = vmatpush1.msra.mxu0 0.0
    %2420 = vmatprep.subr.mxu0 0.0
    %2421 = vmatpush1.msra.mxu0 0.0
    %2422 = vmatprep.subr.mxu0 0.0
    %2423 = vmatpush1.msra.mxu0 0.0
    %2424 = vmatprep.subr.mxu0 0.0
    %2425 = vmatpush1.msra.mxu0 0.0
    %2426 = vmatprep.subr.mxu0 0.0
    %2427 = vmatpush1.msra.mxu0 0.0
    %2428 = vmatprep.subr.mxu0 0.0
    %2429 = vmatpush1.msra.mxu0 0.0
    %2430 = vmatprep.subr.mxu0 0.0
    %2431 = vmatpush1.msra.mxu0 0.0
    %2432 = vmatprep.subr.mxu0 0.0
    %2433 = vmatpush1.msra.mxu0 0.0
    %2434 = vmatprep.subr.mxu0 0.0
    %2435 = vmatpush1.msra.mxu0 0.0
    %2436 = vmatprep.subr.mxu0 0.0
    %2437 = vmatpush1.msra.mxu0 0.0
    %2438 = vmatprep.subr.mxu0 0.0
    %2439 = vmatpush1.msra.mxu0 0.0
    %2440 = vmatprep.subr.mxu0 0.0
    %2441 = vmatpush1.msra.mxu0 0.0
    %2442 = vmatprep.subr.mxu0 0.0
    %2443 = vmatpush1.msra.mxu0 0.0
    %2444 = vmatprep.subr.mxu0 0.0
    %2445 = vmatpush1.msra.mxu0 0.0
    %2446 = vmatprep.subr.mxu0 0.0
    %2447 = vmatpush1.msra.mxu0 0.0
    %2448 = vmatprep.mubr.f32.mxu0 0.0
    %2449 = vmatmul.mubr.f32.gmra.mrb[0].mxu0 %v2382
    %v2450 = vpop.f32.mrb[0].mxu0
    %v2451 = vadd.f32 %v2376, %v2450
    %v2452 = vpop.f32.mrb[0].mxu0
    %2453 = vdwg.mxu0
    %v2454 = vtanh.pop %v2451
    %v2455 = vlaneseq
    %v2456 = vshrl.u32 %v2455, 7
    %v2457 = vsub.s32 3, %v2456
    %v2458 = vrot.slane %v31, %v2457
    %2463 = vrot.lane.b32.xlu0 %v27, 96
    %v2464 = vpop.permute.xlu0 %2463
    %2465 = vrot.lane.b32.xlu0 %v28, 96
    %v2466 = vpop.permute.xlu0 %2465
    %2467 = vrot.lane.b32.xlu0 %v29, 96
    %v2468 = vpop.permute.xlu0 %2467
    %2469 = vrot.lane.b32.xlu0 %v30, 96
    %v2470 = vpop.permute.xlu0 %2469
    %v2476 = vsel %vm35, %v2454, 0
    %2478 = vmatprep.subr.mxu0 0.0
    %2479 = vmatpush1.msra.mxu0 %v2464
    %2480 = vmatprep.subr.mxu0 0.0
    %2481 = vmatpush1.msra.mxu0 %v2466
    %2482 = vmatprep.subr.mxu0 0.0
    %2483 = vmatpush1.msra.mxu0 %v2468
    %2484 = vmatprep.subr.mxu0 0.0
    %2485 = vmatpush1.msra.mxu0 %v2470
    %2486 = vmatprep.subr.mxu0 0.0
    %2487 = vmatpush1.msra.mxu0 0.0
    %2488 = vmatprep.subr.mxu0 0.0
    %2489 = vmatpush1.msra.mxu0 0.0
    %2490 = vmatprep.subr.mxu0 0.0
    %2491 = vmatpush1.msra.mxu0 0.0
    %2492 = vmatprep.subr.mxu0 0.0
    %2493 = vmatpush1.msra.mxu0 0.0
    %2494 = vmatprep.subr.mxu0 0.0
    %2495 = vmatpush1.msra.mxu0 0.0
    %2496 = vmatprep.subr.mxu0 0.0
    %2497 = vmatpush1.msra.mxu0 0.0
    %2498 = vmatprep.subr.mxu0 0.0
    %2499 = vmatpush1.msra.mxu0 0.0
    %2500 = vmatprep.subr.mxu0 0.0
    %2501 = vmatpush1.msra.mxu0 0.0
    %2502 = vmatprep.subr.mxu0 0.0
    %2503 = vmatpush1.msra.mxu0 0.0
    %2504 = vmatprep.subr.mxu0 0.0
    %2505 = vmatpush1.msra.mxu0 0.0
    %2506 = vmatprep.subr.mxu0 0.0
    %2507 = vmatpush1.msra.mxu0 0.0
    %2508 = vmatprep.subr.mxu0 0.0
    %2509 = vmatpush1.msra.mxu0 0.0
    %2510 = vmatprep.subr.mxu0 0.0
    %2511 = vmatpush1.msra.mxu0 0.0
    %2512 = vmatprep.subr.mxu0 0.0
    %2513 = vmatpush1.msra.mxu0 0.0
    %2514 = vmatprep.subr.mxu0 0.0
    %2515 = vmatpush1.msra.mxu0 0.0
    %2516 = vmatprep.subr.mxu0 0.0
    %2517 = vmatpush1.msra.mxu0 0.0
    %2518 = vmatprep.subr.mxu0 0.0
    %2519 = vmatpush1.msra.mxu0 0.0
    %2520 = vmatprep.subr.mxu0 0.0
    %2521 = vmatpush1.msra.mxu0 0.0
    %2522 = vmatprep.subr.mxu0 0.0
    %2523 = vmatpush1.msra.mxu0 0.0
    %2524 = vmatprep.subr.mxu0 0.0
    %2525 = vmatpush1.msra.mxu0 0.0
    %2526 = vmatprep.subr.mxu0 0.0
    %2527 = vmatpush1.msra.mxu0 0.0
    %2528 = vmatprep.subr.mxu0 0.0
    %2529 = vmatpush1.msra.mxu0 0.0
    %2530 = vmatprep.subr.mxu0 0.0
    %2531 = vmatpush1.msra.mxu0 0.0
    %2532 = vmatprep.subr.mxu0 0.0
    %2533 = vmatpush1.msra.mxu0 0.0
    %2534 = vmatprep.subr.mxu0 0.0
    %2535 = vmatpush1.msra.mxu0 0.0
    %2536 = vmatprep.subr.mxu0 0.0
    %2537 = vmatpush1.msra.mxu0 0.0
    %2538 = vmatprep.subr.mxu0 0.0
    %2539 = vmatpush1.msra.mxu0 0.0
    %2540 = vmatprep.subr.mxu0 0.0
    %2541 = vmatpush1.msra.mxu0 0.0
    %2542 = vmatprep.mubr.f32.mxu0 0.0
    %2543 = vmatmul.mubr.f32.gmra.mrb[0].mxu0 %v2476
    %v2544 = vpop.f32.mrb[0].mxu0
    %v2545 = vadd.f32 %v2458, %v2544
    %v2546 = vpop.f32.mrb[0].mxu0
    %2547 = vdwg.mxu0
    %v2548 = vmax.f32 %v2545, 0.0
    %vm2549 = vcmask 33792
    %v2550 = vsel %vm2549, %v2548, 0.0
    %v2551 = vrot.slane %v2550, 4
    %v2552 = vadd.f32 %v2550, %v2551
    %v2553 = vrot.slane %v2552, 2
    %v2554 = vadd.f32 %v2552, %v2553
    %v2555 = vrot.slane %v2554, 1
    %v2556 = vadd.f32 %v2554, %v2555
    %v2557 = vrcp.pop 2.0
    %v2558 = vmul.f32 %v2556, %v2557
    %v2559 = vsub.f32 %v2548, %v2558
    %v2560 = vmul.f32 %v2559, %v2559
    %v2561 = vsel %vm2549, %v2560, 0.0
    %v2562 = vrot.slane %v2561, 4
    %v2563 = vadd.f32 %v2561, %v2562
    %v2564 = vrot.slane %v2563, 2
    %v2565 = vadd.f32 %v2563, %v2564
    %v2566 = vrot.slane %v2565, 1
    %v2567 = vadd.f32 %v2565, %v2566
    %v2568 = vmul.f32 %v2567, %v2557
    %v2569 = vadd.f32 %v2568, 1e-05
    %v2570 = vrsqrt.pop %v2569
    %v2571 = vmul.f32 %v2559, %v2570
    %v2572 = vlaneseq
    %v2573 = vshrl.u32 %v2572, 7
    %v2574 = vsub.s32 4, %v2573
    %v2575 = vrot.slane %v31, %v2574
    %v2576 = vmul.f32 %v2571, %v2575
    %v2577 = vlaneseq
    %v2578 = vshrl.u32 %v2577, 7
    %v2579 = vsub.s32 5, %v2578
    %v2580 = vrot.slane %v31, %v2579
    %v2581 = vadd.f32 %v2576, %v2580
    %v2582 = vmax.f32 %v2581, 0.0
    %v2583 = vld [vmem:[%s2] sm:$0x3]
    %v2584 = vmax.f32 %v2583, 0.0
    %2586 = vset.pattern.permute.xlu0 0
    %2587 = vperm.xlu0 %2586, %v2584
    %v2588 = vpop.permute.xlu0 %2587
    %v2590 = vlaneseq
    %v2591 = vshrl.u32 %v2590, 7
    %v2592 = vsub.s32 6, %v2591
    %v2593 = vrot.slane %v31, %v2592
    %v2594 = vmul.f32 %v2588, %v2593
    %vm2595 = vcmask 39936
    %v2597 = vsel %vm2595, %v2582, 0
    %vm2599 = vcmask 1044480
    %v2601 = vsel %vm2599, %v32, 0
    %2603 = vmatprep.subr.mxu0 0.0
    %2604 = vmatpush1.msra.mxu0 %v2601
    %2605 = vmatprep.subr.mxu0 0.0
    %2606 = vmatpush1.msra.mxu0 0.0
    %2607 = vmatprep.subr.mxu0 0.0
    %2608 = vmatpush1.msra.mxu0 0.0
    %2609 = vmatprep.subr.mxu0 0.0
    %2610 = vmatpush1.msra.mxu0 0.0
    %2611 = vmatprep.subr.mxu0 0.0
    %2612 = vmatpush1.msra.mxu0 0.0
    %2613 = vmatprep.subr.mxu0 0.0
    %2614 = vmatpush1.msra.mxu0 0.0
    %2615 = vmatprep.subr.mxu0 0.0
    %2616 = vmatpush1.msra.mxu0 0.0
    %2617 = vmatprep.subr.mxu0 0.0
    %2618 = vmatpush1.msra.mxu0 0.0
    %2619 = vmatprep.subr.mxu0 0.0
    %2620 = vmatpush1.msra.mxu0 0.0
    %2621 = vmatprep.subr.mxu0 0.0
    %2622 = vmatpush1.msra.mxu0 0.0
    %2623 = vmatprep.subr.mxu0 0.0
    %2624 = vmatpush1.msra.mxu0 0.0
    %2625 = vmatprep.subr.mxu0 0.0
    %2626 = vmatpush1.msra.mxu0 0.0
    %2627 = vmatprep.subr.mxu0 0.0
    %2628 = vmatpush1.msra.mxu0 0.0
    %2629 = vmatprep.subr.mxu0 0.0
    %2630 = vmatpush1.msra.mxu0 0.0
    %2631 = vmatprep.subr.mxu0 0.0
    %2632 = vmatpush1.msra.mxu0 0.0
    %2633 = vmatprep.subr.mxu0 0.0
    %2634 = vmatpush1.msra.mxu0 0.0
    %2635 = vmatprep.subr.mxu0 0.0
    %2636 = vmatpush1.msra.mxu0 0.0
    %2637 = vmatprep.subr.mxu0 0.0
    %2638 = vmatpush1.msra.mxu0 0.0
    %2639 = vmatprep.subr.mxu0 0.0
    %2640 = vmatpush1.msra.mxu0 0.0
    %2641 = vmatprep.subr.mxu0 0.0
    %2642 = vmatpush1.msra.mxu0 0.0
    %2643 = vmatprep.subr.mxu0 0.0
    %2644 = vmatpush1.msra.mxu0 0.0
    %2645 = vmatprep.subr.mxu0 0.0
    %2646 = vmatpush1.msra.mxu0 0.0
    %2647 = vmatprep.subr.mxu0 0.0
    %2648 = vmatpush1.msra.mxu0 0.0
    %2649 = vmatprep.subr.mxu0 0.0
    %2650 = vmatpush1.msra.mxu0 0.0
    %2651 = vmatprep.subr.mxu0 0.0
    %2652 = vmatpush1.msra.mxu0 0.0
    %2653 = vmatprep.subr.mxu0 0.0
    %2654 = vmatpush1.msra.mxu0 0.0
    %2655 = vmatprep.subr.mxu0 0.0
    %2656 = vmatpush1.msra.mxu0 0.0
    %2657 = vmatprep.subr.mxu0 0.0
    %2658 = vmatpush1.msra.mxu0 0.0
    %2659 = vmatprep.subr.mxu0 0.0
    %2660 = vmatpush1.msra.mxu0 0.0
    %2661 = vmatprep.subr.mxu0 0.0
    %2662 = vmatpush1.msra.mxu0 0.0
    %2663 = vmatprep.subr.mxu0 0.0
    %2664 = vmatpush1.msra.mxu0 0.0
    %2665 = vmatprep.subr.mxu0 0.0
    %2666 = vmatpush1.msra.mxu0 0.0
    %2667 = vmatprep.mubr.f32.mxu0 0.0
    %2668 = vmatmul.mubr.f32.gmra.mrb[0].mxu0 %v2597
    %v2669 = vpop.f32.mrb[0].mxu0
    %v2670 = vadd.f32 %v2594, %v2669
    %v2671 = vpop.f32.mrb[0].mxu0
    %2672 = vdwg.mxu0
    %v2673 = vlaneseq
    %v2674 = vshrl.u32 %v2673, 7
    %v2675 = vsub.s32 7, %v2674
    %v2676 = vrot.slane %v31, %v2675
    %v2677 = vadd.f32 %v2670, %v2676
    %2678 = vst.msk [vmem:[#allocation2] sm:$0x3] %vm2549, %v2677
    // Predicated region
    $region30: #{t_forward.1} parent=1 // pred_check
      _
    $region31: #{t_forward.1} parent=1 // pred_check_branch
      %2680 = sbr.rel (0) target = $region33
    $region32: #{t_forward.1} parent=1 // pred_region
      %s2682 = ssub.s32 32, 32
      %2683 = vsyncadd [#allocation3], %s2682
      %s2685 = sshll.u32 [#allocation2], 4
      %s2686 = int_to_ptr.vmem [resolvable:$true] %s2685
      %2688 = dma.vmem_to_hbm [thread:$0]  %s2686, 32, %s7, [#allocation3]
    $region33: #{t_forward.1} parent=1 // pred_fallthru
      _
    // Predicated region
    $region34: #{t_forward.1} parent=1 // pred_check
      _
    $region35: #{t_forward.1} parent=1 // pred_check_branch
      %2690 = sbr.rel (0) target = $region37
    $region36: #{t_forward.1} parent=1 // pred_region
      %2691 = dma.done [#allocation3], 32
    $region37: #{t_forward.1} parent=1 // pred_fallthru
      _
    %2692 = vsyncpa [#allocation3], 1

</llo_original>
